<compile_context>
chip_gen: v6e
topology: v6e:2x2x1
jax: 0.10.0
libtpu: 0.0.40
codegen_flags: <defaults>
</compile_context>

<pallas_src>
import functools

import jax
import jax.numpy as jnp
from jax.experimental import pallas as pl
from jax.experimental.pallas import tpu as pltpu


def _layernorm_cols(x, w, b, eps=1e-5):
    # x: (C, N) channel-major; normalize over the channel (sublane) axis.
    # Matches nn.LayerNorm: biased variance over features, eps inside rsqrt.
    mu = jnp.mean(x, axis=0, keepdims=True)
    var = jnp.mean((x - mu) ** 2, axis=0, keepdims=True)
    return (x - mu) * jax.lax.rsqrt(var + eps) * w + b


def _gelu_exact(x):
    # nn.GELU() default: exact erf-based GELU.
    return 0.5 * x * (1.0 + jax.lax.erf(x * (1.0 / jnp.sqrt(2.0))))


def _encoder_layer_kernel(
    x_ref, wqkv_ref, wproj_ref, bproj_ref,
    ln1w_ref, ln1b_ref, w1_ref, b1_ref,
    w2_ref, b2_ref, ln2w_ref, ln2b_ref,
    out_ref, *, nhead,
):
    bt, C, N = x_ref.shape
    hd = C // nhead
    bf16 = jnp.bfloat16
    f32 = jnp.float32

    # Hoist all weight / bias / LN-param loads out of the batch-tile loop.
    wqkv = wqkv_ref[...]        # (3C, C) bf16, q rows pre-scaled by 1/sqrt(hd)
    wproj = wproj_ref[...]      # (C, C)  bf16
    w1 = w1_ref[...]            # (H, C)  bf16
    w2 = w2_ref[...]            # (C, H)  bf16
    bproj = bproj_ref[...]      # (C, 1)  f32
    b1 = b1_ref[...]            # (H, 1)  f32
    b2 = b2_ref[...]            # (C, 1)  f32
    ln1w = ln1w_ref[...]; ln1b = ln1b_ref[...]   # (C, 1) f32
    ln2w = ln2w_ref[...]; ln2b = ln2b_ref[...]   # (C, 1) f32

    for b in range(bt):  # static unroll over the batch tile
        xT = x_ref[b]                                   # (C, N) f32, channel-major

        # ---- Attention (all heads batched) --------------------------------
        qkvT = jnp.dot(wqkv, xT.astype(bf16),
                       preferred_element_type=f32)      # (3C, N)
        # timm row order is (3, nhead, hd): contiguous sublane groups per head.
        qT = qkvT[0 * C:1 * C].reshape(nhead, hd, N).astype(bf16)
        kT = qkvT[1 * C:2 * C].reshape(nhead, hd, N).astype(bf16)
        vT = qkvT[2 * C:3 * C].reshape(nhead, hd, N).astype(bf16)

        s = jnp.einsum('hdq,hdk->hqk', qT, kT,
                       preferred_element_type=f32)      # (nhead, N, N), scale pre-folded
        s = s - jnp.max(s, axis=-1, keepdims=True)
        e = jnp.exp(s)
        p = e * pl.reciprocal(jnp.sum(e, axis=-1, keepdims=True), approx=True)

        oT = jnp.einsum('hdk,hqk->hdq', vT, p.astype(bf16),
                        preferred_element_type=f32)     # (nhead, hd, N)
        attnT = oT.reshape(C, N)

        yT = jnp.dot(wproj, attnT.astype(bf16),
                     preferred_element_type=f32) + bproj

        # ---- Residual + LayerNorm 1 ---------------------------------------
        x1 = _layernorm_cols(xT + yT, ln1w, ln1b)

        # ---- MLP -----------------------------------------------------------
        h1 = _gelu_exact(jnp.dot(w1, x1.astype(bf16),
                                 preferred_element_type=f32) + b1)
        m = jnp.dot(w2, h1.astype(bf16),
                    preferred_element_type=f32) + b2

        # ---- Residual + LayerNorm 2 ---------------------------------------
        out_ref[b] = _layernorm_cols(x1 + m, ln2w, ln2b)


def _pick_batch_tile(B, max_tile=4):
    # Largest divisor of B that still leaves >= 2 grid steps (so "parallel" can
    # shard across TensorCores on v7x) while amortizing per-step overhead.
    best = 1
    for t in range(1, max_tile + 1):
        if B % t == 0 and (B // t) >= 2:
            best = t
    return best


def transformer_encoder_layer(x, params, nhead, batch_tile=None):
    """x: (B, N, C) f32. params hold PyTorch-layout (out_features, in_features) weights:
    wqkv (3C, C) with timm's (3, nhead, hd) row order, wproj (C, C), w1 (H, C), w2 (C, H),
    biases / LN params as 1-D vectors."""
    B, N, C = x.shape
    H = params["w1"].shape[0]
    assert C % nhead == 0, "d_model must be divisible by nhead"
    assert params["wqkv"].shape == (3 * C, C)
    assert params["wproj"].shape == (C, C) and params["w2"].shape == (C, H)
    hd = C // nhead
    scale = float(hd) ** -0.5

    bt = batch_tile if batch_tile is not None else _pick_batch_tile(B)
    assert B % bt == 0

    # Fold attention scale into the q rows of the qkv weight (qkv_bias=False -> exact).
    wqkv = params["wqkv"].astype(jnp.float32).at[:C, :].multiply(scale)

    # bf16 weights for the MXU (f32 accumulation happens in-kernel).
    wqkv_bf = wqkv.astype(jnp.bfloat16)
    wproj_bf = params["wproj"].astype(jnp.bfloat16)
    w1_bf = params["w1"].astype(jnp.bfloat16)
    w2_bf = params["w2"].astype(jnp.bfloat16)

    col = lambda v: jnp.asarray(v, jnp.float32).reshape(-1, 1)
    bproj, b1, b2 = col(params["bproj"]), col(params["b1"]), col(params["b2"])
    ln1w, ln1b = col(params["ln1w"]), col(params["ln1b"])
    ln2w, ln2b = col(params["ln2w"]), col(params["ln2b"])

    # Channel-major layout for the kernel: tokens on lanes, features on sublanes.
    x_t = jnp.transpose(x.astype(jnp.float32), (0, 2, 1))   # (B, C, N)

    kernel = functools.partial(_encoder_layer_kernel, nhead=nhead)

    def full(shape):
        return pl.BlockSpec(shape, lambda i: (0,) * len(shape))

    grid_spec = pltpu.PrefetchScalarGridSpec(
        num_scalar_prefetch=0,
        grid=(B // bt,),
        in_specs=[
            pl.BlockSpec((bt, C, N), lambda i: (i, 0, 0)),   # x block (batch tile)
            full((3 * C, C)),   # qkv weight (bf16)
            full((C, C)),       # proj weight (bf16)
            full((C, 1)),       # proj bias
            full((C, 1)),       # norm1 weight
            full((C, 1)),       # norm1 bias
            full((H, C)),       # fc1 weight (bf16)
            full((H, 1)),       # fc1 bias
            full((C, H)),       # fc2 weight (bf16)
            full((C, 1)),       # fc2 bias
            full((C, 1)),       # norm2 weight
            full((C, 1)),       # norm2 bias
        ],
        out_specs=pl.BlockSpec((bt, C, N), lambda i: (i, 0, 0)),
    )

    flops = 2 * B * N * (3 * C * C + 2 * N * C + C * C + 2 * C * H)
    transcendentals = B * (nhead * N * N + N * H)
    weight_bytes = 2 * (3 * C * C + C * C + 2 * C * H) + 4 * (6 * C + H)
    bytes_accessed = 2 * 4 * B * N * C + weight_bytes
    cost = pl.CostEstimate(flops=flops, transcendentals=transcendentals,
                           bytes_accessed=bytes_accessed)

    # Rough VMEM footprint -> explicit limit (leaves headroom on v7x's 64 MiB VMEM).
    act_bytes = 4 * bt * 2 * C * N                                # x / out blocks
    tmp_bytes = 4 * bt * (3 * C * N + 2 * nhead * N * N + H * N + 4 * C * N)
    vmem_limit = int(min(64 * 1024 * 1024,
                         max(32 * 1024 * 1024,
                             2 * (weight_bytes + 2 * act_bytes + tmp_bytes))))

    out_t = pl.pallas_call(
        kernel,
        out_shape=jax.ShapeDtypeStruct((B, C, N), jnp.float32),
        grid_spec=grid_spec,
        compiler_params=pltpu.CompilerParams(
            dimension_semantics=("parallel",),     # batch elements independent (2 TCs on v7x)
            vmem_limit_bytes=vmem_limit,
        ),
        cost_estimate=cost,
    )(x_t, wqkv_bf, wproj_bf, bproj, ln1w, ln1b, w1_bf, b1, w2_bf, b2, ln2w, ln2b)

    return jnp.transpose(out_t, (0, 2, 1))   # back to (B, N, C)


if __name__ == "__main__":
    # Small deterministic config: d_model=64, nhead=8 (head_dim=8), mlp_ratio=4, seq=16, batch=2.
    B, N, C, nhead, mlp_ratio = 2, 16, 64, 8, 4
    H = C * mlp_ratio

    key = jax.random.PRNGKey(0)
    ks = jax.random.split(key, 8)
    params = dict(
        wqkv=jax.random.normal(ks[0], (3 * C, C), jnp.float32) * 0.05,   # PyTorch (out, in)
        wproj=jax.random.normal(ks[1], (C, C), jnp.float32) * 0.05,
        bproj=jax.random.normal(ks[2], (C,), jnp.float32) * 0.02,
        ln1w=jnp.ones((C,), jnp.float32),
        ln1b=jnp.zeros((C,), jnp.float32),
        w1=jax.random.normal(ks[3], (H, C), jnp.float32) * 0.05,
        b1=jax.random.normal(ks[4], (H,), jnp.float32) * 0.02,
        w2=jax.random.normal(ks[5], (C, H), jnp.float32) * 0.05,
        b2=jax.random.normal(ks[6], (C,), jnp.float32) * 0.02,
        ln2w=jnp.ones((C,), jnp.float32),
        ln2b=jnp.zeros((C,), jnp.float32),
    )
    x = jax.random.normal(ks[7], (B, N, C), jnp.float32)

    out = transformer_encoder_layer(x, params, nhead)
    jax.block_until_ready(out)
    assert out.shape == (B, N, C)
    print("KERNEL_OK")
</pallas_src>

<mosaic_0001>
module attributes {stable_mosaic.version = 11 : i64} {
  func.func @_encoder_layer_kernel(%arg0: i32, %arg1: memref<1x64x16xf32, #tpu.memory_space<vmem>>, %arg2: memref<192x64xbf16, #tpu.memory_space<vmem>>, %arg3: memref<64x64xbf16, #tpu.memory_space<vmem>>, %arg4: memref<64x1xf32, #tpu.memory_space<vmem>>, %arg5: memref<64x1xf32, #tpu.memory_space<vmem>>, %arg6: memref<64x1xf32, #tpu.memory_space<vmem>>, %arg7: memref<256x64xbf16, #tpu.memory_space<vmem>>, %arg8: memref<256x1xf32, #tpu.memory_space<vmem>>, %arg9: memref<64x256xbf16, #tpu.memory_space<vmem>>, %arg10: memref<64x1xf32, #tpu.memory_space<vmem>>, %arg11: memref<64x1xf32, #tpu.memory_space<vmem>>, %arg12: memref<64x1xf32, #tpu.memory_space<vmem>>, %arg13: memref<1x64x16xf32, #tpu.memory_space<vmem>>) attributes {dimension_semantics = [#tpu.dimension_semantics<parallel>], iteration_bounds = array<i64: 2>, scalar_prefetch = 0 : i64, scratch_operands = 0 : i64, tpu.core_type = #tpu.core_type<tc>, window_params = [{transform_indices = @transform_0, window_bounds = array<i64: 1, 64, 16>}, {pipeline_mode = #tpu.pipeline_mode<synchronous>, transform_indices = @transform_1, window_bounds = array<i64: 192, 64>}, {pipeline_mode = #tpu.pipeline_mode<synchronous>, transform_indices = @transform_2, window_bounds = array<i64: 64, 64>}, {pipeline_mode = #tpu.pipeline_mode<synchronous>, transform_indices = @transform_3, window_bounds = array<i64: 64, 1>}, {pipeline_mode = #tpu.pipeline_mode<synchronous>, transform_indices = @transform_4, window_bounds = array<i64: 64, 1>}, {pipeline_mode = #tpu.pipeline_mode<synchronous>, transform_indices = @transform_5, window_bounds = array<i64: 64, 1>}, {pipeline_mode = #tpu.pipeline_mode<synchronous>, transform_indices = @transform_6, window_bounds = array<i64: 256, 64>}, {pipeline_mode = #tpu.pipeline_mode<synchronous>, transform_indices = @transform_7, window_bounds = array<i64: 256, 1>}, {pipeline_mode = #tpu.pipeline_mode<synchronous>, transform_indices = @transform_8, window_bounds = array<i64: 64, 256>}, {pipeline_mode = #tpu.pipeline_mode<synchronous>, transform_indices = @transform_9, window_bounds = array<i64: 64, 1>}, {pipeline_mode = #tpu.pipeline_mode<synchronous>, transform_indices = @transform_10, window_bounds = array<i64: 64, 1>}, {pipeline_mode = #tpu.pipeline_mode<synchronous>, transform_indices = @transform_11, window_bounds = array<i64: 64, 1>}, {transform_indices = @transform_12, window_bounds = array<i64: 1, 64, 16>}]} {
    %c0 = arith.constant 0 : index
    %c0_0 = arith.constant 0 : index
    %0 = vector.load %arg2[%c0, %c0_0] : memref<192x64xbf16, #tpu.memory_space<vmem>>, vector<192x64xbf16>
    %c0_1 = arith.constant 0 : index
    %c0_2 = arith.constant 0 : index
    %1 = vector.load %arg3[%c0_1, %c0_2] : memref<64x64xbf16, #tpu.memory_space<vmem>>, vector<64x64xbf16>
    %c0_3 = arith.constant 0 : index
    %c0_4 = arith.constant 0 : index
    %2 = vector.load %arg7[%c0_3, %c0_4] : memref<256x64xbf16, #tpu.memory_space<vmem>>, vector<256x64xbf16>
    %c0_5 = arith.constant 0 : index
    %c0_6 = arith.constant 0 : index
    %3 = vector.load %arg9[%c0_5, %c0_6] : memref<64x256xbf16, #tpu.memory_space<vmem>>, vector<64x256xbf16>
    %c0_7 = arith.constant 0 : index
    %c0_8 = arith.constant 0 : index
    %4 = vector.load %arg4[%c0_7, %c0_8] : memref<64x1xf32, #tpu.memory_space<vmem>>, vector<64x1xf32>
    %c0_9 = arith.constant 0 : index
    %c0_10 = arith.constant 0 : index
    %5 = vector.load %arg8[%c0_9, %c0_10] : memref<256x1xf32, #tpu.memory_space<vmem>>, vector<256x1xf32>
    %c0_11 = arith.constant 0 : index
    %c0_12 = arith.constant 0 : index
    %6 = vector.load %arg10[%c0_11, %c0_12] : memref<64x1xf32, #tpu.memory_space<vmem>>, vector<64x1xf32>
    %c0_13 = arith.constant 0 : index
    %c0_14 = arith.constant 0 : index
    %7 = vector.load %arg5[%c0_13, %c0_14] : memref<64x1xf32, #tpu.memory_space<vmem>>, vector<64x1xf32>
    %c0_15 = arith.constant 0 : index
    %c0_16 = arith.constant 0 : index
    %8 = vector.load %arg6[%c0_15, %c0_16] : memref<64x1xf32, #tpu.memory_space<vmem>>, vector<64x1xf32>
    %c0_17 = arith.constant 0 : index
    %c0_18 = arith.constant 0 : index
    %9 = vector.load %arg11[%c0_17, %c0_18] : memref<64x1xf32, #tpu.memory_space<vmem>>, vector<64x1xf32>
    %c0_19 = arith.constant 0 : index
    %c0_20 = arith.constant 0 : index
    %10 = vector.load %arg12[%c0_19, %c0_20] : memref<64x1xf32, #tpu.memory_space<vmem>>, vector<64x1xf32>
    %c0_21 = arith.constant 0 : index
    %c0_22 = arith.constant 0 : index
    %c0_23 = arith.constant 0 : index
    %11 = vector.load %arg1[%c0_21, %c0_22, %c0_23] : memref<1x64x16xf32, #tpu.memory_space<vmem>>, vector<1x64x16xf32>
    %12 = vector.shape_cast %11 : vector<1x64x16xf32> to vector<64x16xf32>
    %13 = arith.truncf %12 : vector<64x16xf32> to vector<64x16xbf16>
    %cst = arith.constant dense<0.000000e+00> : vector<192x16xf32>
    %14 = tpu.matmul %0, %13, %cst {dimension_numbers = #tpu.dot_dimension_numbers<[1], [0], [0], [1], [0, 0, 1, 1], [], []>} : vector<192x64xbf16>, vector<64x16xbf16>, vector<192x16xf32> -> vector<192x16xf32>
    %15 = vector.extract_strided_slice %14 {offsets = [0, 0], sizes = [64, 16], strides = [1, 1]} : vector<192x16xf32> to vector<64x16xf32>
    %16 = vector.shape_cast %15 : vector<64x16xf32> to vector<8x8x16xf32>
    %17 = arith.truncf %16 : vector<8x8x16xf32> to vector<8x8x16xbf16>
    %18 = vector.extract_strided_slice %14 {offsets = [64, 0], sizes = [64, 16], strides = [1, 1]} : vector<192x16xf32> to vector<64x16xf32>
    %19 = vector.shape_cast %18 : vector<64x16xf32> to vector<8x8x16xf32>
    %20 = arith.truncf %19 : vector<8x8x16xf32> to vector<8x8x16xbf16>
    %21 = vector.extract_strided_slice %14 {offsets = [128, 0], sizes = [64, 16], strides = [1, 1]} : vector<192x16xf32> to vector<64x16xf32>
    %22 = vector.shape_cast %21 : vector<64x16xf32> to vector<8x8x16xf32>
    %23 = arith.truncf %22 : vector<8x8x16xf32> to vector<8x8x16xbf16>
    "tpu.trace_start"() <{level = 10 : i32, message = "hdq,hdk->hqk"}> : () -> ()
    %cst_24 = arith.constant dense<0.000000e+00> : vector<8x16x16xf32>
    %24 = tpu.matmul %17, %20, %cst_24 {dimension_numbers = #tpu.dot_dimension_numbers<[1], [1], [2], [2], [0, 0, 0, 2, 1, 2], [0], [0]>} : vector<8x8x16xbf16>, vector<8x8x16xbf16>, vector<8x16x16xf32> -> vector<8x16x16xf32>
    "tpu.trace_stop"() : () -> ()
    %cst_25 = arith.constant dense<0xFF800000> : vector<8x16xf32>
    %25 = vector.multi_reduction <maximumf>, %24, %cst_25 [2] : vector<8x16x16xf32> to vector<8x16xf32>
    %26 = vector.shape_cast %25 : vector<8x16xf32> to vector<8x16x1xf32>
    %27 = vector.broadcast %26 : vector<8x16x1xf32> to vector<8x16x16xf32>
    %28 = arith.subf %24, %27 : vector<8x16x16xf32>
    %29 = math.exp %28 : vector<8x16x16xf32>
    %cst_26 = arith.constant dense<0.000000e+00> : vector<8x16xf32>
    %30 = vector.multi_reduction <add>, %29, %cst_26 [2] : vector<8x16x16xf32> to vector<8x16xf32>
    %31 = vector.shape_cast %30 : vector<8x16xf32> to vector<8x16x1xf32>
    %32 = tpu.reciprocal %31 {approx = true} : vector<8x16x1xf32> -> vector<8x16x1xf32>
    %33 = vector.broadcast %32 : vector<8x16x1xf32> to vector<8x16x16xf32>
    %34 = arith.mulf %29, %33 : vector<8x16x16xf32>
    %35 = arith.truncf %34 : vector<8x16x16xf32> to vector<8x16x16xbf16>
    "tpu.trace_start"() <{level = 10 : i32, message = "hdk,hqk->hdq"}> : () -> ()
    %cst_27 = arith.constant dense<0.000000e+00> : vector<8x8x16xf32>
    %36 = tpu.matmul %23, %35, %cst_27 {dimension_numbers = #tpu.dot_dimension_numbers<[2], [2], [1], [1], [0, 0, 0, 1, 1, 1], [0], [0]>} : vector<8x8x16xbf16>, vector<8x16x16xbf16>, vector<8x8x16xf32> -> vector<8x8x16xf32>
    "tpu.trace_stop"() : () -> ()
    %37 = vector.shape_cast %36 : vector<8x8x16xf32> to vector<64x16xf32>
    %38 = arith.truncf %37 : vector<64x16xf32> to vector<64x16xbf16>
    %cst_28 = arith.constant dense<0.000000e+00> : vector<64x16xf32>
    %39 = tpu.matmul %1, %38, %cst_28 {dimension_numbers = #tpu.dot_dimension_numbers<[1], [0], [0], [1], [0, 0, 1, 1], [], []>} : vector<64x64xbf16>, vector<64x16xbf16>, vector<64x16xf32> -> vector<64x16xf32>
    %40 = vector.broadcast %4 : vector<64x1xf32> to vector<64x16xf32>
    %41 = arith.addf %39, %40 : vector<64x16xf32>
    %42 = arith.addf %12, %41 : vector<64x16xf32>
    %cst_29 = arith.constant dense<0.000000e+00> : vector<16xf32>
    %43 = vector.multi_reduction <add>, %42, %cst_29 [0] : vector<64x16xf32> to vector<16xf32>
    %44 = vector.shape_cast %43 : vector<16xf32> to vector<1x16xf32>
    %cst_30 = arith.constant 6.400000e+01 : f32
    %45 = vector.broadcast %cst_30 : f32 to vector<1x16xf32>
    %46 = arith.divf %44, %45 : vector<1x16xf32>
    %47 = vector.broadcast %46 : vector<1x16xf32> to vector<64x16xf32>
    %48 = arith.subf %42, %47 : vector<64x16xf32>
    %49 = arith.mulf %48, %48 : vector<64x16xf32>
    %cst_31 = arith.constant dense<0.000000e+00> : vector<16xf32>
    %50 = vector.multi_reduction <add>, %49, %cst_31 [0] : vector<64x16xf32> to vector<16xf32>
    %51 = vector.shape_cast %50 : vector<16xf32> to vector<1x16xf32>
    %cst_32 = arith.constant 6.400000e+01 : f32
    %52 = vector.broadcast %cst_32 : f32 to vector<1x16xf32>
    %53 = arith.divf %51, %52 : vector<1x16xf32>
    %54 = vector.broadcast %46 : vector<1x16xf32> to vector<64x16xf32>
    %55 = arith.subf %42, %54 : vector<64x16xf32>
    %cst_33 = arith.constant 9.99999974E-6 : f32
    %56 = vector.broadcast %cst_33 : f32 to vector<1x16xf32>
    %57 = arith.addf %53, %56 : vector<1x16xf32>
    %58 = math.rsqrt %57 : vector<1x16xf32>
    %59 = vector.broadcast %58 : vector<1x16xf32> to vector<64x16xf32>
    %60 = arith.mulf %55, %59 : vector<64x16xf32>
    %61 = vector.broadcast %7 : vector<64x1xf32> to vector<64x16xf32>
    %62 = arith.mulf %60, %61 : vector<64x16xf32>
    %63 = vector.broadcast %8 : vector<64x1xf32> to vector<64x16xf32>
    %64 = arith.addf %62, %63 : vector<64x16xf32>
    %65 = arith.truncf %64 : vector<64x16xf32> to vector<64x16xbf16>
    %cst_34 = arith.constant dense<0.000000e+00> : vector<256x16xf32>
    %66 = tpu.matmul %2, %65, %cst_34 {dimension_numbers = #tpu.dot_dimension_numbers<[1], [0], [0], [1], [0, 0, 1, 1], [], []>} : vector<256x64xbf16>, vector<64x16xbf16>, vector<256x16xf32> -> vector<256x16xf32>
    %67 = vector.broadcast %5 : vector<256x1xf32> to vector<256x16xf32>
    %68 = arith.addf %66, %67 : vector<256x16xf32>
    %cst_35 = arith.constant 5.000000e-01 : f32
    %69 = vector.broadcast %cst_35 : f32 to vector<256x16xf32>
    %70 = arith.mulf %69, %68 : vector<256x16xf32>
    %cst_36 = arith.constant 2.000000e+00 : f32
    %71 = math.sqrt %cst_36 : f32
    %cst_37 = arith.constant 1.000000e+00 : f32
    %72 = arith.divf %cst_37, %71 : f32
    %73 = vector.broadcast %72 : f32 to vector<256x16xf32>
    %74 = arith.mulf %68, %73 : vector<256x16xf32>
    %75 = math.erf %74 : vector<256x16xf32>
    %cst_38 = arith.constant 1.000000e+00 : f32
    %76 = vector.broadcast %cst_38 : f32 to vector<256x16xf32>
    %77 = arith.addf %76, %75 : vector<256x16xf32>
    %78 = arith.mulf %70, %77 : vector<256x16xf32>
    %79 = arith.truncf %78 : vector<256x16xf32> to vector<256x16xbf16>
    %cst_39 = arith.constant dense<0.000000e+00> : vector<64x16xf32>
    %80 = tpu.matmul %3, %79, %cst_39 {dimension_numbers = #tpu.dot_dimension_numbers<[1], [0], [0], [1], [0, 0, 1, 1], [], []>} : vector<64x256xbf16>, vector<256x16xbf16>, vector<64x16xf32> -> vector<64x16xf32>
    %81 = vector.broadcast %6 : vector<64x1xf32> to vector<64x16xf32>
    %82 = arith.addf %80, %81 : vector<64x16xf32>
    %83 = arith.addf %64, %82 : vector<64x16xf32>
    %cst_40 = arith.constant dense<0.000000e+00> : vector<16xf32>
    %84 = vector.multi_reduction <add>, %83, %cst_40 [0] : vector<64x16xf32> to vector<16xf32>
    %85 = vector.shape_cast %84 : vector<16xf32> to vector<1x16xf32>
    %cst_41 = arith.constant 6.400000e+01 : f32
    %86 = vector.broadcast %cst_41 : f32 to vector<1x16xf32>
    %87 = arith.divf %85, %86 : vector<1x16xf32>
    %88 = vector.broadcast %87 : vector<1x16xf32> to vector<64x16xf32>
    %89 = arith.subf %83, %88 : vector<64x16xf32>
    %90 = arith.mulf %89, %89 : vector<64x16xf32>
    %cst_42 = arith.constant dense<0.000000e+00> : vector<16xf32>
    %91 = vector.multi_reduction <add>, %90, %cst_42 [0] : vector<64x16xf32> to vector<16xf32>
    %92 = vector.shape_cast %91 : vector<16xf32> to vector<1x16xf32>
    %cst_43 = arith.constant 6.400000e+01 : f32
    %93 = vector.broadcast %cst_43 : f32 to vector<1x16xf32>
    %94 = arith.divf %92, %93 : vector<1x16xf32>
    %95 = vector.broadcast %87 : vector<1x16xf32> to vector<64x16xf32>
    %96 = arith.subf %83, %95 : vector<64x16xf32>
    %cst_44 = arith.constant 9.99999974E-6 : f32
    %97 = vector.broadcast %cst_44 : f32 to vector<1x16xf32>
    %98 = arith.addf %94, %97 : vector<1x16xf32>
    %99 = math.rsqrt %98 : vector<1x16xf32>
    %100 = vector.broadcast %99 : vector<1x16xf32> to vector<64x16xf32>
    %101 = arith.mulf %96, %100 : vector<64x16xf32>
    %102 = vector.broadcast %9 : vector<64x1xf32> to vector<64x16xf32>
    %103 = arith.mulf %101, %102 : vector<64x16xf32>
    %104 = vector.broadcast %10 : vector<64x1xf32> to vector<64x16xf32>
    %105 = arith.addf %103, %104 : vector<64x16xf32>
    %c0_45 = arith.constant 0 : index
    %c0_46 = arith.constant 0 : index
    %c0_47 = arith.constant 0 : index
    %106 = vector.load %arg13[%c0_45, %c0_46, %c0_47] : memref<1x64x16xf32, #tpu.memory_space<vmem>>, vector<1x64x16xf32>
    %107 = vector.shape_cast %106 : vector<1x64x16xf32> to vector<64x16xf32>
    %108 = vector.shape_cast %105 : vector<64x16xf32> to vector<1x64x16xf32>
    tpu.vector_store %arg13[%c0_45, %c0_46, %c0_47], %108 {strides = array<i32>} : memref<1x64x16xf32, #tpu.memory_space<vmem>>, vector<1x64x16xf32>,
    return
  }
  func.func @transform_0(%arg0: i32) -> (i32, i32, i32) {
    %c0_i32 = arith.constant 0 : i32
    %c0_i32_0 = arith.constant 0 : i32
    %c0_i32_1 = arith.constant 0 : i32
    return %arg0, %c0_i32, %c0_i32_0 : i32, i32, i32
  }
  func.func @transform_1(%arg0: i32) -> (i32, i32) {
    %c0_i32 = arith.constant 0 : i32
    %c0_i32_0 = arith.constant 0 : i32
    %c0_i32_1 = arith.constant 0 : i32
    return %c0_i32, %c0_i32_0 : i32, i32
  }
  func.func @transform_2(%arg0: i32) -> (i32, i32) {
    %c0_i32 = arith.constant 0 : i32
    %c0_i32_0 = arith.constant 0 : i32
    %c0_i32_1 = arith.constant 0 : i32
    return %c0_i32, %c0_i32_0 : i32, i32
  }
  func.func @transform_3(%arg0: i32) -> (i32, i32) {
    %c0_i32 = arith.constant 0 : i32
    %c0_i32_0 = arith.constant 0 : i32
    %c0_i32_1 = arith.constant 0 : i32
    return %c0_i32, %c0_i32_0 : i32, i32
  }
  func.func @transform_4(%arg0: i32) -> (i32, i32) {
    %c0_i32 = arith.constant 0 : i32
    %c0_i32_0 = arith.constant 0 : i32
    %c0_i32_1 = arith.constant 0 : i32
    return %c0_i32, %c0_i32_0 : i32, i32
  }
  func.func @transform_5(%arg0: i32) -> (i32, i32) {
    %c0_i32 = arith.constant 0 : i32
    %c0_i32_0 = arith.constant 0 : i32
    %c0_i32_1 = arith.constant 0 : i32
    return %c0_i32, %c0_i32_0 : i32, i32
  }
  func.func @transform_6(%arg0: i32) -> (i32, i32) {
    %c0_i32 = arith.constant 0 : i32
    %c0_i32_0 = arith.constant 0 : i32
    %c0_i32_1 = arith.constant 0 : i32
    return %c0_i32, %c0_i32_0 : i32, i32
  }
  func.func @transform_7(%arg0: i32) -> (i32, i32) {
    %c0_i32 = arith.constant 0 : i32
    %c0_i32_0 = arith.constant 0 : i32
    %c0_i32_1 = arith.constant 0 : i32
    return %c0_i32, %c0_i32_0 : i32, i32
  }
  func.func @transform_8(%arg0: i32) -> (i32, i32) {
    %c0_i32 = arith.constant 0 : i32
    %c0_i32_0 = arith.constant 0 : i32
    %c0_i32_1 = arith.constant 0 : i32
    return %c0_i32, %c0_i32_0 : i32, i32
  }
  func.func @transform_9(%arg0: i32) -> (i32, i32) {
    %c0_i32 = arith.constant 0 : i32
    %c0_i32_0 = arith.constant 0 : i32
    %c0_i32_1 = arith.constant 0 : i32
    return %c0_i32, %c0_i32_0 : i32, i32
  }
  func.func @transform_10(%arg0: i32) -> (i32, i32) {
    %c0_i32 = arith.constant 0 : i32
    %c0_i32_0 = arith.constant 0 : i32
    %c0_i32_1 = arith.constant 0 : i32
    return %c0_i32, %c0_i32_0 : i32, i32
  }
  func.func @transform_11(%arg0: i32) -> (i32, i32) {
    %c0_i32 = arith.constant 0 : i32
    %c0_i32_0 = arith.constant 0 : i32
    %c0_i32_1 = arith.constant 0 : i32
    return %c0_i32, %c0_i32_0 : i32, i32
  }
  func.func @transform_12(%arg0: i32) -> (i32, i32, i32) {
    %c0_i32 = arith.constant 0 : i32
    %c0_i32_0 = arith.constant 0 : i32
    %c0_i32_1 = arith.constant 0 : i32
    return %arg0, %c0_i32, %c0_i32_0 : i32, i32, i32
  }
}

</mosaic_0001>

<llo_original>
// kernel: tpu_custom_call.1
$region0: #{tpu_custom_call.1}
  #allocation0 [shape = 'u32[]', space=smem, size = 0x4, offset = 0x4, fixed_abs, tag = 'smem constant byte address 0x4 - core index']
  #allocation1 [shape = 'u32[144,128]{1,0:T(1,128)}', space=vmem, size = 0x12000, scoped, tag = 'internal scratch']
  %s0 = inlined_call_operand.vmem [shape: f32[2,64,16], index: 0, kind: input, shape index: {}]
  %s1 = inlined_call_operand.vmem [shape: bf16[192,64], index: 1, kind: input, shape index: {}]
  %s2 = inlined_call_operand.vmem [shape: bf16[64,64], index: 2, kind: input, shape index: {}]
  %s3 = inlined_call_operand.vmem [shape: f32[64,1], index: 3, kind: input, shape index: {}]
  %s4 = inlined_call_operand.vmem [shape: f32[64,1], index: 4, kind: input, shape index: {}]
  %s5 = inlined_call_operand.vmem [shape: f32[64,1], index: 5, kind: input, shape index: {}]
  %s6 = inlined_call_operand.vmem [shape: bf16[256,64], index: 6, kind: input, shape index: {}]
  %s7 = inlined_call_operand.vmem [shape: f32[256,1], index: 7, kind: input, shape index: {}]
  %s8 = inlined_call_operand.vmem [shape: bf16[64,256], index: 8, kind: input, shape index: {}]
  %s9 = inlined_call_operand.vmem [shape: f32[64,1], index: 9, kind: input, shape index: {}]
  %s10 = inlined_call_operand.vmem [shape: f32[64,1], index: 10, kind: input, shape index: {}]
  %s11 = inlined_call_operand.vmem [shape: f32[64,1], index: 11, kind: input, shape index: {}]
  %s12 = inlined_call_operand.vmem [shape: f32[2,64,16], index: 12, kind: output, shape index: {}]
  %s13 = sld [smem:[#allocation0]]
  $region81: #{tpu_custom_call.1} parent=0
    _
  %s15 = ssub.s32 1, %s13
  %s16 = scalar_select 0, %s15, %s13
  loop: start=0, step=1, limit=4
  $region2: #{tpu_custom_call.1} parent=0 // loop_pre_header
    _
  $region3: #{tpu_custom_call.1} parent=0 // loop_header
    %s18 = sphi 0, %s22
    %p19 = scmp.ge.s32.totalorder %s18, 4
    %s28 = sphi 0, %s30
    %s31 = sphi 0, %s28
    %s32 = sphi 0, %s31
    %s48 = sphi 0, %s32
    %s52 = sphi 0, %s52
    %s54 = sphi 0, %s52
    %s55 = sphi 0, %s54
    %s69 = sphi 0, %s55
    %s73 = sphi 0, %s73
    %s75 = sphi 0, %s73
    %s76 = sphi 0, %s75
    %s90 = sphi 0, %s76
    %s94 = sphi 0, %s94
    %s96 = sphi 0, %s94
    %s97 = sphi 0, %s96
    %s111 = sphi 0, %s97
    %s115 = sphi 0, %s115
    %s117 = sphi 0, %s115
    %s118 = sphi 0, %s117
    %s132 = sphi 0, %s118
    %s136 = sphi 0, %s136
    %s138 = sphi 0, %s136
    %s139 = sphi 0, %s138
    %s153 = sphi 0, %s139
    %s157 = sphi 0, %s157
    %s159 = sphi 0, %s157
    %s160 = sphi 0, %s159
    %s174 = sphi 0, %s160
    %s178 = sphi 0, %s178
    %s180 = sphi 0, %s178
    %s181 = sphi 0, %s180
    %s195 = sphi 0, %s181
    %s199 = sphi 0, %s199
    %s201 = sphi 0, %s199
    %s202 = sphi 0, %s201
    %s216 = sphi 0, %s202
    %s220 = sphi 0, %s220
    %s222 = sphi 0, %s220
    %s223 = sphi 0, %s222
    %s237 = sphi 0, %s223
    %s241 = sphi 0, %s241
    %s243 = sphi 0, %s241
    %s244 = sphi 0, %s243
    %s258 = sphi 0, %s244
    %s262 = sphi 0, %s262
    %s264 = sphi 0, %s262
    %s265 = sphi 0, %s264
    %s279 = sphi 0, %s265
    %s285 = sphi 0, %s287
    %s288 = sphi 0, %s285
    %s289 = sphi 0, %s288
    %s305 = sphi 0, %s289
  $region4: #{tpu_custom_call.1} parent=0 // loop_header_branch
    %21 = sbr.rel (%p19) target = $region8
  $region5: #{tpu_custom_call.1} parent=0 // loop_body
    %s23 = ssub.s32 %s18, 1
    %s24 = ssub.s32 %s18, 2
    %s25 = sadd.s32 %s18, 1
    %s26 = ssub.s32 %s18, %s25
    %p27 = scmp.eq.s32.totalorder %s26, 0
    %s29 = sadd.s32 %s28, 1
    %s30 = scalar_select %p27, %s28, %s29
    %p33 = pneg %p27
    %p34 = scmp.eq.s32.totalorder %s18, 1
    %p35 = por %p33, %p34
    %p36 = scmp.ne.s32.totalorder %s28, %s31
    %p37 = scmp.eq.s32.totalorder %s18, 0
    %p38 = por %p36, %p37
    %p39 = scmp.ne.s32.totalorder %s28, %s31
    %p40 = scmp.eq.s32.totalorder %s23, 1
    %p41 = por %p39, %p40
    %p42 = scmp.ne.s32.totalorder %s31, %s32
    %p43 = scmp.eq.s32.totalorder %s23, 0
    %p44 = por %p42, %p43
    %p45 = scmp.ne.s32.totalorder %s31, %s32
    %p46 = scmp.eq.s32.totalorder %s24, 1
    %p47 = por %p45, %p46
    %p49 = scmp.ne.s32.totalorder %s32, %s48
    %p50 = scmp.eq.s32.totalorder %s24, 0
    %p51 = por %p49, %p50
    %s53 = sadd.s32 %s52, 1
    %p56 = scmp.eq.s32.totalorder %s18, 1
    %p57 = scmp.ne.s32.totalorder %s52, %s54
    %p58 = scmp.eq.s32.totalorder %s18, 0
    %p59 = por %p57, %p58
    %p60 = scmp.ne.s32.totalorder %s52, %s54
    %p61 = scmp.eq.s32.totalorder %s23, 1
    %p62 = por %p60, %p61
    %p63 = scmp.ne.s32.totalorder %s54, %s55
    %p64 = scmp.eq.s32.totalorder %s23, 0
    %p65 = por %p63, %p64
    %p66 = scmp.ne.s32.totalorder %s54, %s55
    %p67 = scmp.eq.s32.totalorder %s24, 1
    %p68 = por %p66, %p67
    %p70 = scmp.ne.s32.totalorder %s55, %s69
    %p71 = scmp.eq.s32.totalorder %s24, 0
    %p72 = por %p70, %p71
    %s74 = sadd.s32 %s73, 1
    %p77 = scmp.eq.s32.totalorder %s18, 1
    %p78 = scmp.ne.s32.totalorder %s73, %s75
    %p79 = scmp.eq.s32.totalorder %s18, 0
    %p80 = por %p78, %p79
    %p81 = scmp.ne.s32.totalorder %s73, %s75
    %p82 = scmp.eq.s32.totalorder %s23, 1
    %p83 = por %p81, %p82
    %p84 = scmp.ne.s32.totalorder %s75, %s76
    %p85 = scmp.eq.s32.totalorder %s23, 0
    %p86 = por %p84, %p85
    %p87 = scmp.ne.s32.totalorder %s75, %s76
    %p88 = scmp.eq.s32.totalorder %s24, 1
    %p89 = por %p87, %p88
    %p91 = scmp.ne.s32.totalorder %s76, %s90
    %p92 = scmp.eq.s32.totalorder %s24, 0
    %p93 = por %p91, %p92
    %s95 = sadd.s32 %s94, 1
    %p98 = scmp.eq.s32.totalorder %s18, 1
    %p99 = scmp.ne.s32.totalorder %s94, %s96
    %p100 = scmp.eq.s32.totalorder %s18, 0
    %p101 = por %p99, %p100
    %p102 = scmp.ne.s32.totalorder %s94, %s96
    %p103 = scmp.eq.s32.totalorder %s23, 1
    %p104 = por %p102, %p103
    %p105 = scmp.ne.s32.totalorder %s96, %s97
    %p106 = scmp.eq.s32.totalorder %s23, 0
    %p107 = por %p105, %p106
    %p108 = scmp.ne.s32.totalorder %s96, %s97
    %p109 = scmp.eq.s32.totalorder %s24, 1
    %p110 = por %p108, %p109
    %p112 = scmp.ne.s32.totalorder %s97, %s111
    %p113 = scmp.eq.s32.totalorder %s24, 0
    %p114 = por %p112, %p113
    %s116 = sadd.s32 %s115, 1
    %p119 = scmp.eq.s32.totalorder %s18, 1
    %p120 = scmp.ne.s32.totalorder %s115, %s117
    %p121 = scmp.eq.s32.totalorder %s18, 0
    %p122 = por %p120, %p121
    %p123 = scmp.ne.s32.totalorder %s115, %s117
    %p124 = scmp.eq.s32.totalorder %s23, 1
    %p125 = por %p123, %p124
    %p126 = scmp.ne.s32.totalorder %s117, %s118
    %p127 = scmp.eq.s32.totalorder %s23, 0
    %p128 = por %p126, %p127
    %p129 = scmp.ne.s32.totalorder %s117, %s118
    %p130 = scmp.eq.s32.totalorder %s24, 1
    %p131 = por %p129, %p130
    %p133 = scmp.ne.s32.totalorder %s118, %s132
    %p134 = scmp.eq.s32.totalorder %s24, 0
    %p135 = por %p133, %p134
    %s137 = sadd.s32 %s136, 1
    %p140 = scmp.eq.s32.totalorder %s18, 1
    %p141 = scmp.ne.s32.totalorder %s136, %s138
    %p142 = scmp.eq.s32.totalorder %s18, 0
    %p143 = por %p141, %p142
    %p144 = scmp.ne.s32.totalorder %s136, %s138
    %p145 = scmp.eq.s32.totalorder %s23, 1
    %p146 = por %p144, %p145
    %p147 = scmp.ne.s32.totalorder %s138, %s139
    %p148 = scmp.eq.s32.totalorder %s23, 0
    %p149 = por %p147, %p148
    %p150 = scmp.ne.s32.totalorder %s138, %s139
    %p151 = scmp.eq.s32.totalorder %s24, 1
    %p152 = por %p150, %p151
    %p154 = scmp.ne.s32.totalorder %s139, %s153
    %p155 = scmp.eq.s32.totalorder %s24, 0
    %p156 = por %p154, %p155
    %s158 = sadd.s32 %s157, 1
    %p161 = scmp.eq.s32.totalorder %s18, 1
    %p162 = scmp.ne.s32.totalorder %s157, %s159
    %p163 = scmp.eq.s32.totalorder %s18, 0
    %p164 = por %p162, %p163
    %p165 = scmp.ne.s32.totalorder %s157, %s159
    %p166 = scmp.eq.s32.totalorder %s23, 1
    %p167 = por %p165, %p166
    %p168 = scmp.ne.s32.totalorder %s159, %s160
    %p169 = scmp.eq.s32.totalorder %s23, 0
    %p170 = por %p168, %p169
    %p171 = scmp.ne.s32.totalorder %s159, %s160
    %p172 = scmp.eq.s32.totalorder %s24, 1
    %p173 = por %p171, %p172
    %p175 = scmp.ne.s32.totalorder %s160, %s174
    %p176 = scmp.eq.s32.totalorder %s24, 0
    %p177 = por %p175, %p176
    %s179 = sadd.s32 %s178, 1
    %p182 = scmp.eq.s32.totalorder %s18, 1
    %p183 = scmp.ne.s32.totalorder %s178, %s180
    %p184 = scmp.eq.s32.totalorder %s18, 0
    %p185 = por %p183, %p184
    %p186 = scmp.ne.s32.totalorder %s178, %s180
    %p187 = scmp.eq.s32.totalorder %s23, 1
    %p188 = por %p186, %p187
    %p189 = scmp.ne.s32.totalorder %s180, %s181
    %p190 = scmp.eq.s32.totalorder %s23, 0
    %p191 = por %p189, %p190
    %p192 = scmp.ne.s32.totalorder %s180, %s181
    %p193 = scmp.eq.s32.totalorder %s24, 1
    %p194 = por %p192, %p193
    %p196 = scmp.ne.s32.totalorder %s181, %s195
    %p197 = scmp.eq.s32.totalorder %s24, 0
    %p198 = por %p196, %p197
    %s200 = sadd.s32 %s199, 1
    %p203 = scmp.eq.s32.totalorder %s18, 1
    %p204 = scmp.ne.s32.totalorder %s199, %s201
    %p205 = scmp.eq.s32.totalorder %s18, 0
    %p206 = por %p204, %p205
    %p207 = scmp.ne.s32.totalorder %s199, %s201
    %p208 = scmp.eq.s32.totalorder %s23, 1
    %p209 = por %p207, %p208
    %p210 = scmp.ne.s32.totalorder %s201, %s202
    %p211 = scmp.eq.s32.totalorder %s23, 0
    %p212 = por %p210, %p211
    %p213 = scmp.ne.s32.totalorder %s201, %s202
    %p214 = scmp.eq.s32.totalorder %s24, 1
    %p215 = por %p213, %p214
    %p217 = scmp.ne.s32.totalorder %s202, %s216
    %p218 = scmp.eq.s32.totalorder %s24, 0
    %p219 = por %p217, %p218
    %s221 = sadd.s32 %s220, 1
    %p224 = scmp.eq.s32.totalorder %s18, 1
    %p225 = scmp.ne.s32.totalorder %s220, %s222
    %p226 = scmp.eq.s32.totalorder %s18, 0
    %p227 = por %p225, %p226
    %p228 = scmp.ne.s32.totalorder %s220, %s222
    %p229 = scmp.eq.s32.totalorder %s23, 1
    %p230 = por %p228, %p229
    %p231 = scmp.ne.s32.totalorder %s222, %s223
    %p232 = scmp.eq.s32.totalorder %s23, 0
    %p233 = por %p231, %p232
    %p234 = scmp.ne.s32.totalorder %s222, %s223
    %p235 = scmp.eq.s32.totalorder %s24, 1
    %p236 = por %p234, %p235
    %p238 = scmp.ne.s32.totalorder %s223, %s237
    %p239 = scmp.eq.s32.totalorder %s24, 0
    %p240 = por %p238, %p239
    %s242 = sadd.s32 %s241, 1
    %p245 = scmp.eq.s32.totalorder %s18, 1
    %p246 = scmp.ne.s32.totalorder %s241, %s243
    %p247 = scmp.eq.s32.totalorder %s18, 0
    %p248 = por %p246, %p247
    %p249 = scmp.ne.s32.totalorder %s241, %s243
    %p250 = scmp.eq.s32.totalorder %s23, 1
    %p251 = por %p249, %p250
    %p252 = scmp.ne.s32.totalorder %s243, %s244
    %p253 = scmp.eq.s32.totalorder %s23, 0
    %p254 = por %p252, %p253
    %p255 = scmp.ne.s32.totalorder %s243, %s244
    %p256 = scmp.eq.s32.totalorder %s24, 1
    %p257 = por %p255, %p256
    %p259 = scmp.ne.s32.totalorder %s244, %s258
    %p260 = scmp.eq.s32.totalorder %s24, 0
    %p261 = por %p259, %p260
    %s263 = sadd.s32 %s262, 1
    %p266 = scmp.eq.s32.totalorder %s18, 1
    %p267 = scmp.ne.s32.totalorder %s262, %s264
    %p268 = scmp.eq.s32.totalorder %s18, 0
    %p269 = por %p267, %p268
    %p270 = scmp.ne.s32.totalorder %s262, %s264
    %p271 = scmp.eq.s32.totalorder %s23, 1
    %p272 = por %p270, %p271
    %p273 = scmp.ne.s32.totalorder %s264, %s265
    %p274 = scmp.eq.s32.totalorder %s23, 0
    %p275 = por %p273, %p274
    %p276 = scmp.ne.s32.totalorder %s264, %s265
    %p277 = scmp.eq.s32.totalorder %s24, 1
    %p278 = por %p276, %p277
    %p280 = scmp.ne.s32.totalorder %s265, %s279
    %p281 = scmp.eq.s32.totalorder %s24, 0
    %p282 = por %p280, %p281
    %s283 = ssub.s32 %s18, %s25
    %p284 = scmp.eq.s32.totalorder %s283, 0
    %s286 = sadd.s32 %s285, 1
    %s287 = scalar_select %p284, %s285, %s286
    %p290 = pneg %p284
    %p291 = scmp.eq.s32.totalorder %s18, 1
    %p292 = por %p290, %p291
    %p293 = scmp.ne.s32.totalorder %s285, %s288
    %p294 = scmp.eq.s32.totalorder %s18, 0
    %p295 = por %p293, %p294
    %p296 = scmp.ne.s32.totalorder %s285, %s288
    %p297 = scmp.eq.s32.totalorder %s23, 1
    %p298 = por %p296, %p297
    %p299 = scmp.ne.s32.totalorder %s288, %s289
    %p300 = scmp.eq.s32.totalorder %s23, 0
    %p301 = por %p299, %p300
    %p302 = scmp.ne.s32.totalorder %s288, %s289
    %p303 = scmp.eq.s32.totalorder %s24, 1
    %p304 = por %p302, %p303
    %p306 = scmp.ne.s32.totalorder %s289, %s305
    %p307 = scmp.eq.s32.totalorder %s24, 0
    %p308 = por %p306, %p307
    %p309 = scmp.le.s32.totalorder 1, %s18
    %p310 = scmp.lt.s32.totalorder %s18, 3
    %p311 = pnand %p309, %p310
    %p312 = pneg %p311
    // Predicated region
    $region9: #{tpu_custom_call.1} parent=5 // pred_check
      _
    $region10: #{tpu_custom_call.1} parent=5 // pred_check_branch
      %314 = sbr.rel (%p311) target = $region12
    $region11: #{tpu_custom_call.1} parent=5 // pred_region
      %s315 = ssub.s32 %s18, 1
      // Predicated region
      $region13: #{tpu_custom_call.1} parent=11 // pred_check
        %p316 = pneg %p65
      $region14: #{tpu_custom_call.1} parent=11 // pred_check_branch
        %318 = sbr.rel (%p316) target = $region16
      $region15: #{tpu_custom_call.1} parent=11 // pred_region
        _
      $region16: #{tpu_custom_call.1} parent=11 // pred_fallthru
        _
      // Predicated region
      $region17: #{tpu_custom_call.1} parent=11 // pred_check
        %p319 = pneg %p86
      $region18: #{tpu_custom_call.1} parent=11 // pred_check_branch
        %321 = sbr.rel (%p319) target = $region20
      $region19: #{tpu_custom_call.1} parent=11 // pred_region
        _
      $region20: #{tpu_custom_call.1} parent=11 // pred_fallthru
        _
      // Predicated region
      $region21: #{tpu_custom_call.1} parent=11 // pred_check
        %p322 = pneg %p107
      $region22: #{tpu_custom_call.1} parent=11 // pred_check_branch
        %324 = sbr.rel (%p322) target = $region24
      $region23: #{tpu_custom_call.1} parent=11 // pred_region
        _
      $region24: #{tpu_custom_call.1} parent=11 // pred_fallthru
        _
      // Predicated region
      $region25: #{tpu_custom_call.1} parent=11 // pred_check
        %p325 = pneg %p128
      $region26: #{tpu_custom_call.1} parent=11 // pred_check_branch
        %327 = sbr.rel (%p325) target = $region28
      $region27: #{tpu_custom_call.1} parent=11 // pred_region
        _
      $region28: #{tpu_custom_call.1} parent=11 // pred_fallthru
        _
      // Predicated region
      $region29: #{tpu_custom_call.1} parent=11 // pred_check
        %p328 = pneg %p149
      $region30: #{tpu_custom_call.1} parent=11 // pred_check_branch
        %330 = sbr.rel (%p328) target = $region32
      $region31: #{tpu_custom_call.1} parent=11 // pred_region
        _
      $region32: #{tpu_custom_call.1} parent=11 // pred_fallthru
        _
      // Predicated region
      $region33: #{tpu_custom_call.1} parent=11 // pred_check
        %p331 = pneg %p170
      $region34: #{tpu_custom_call.1} parent=11 // pred_check_branch
        %333 = sbr.rel (%p331) target = $region36
      $region35: #{tpu_custom_call.1} parent=11 // pred_region
        _
      $region36: #{tpu_custom_call.1} parent=11 // pred_fallthru
        _
      // Predicated region
      $region37: #{tpu_custom_call.1} parent=11 // pred_check
        %p334 = pneg %p191
      $region38: #{tpu_custom_call.1} parent=11 // pred_check_branch
        %336 = sbr.rel (%p334) target = $region40
      $region39: #{tpu_custom_call.1} parent=11 // pred_region
        _
      $region40: #{tpu_custom_call.1} parent=11 // pred_fallthru
        _
      // Predicated region
      $region41: #{tpu_custom_call.1} parent=11 // pred_check
        %p337 = pneg %p212
      $region42: #{tpu_custom_call.1} parent=11 // pred_check_branch
        %339 = sbr.rel (%p337) target = $region44
      $region43: #{tpu_custom_call.1} parent=11 // pred_region
        _
      $region44: #{tpu_custom_call.1} parent=11 // pred_fallthru
        _
      // Predicated region
      $region45: #{tpu_custom_call.1} parent=11 // pred_check
        %p340 = pneg %p233
      $region46: #{tpu_custom_call.1} parent=11 // pred_check_branch
        %342 = sbr.rel (%p340) target = $region48
      $region47: #{tpu_custom_call.1} parent=11 // pred_region
        _
      $region48: #{tpu_custom_call.1} parent=11 // pred_fallthru
        _
      // Predicated region
      $region49: #{tpu_custom_call.1} parent=11 // pred_check
        %p343 = pneg %p254
      $region50: #{tpu_custom_call.1} parent=11 // pred_check_branch
        %345 = sbr.rel (%p343) target = $region52
      $region51: #{tpu_custom_call.1} parent=11 // pred_region
        _
      $region52: #{tpu_custom_call.1} parent=11 // pred_fallthru
        _
      // Predicated region
      $region53: #{tpu_custom_call.1} parent=11 // pred_check
        %p346 = pneg %p275
      $region54: #{tpu_custom_call.1} parent=11 // pred_check_branch
        %348 = sbr.rel (%p346) target = $region56
      $region55: #{tpu_custom_call.1} parent=11 // pred_region
        _
      $region56: #{tpu_custom_call.1} parent=11 // pred_fallthru
        _
    $region12: #{tpu_custom_call.1} parent=5 // pred_fallthru
      _
    %p349 = scmp.lt.s32.totalorder %s18, 2
    // Predicated region
    $region57: #{tpu_custom_call.1} parent=5 // pred_check
      %p350 = pneg %p349
    $region58: #{tpu_custom_call.1} parent=5 // pred_check_branch
      %352 = sbr.rel (%p350) target = $region60
    $region59: #{tpu_custom_call.1} parent=5 // pred_region
      // Predicated region
      $region61: #{tpu_custom_call.1} parent=59 // pred_check
        %p353 = pneg %p38
      $region62: #{tpu_custom_call.1} parent=59 // pred_check_branch
        %355 = sbr.rel (%p353) target = $region64
      $region63: #{tpu_custom_call.1} parent=59 // pred_region
        %p356 = scmp.lt.s32.totalorder %s18, 1
        %s357 = scalar_select %p356, %s18, 1
        %s358 = smul.addr %s357, 8
        %s359 = smul.addr %s358, 8
        %s360 = scalar_lea.vmem %s0, %s359
      $region64: #{tpu_custom_call.1} parent=59 // pred_fallthru
        _
    $region60: #{tpu_custom_call.1} parent=5 // pred_fallthru
      _
    %p361 = scmp.le.s32.totalorder 1, %s18
    %p362 = scmp.lt.s32.totalorder %s18, 3
    %p363 = pnand %p361, %p362
    %p364 = pneg %p363
    // Predicated region
    $region65: #{tpu_custom_call.1} parent=5 // pred_check
      _
    $region66: #{tpu_custom_call.1} parent=5 // pred_check_branch
      %366 = sbr.rel (%p363) target = $region68
    $region67: #{tpu_custom_call.1} parent=5 // pred_region
      %s367 = ssub.s32 %s18, 1
      %p368 = scmp.lt.s32.totalorder %s23, 1
      %s369 = scalar_select %p368, %s23, 1
      %s370 = smul.addr %s369, 8
      %s371 = smul.addr %s370, 8
      %s372 = scalar_lea.vmem %s0, %s371
      %p373 = pneg %p44
      %p374 = pneg %p41
      %p375 = pneg %p65
      %p376 = pneg %p62
      %p377 = pneg %p86
      %p378 = pneg %p83
      %p379 = pneg %p107
      %p380 = pneg %p104
      %p381 = pneg %p128
      %p382 = pneg %p125
      %p383 = pneg %p149
      %p384 = pneg %p146
      %p385 = pneg %p170
      %p386 = pneg %p167
      %p387 = pneg %p191
      %p388 = pneg %p188
      %p389 = pneg %p212
      %p390 = pneg %p209
      %p391 = pneg %p233
      %p392 = pneg %p230
      %p393 = pneg %p254
      %p394 = pneg %p251
      %p395 = pneg %p275
      %p396 = pneg %p272
      %p397 = pneg %p301
      %p398 = pneg %p298
      %p399 = scmp.lt.s32.totalorder %s23, 1
      %s400 = scalar_select %p399, %s23, 1
      %s401 = smul.addr %s400, 8
      %s402 = smul.addr %s401, 8
      %s403 = scalar_lea.vmem %s12, %s402
      %p404 = scmp.lt.s32.totalorder %s23, 1
      %s405 = scalar_select %p404, %s23, 1
      %s406 = smul.addr %s405, 8
      %s407 = smul.addr %s406, 8
      %s408 = scalar_lea.vmem %s0, %s407
      %p409 = scmp.lt.s32.totalorder %s23, 1
      %s410 = scalar_select %p409, %s23, 1
      %s411 = smul.addr %s410, 8
      %s412 = smul.addr %s411, 8
      %s413 = scalar_lea.vmem %s12, %s412
      %v415 = vld [vmem:[%s1] sm:$0xf]
      %v416 = vld [vmem:[%s1 + $0x4] sm:$0xf]
      %v417 = vld [vmem:[%s1 + $0x8] sm:$0xf]
      %v418 = vld [vmem:[%s1 + $0xc] sm:$0xf]
      %v419 = vld [vmem:[%s1 + $0x10] sm:$0xf]
      %v420 = vld [vmem:[%s1 + $0x14] sm:$0xf]
      %v421 = vld [vmem:[%s1 + $0x18] sm:$0xf]
      %v422 = vld [vmem:[%s1 + $0x1c] sm:$0xf]
      %v423 = vld [vmem:[%s1 + $0x20] sm:$0xf]
      %v424 = vld [vmem:[%s1 + $0x24] sm:$0xf]
      %v425 = vld [vmem:[%s1 + $0x28] sm:$0xf]
      %v426 = vld [vmem:[%s1 + $0x2c] sm:$0xf]
      %v427 = vld [vmem:[%s1 + $0x30] sm:$0xf]
      %v428 = vld [vmem:[%s1 + $0x34] sm:$0xf]
      %v429 = vld [vmem:[%s1 + $0x38] sm:$0xf]
      %v430 = vld [vmem:[%s1 + $0x3c] sm:$0xf]
      %v431 = vld [vmem:[%s1 + $0x40] sm:$0xf]
      %v432 = vld [vmem:[%s1 + $0x44] sm:$0xf]
      %v433 = vld [vmem:[%s1 + $0x48] sm:$0xf]
      %v434 = vld [vmem:[%s1 + $0x4c] sm:$0xf]
      %v435 = vld [vmem:[%s1 + $0x50] sm:$0xf]
      %v436 = vld [vmem:[%s1 + $0x54] sm:$0xf]
      %v437 = vld [vmem:[%s1 + $0x58] sm:$0xf]
      %v438 = vld [vmem:[%s1 + $0x5c] sm:$0xf]
      %v439 = vld [vmem:[%s2] sm:$0xf]
      %v440 = vld [vmem:[%s2 + $0x4] sm:$0xf]
      %v441 = vld [vmem:[%s2 + $0x8] sm:$0xf]
      %v442 = vld [vmem:[%s2 + $0xc] sm:$0xf]
      %v443 = vld [vmem:[%s2 + $0x10] sm:$0xf]
      %v444 = vld [vmem:[%s2 + $0x14] sm:$0xf]
      %v445 = vld [vmem:[%s2 + $0x18] sm:$0xf]
      %v446 = vld [vmem:[%s2 + $0x1c] sm:$0xf]
      %v447 = vld [vmem:[%s6] sm:$0xf]
      %v448 = vld [vmem:[%s6 + $0x4] sm:$0xf]
      %v449 = vld [vmem:[%s6 + $0x8] sm:$0xf]
      %v450 = vld [vmem:[%s6 + $0xc] sm:$0xf]
      %v451 = vld [vmem:[%s6 + $0x10] sm:$0xf]
      %v452 = vld [vmem:[%s6 + $0x14] sm:$0xf]
      %v453 = vld [vmem:[%s6 + $0x18] sm:$0xf]
      %v454 = vld [vmem:[%s6 + $0x1c] sm:$0xf]
      %v455 = vld [vmem:[%s6 + $0x20] sm:$0xf]
      %v456 = vld [vmem:[%s6 + $0x24] sm:$0xf]
      %v457 = vld [vmem:[%s6 + $0x28] sm:$0xf]
      %v458 = vld [vmem:[%s6 + $0x2c] sm:$0xf]
      %v459 = vld [vmem:[%s6 + $0x30] sm:$0xf]
      %v460 = vld [vmem:[%s6 + $0x34] sm:$0xf]
      %v461 = vld [vmem:[%s6 + $0x38] sm:$0xf]
      %v462 = vld [vmem:[%s6 + $0x3c] sm:$0xf]
      %v463 = vld [vmem:[%s6 + $0x40] sm:$0xf]
      %v464 = vld [vmem:[%s6 + $0x44] sm:$0xf]
      %v465 = vld [vmem:[%s6 + $0x48] sm:$0xf]
      %v466 = vld [vmem:[%s6 + $0x4c] sm:$0xf]
      %v467 = vld [vmem:[%s6 + $0x50] sm:$0xf]
      %v468 = vld [vmem:[%s6 + $0x54] sm:$0xf]
      %v469 = vld [vmem:[%s6 + $0x58] sm:$0xf]
      %v470 = vld [vmem:[%s6 + $0x5c] sm:$0xf]
      %v471 = vld [vmem:[%s6 + $0x60] sm:$0xf]
      %v472 = vld [vmem:[%s6 + $0x64] sm:$0xf]
      %v473 = vld [vmem:[%s6 + $0x68] sm:$0xf]
      %v474 = vld [vmem:[%s6 + $0x6c] sm:$0xf]
      %v475 = vld [vmem:[%s6 + $0x70] sm:$0xf]
      %v476 = vld [vmem:[%s6 + $0x74] sm:$0xf]
      %v477 = vld [vmem:[%s6 + $0x78] sm:$0xf]
      %v478 = vld [vmem:[%s6 + $0x7c] sm:$0xf]
      %v479 = vld [vmem:[%s8] sm:$0xff]
      %v480 = vld [vmem:[%s8 + $0x8] sm:$0xff]
      %v481 = vld [vmem:[%s8 + $0x10] sm:$0xff]
      %v482 = vld [vmem:[%s8 + $0x18] sm:$0xff]
      %v483 = vld [vmem:[%s8 + $0x20] sm:$0xff]
      %v484 = vld [vmem:[%s8 + $0x28] sm:$0xff]
      %v485 = vld [vmem:[%s8 + $0x30] sm:$0xff]
      %v486 = vld [vmem:[%s8 + $0x38] sm:$0xff]
      %v487 = vld [vmem:[%s3] sm:$0xff]
      %v488 = vld [vmem:[%s3 + $0x8] sm:$0xff]
      %v489 = vld [vmem:[%s3 + $0x10] sm:$0xff]
      %v490 = vld [vmem:[%s3 + $0x18] sm:$0xff]
      %v491 = vld [vmem:[%s3 + $0x20] sm:$0xff]
      %v492 = vld [vmem:[%s3 + $0x28] sm:$0xff]
      %v493 = vld [vmem:[%s3 + $0x30] sm:$0xff]
      %v494 = vld [vmem:[%s3 + $0x38] sm:$0xff]
      %v495 = vld [vmem:[%s7] sm:$0xff]
      %v496 = vld [vmem:[%s7 + $0x8] sm:$0xff]
      %v497 = vld [vmem:[%s7 + $0x10] sm:$0xff]
      %v498 = vld [vmem:[%s7 + $0x18] sm:$0xff]
      %v499 = vld [vmem:[%s7 + $0x20] sm:$0xff]
      %v500 = vld [vmem:[%s7 + $0x28] sm:$0xff]
      %v501 = vld [vmem:[%s7 + $0x30] sm:$0xff]
      %v502 = vld [vmem:[%s7 + $0x38] sm:$0xff]
      %v503 = vld [vmem:[%s7 + $0x40] sm:$0xff]
      %v504 = vld [vmem:[%s7 + $0x48] sm:$0xff]
      %v505 = vld [vmem:[%s7 + $0x50] sm:$0xff]
      %v506 = vld [vmem:[%s7 + $0x58] sm:$0xff]
      %v507 = vld [vmem:[%s7 + $0x60] sm:$0xff]
      %v508 = vld [vmem:[%s7 + $0x68] sm:$0xff]
      %v509 = vld [vmem:[%s7 + $0x70] sm:$0xff]
      %v510 = vld [vmem:[%s7 + $0x78] sm:$0xff]
      %v511 = vld [vmem:[%s7 + $0x80] sm:$0xff]
      %v512 = vld [vmem:[%s7 + $0x88] sm:$0xff]
      %v513 = vld [vmem:[%s7 + $0x90] sm:$0xff]
      %v514 = vld [vmem:[%s7 + $0x98] sm:$0xff]
      %v515 = vld [vmem:[%s7 + $0xa0] sm:$0xff]
      %v516 = vld [vmem:[%s7 + $0xa8] sm:$0xff]
      %v517 = vld [vmem:[%s7 + $0xb0] sm:$0xff]
      %v518 = vld [vmem:[%s7 + $0xb8] sm:$0xff]
      %v519 = vld [vmem:[%s7 + $0xc0] sm:$0xff]
      %v520 = vld [vmem:[%s7 + $0xc8] sm:$0xff]
      %v521 = vld [vmem:[%s7 + $0xd0] sm:$0xff]
      %v522 = vld [vmem:[%s7 + $0xd8] sm:$0xff]
      %v523 = vld [vmem:[%s7 + $0xe0] sm:$0xff]
      %v524 = vld [vmem:[%s7 + $0xe8] sm:$0xff]
      %v525 = vld [vmem:[%s7 + $0xf0] sm:$0xff]
      %v526 = vld [vmem:[%s7 + $0xf8] sm:$0xff]
      %v527 = vld [vmem:[%s9] sm:$0xff]
      %v528 = vld [vmem:[%s9 + $0x8] sm:$0xff]
      %v529 = vld [vmem:[%s9 + $0x10] sm:$0xff]
      %v530 = vld [vmem:[%s9 + $0x18] sm:$0xff]
      %v531 = vld [vmem:[%s9 + $0x20] sm:$0xff]
      %v532 = vld [vmem:[%s9 + $0x28] sm:$0xff]
      %v533 = vld [vmem:[%s9 + $0x30] sm:$0xff]
      %v534 = vld [vmem:[%s9 + $0x38] sm:$0xff]
      %v535 = vld [vmem:[%s4] sm:$0xff]
      %v536 = vld [vmem:[%s4 + $0x8] sm:$0xff]
      %v537 = vld [vmem:[%s4 + $0x10] sm:$0xff]
      %v538 = vld [vmem:[%s4 + $0x18] sm:$0xff]
      %v539 = vld [vmem:[%s4 + $0x20] sm:$0xff]
      %v540 = vld [vmem:[%s4 + $0x28] sm:$0xff]
      %v541 = vld [vmem:[%s4 + $0x30] sm:$0xff]
      %v542 = vld [vmem:[%s4 + $0x38] sm:$0xff]
      %v543 = vld [vmem:[%s5] sm:$0xff]
      %v544 = vld [vmem:[%s5 + $0x8] sm:$0xff]
      %v545 = vld [vmem:[%s5 + $0x10] sm:$0xff]
      %v546 = vld [vmem:[%s5 + $0x18] sm:$0xff]
      %v547 = vld [vmem:[%s5 + $0x20] sm:$0xff]
      %v548 = vld [vmem:[%s5 + $0x28] sm:$0xff]
      %v549 = vld [vmem:[%s5 + $0x30] sm:$0xff]
      %v550 = vld [vmem:[%s5 + $0x38] sm:$0xff]
      %v551 = vld [vmem:[%s10] sm:$0xff]
      %v552 = vld [vmem:[%s10 + $0x8] sm:$0xff]
      %v553 = vld [vmem:[%s10 + $0x10] sm:$0xff]
      %v554 = vld [vmem:[%s10 + $0x18] sm:$0xff]
      %v555 = vld [vmem:[%s10 + $0x20] sm:$0xff]
      %v556 = vld [vmem:[%s10 + $0x28] sm:$0xff]
      %v557 = vld [vmem:[%s10 + $0x30] sm:$0xff]
      %v558 = vld [vmem:[%s10 + $0x38] sm:$0xff]
      %v559 = vld [vmem:[%s11] sm:$0xff]
      %v560 = vld [vmem:[%s11 + $0x8] sm:$0xff]
      %v561 = vld [vmem:[%s11 + $0x10] sm:$0xff]
      %v562 = vld [vmem:[%s11 + $0x18] sm:$0xff]
      %v563 = vld [vmem:[%s11 + $0x20] sm:$0xff]
      %v564 = vld [vmem:[%s11 + $0x28] sm:$0xff]
      %v565 = vld [vmem:[%s11 + $0x30] sm:$0xff]
      %v566 = vld [vmem:[%s11 + $0x38] sm:$0xff]
      %v567 = vld [vmem:[%s408] sm:$0xff]
      %v568 = vld [vmem:[%s408 + $0x8] sm:$0xff]
      %v569 = vld [vmem:[%s408 + $0x10] sm:$0xff]
      %v570 = vld [vmem:[%s408 + $0x18] sm:$0xff]
      %v571 = vld [vmem:[%s408 + $0x20] sm:$0xff]
      %v572 = vld [vmem:[%s408 + $0x28] sm:$0xff]
      %v573 = vld [vmem:[%s408 + $0x30] sm:$0xff]
      %v574 = vld [vmem:[%s408 + $0x38] sm:$0xff]
      %v575 = vpack.c.bf16 %v568, %v567
      %v576 = vpack.c.bf16 %v570, %v569
      %v577 = vpack.c.bf16 %v572, %v571
      %v578 = vpack.c.bf16 %v574, %v573
      %v603 = vunpack.c.l.b16 %v415
      %v604 = vunpack.c.l.b16 %v416
      %v605 = vunpack.c.l.b16 %v417
      %v606 = vunpack.c.l.b16 %v418
      %v607 = vunpack.c.l.b16 %v419
      %v608 = vunpack.c.l.b16 %v420
      %v609 = vunpack.c.l.b16 %v421
      %v610 = vunpack.c.l.b16 %v422
      %v611 = vunpack.c.l.b16 %v423
      %v612 = vunpack.c.l.b16 %v424
      %v613 = vunpack.c.l.b16 %v425
      %v614 = vunpack.c.l.b16 %v426
      %v615 = vunpack.c.l.b16 %v427
      %v616 = vunpack.c.l.b16 %v428
      %v617 = vunpack.c.l.b16 %v429
      %v618 = vunpack.c.l.b16 %v430
      %v619 = vunpack.c.l.b16 %v431
      %v620 = vunpack.c.l.b16 %v432
      %v621 = vunpack.c.l.b16 %v433
      %v622 = vunpack.c.l.b16 %v434
      %v623 = vunpack.c.l.b16 %v435
      %v624 = vunpack.c.l.b16 %v436
      %v625 = vunpack.c.l.b16 %v437
      %v626 = vunpack.c.l.b16 %v438
      %v627 = vpack.c.b16 %v604, %v603
      %v628 = vpack.c.b16 %v606, %v605
      %v629 = vpack.c.b16 %v608, %v607
      %v630 = vpack.c.b16 %v610, %v609
      %v631 = vpack.c.b16 %v612, %v611
      %v632 = vpack.c.b16 %v614, %v613
      %v633 = vpack.c.b16 %v616, %v615
      %v634 = vpack.c.b16 %v618, %v617
      %v635 = vpack.c.b16 %v620, %v619
      %v636 = vpack.c.b16 %v622, %v621
      %v637 = vpack.c.b16 %v624, %v623
      %v638 = vpack.c.b16 %v626, %v625
      %vm639 = vcmask 523264
      %v641 = vsel %vm639, %v627, 0
      %v644 = vsel %vm639, %v628, 0
      %v647 = vsel %vm639, %v629, 0
      %v650 = vsel %vm639, %v630, 0
      %v653 = vsel %vm639, %v631, 0
      %v656 = vsel %vm639, %v632, 0
      %v659 = vsel %vm639, %v633, 0
      %v662 = vsel %vm639, %v634, 0
      %v665 = vsel %vm639, %v635, 0
      %v668 = vsel %vm639, %v636, 0
      %v671 = vsel %vm639, %v637, 0
      %v674 = vsel %vm639, %v638, 0
      %676 = vmatprep.subr.bf16.mxu0 0
      %677 = vmatpush1.bf16.msra.mxu0 0
      %678 = vmatprep.subr.bf16.mxu0 0
      %679 = vmatpush1.bf16.msra.mxu0 0
      %680 = vmatprep.subr.bf16.mxu0 0
      %681 = vmatpush1.bf16.msra.mxu0 0
      %682 = vmatprep.subr.bf16.mxu0 0
      %683 = vmatpush1.bf16.msra.mxu0 0
      %684 = vmatprep.subr.bf16.mxu0 0
      %685 = vmatpush1.bf16.msra.mxu0 %v578
      %686 = vmatprep.subr.bf16.mxu0 0
      %687 = vmatpush1.bf16.msra.mxu0 %v577
      %688 = vmatprep.subr.bf16.mxu0 0
      %689 = vmatpush1.bf16.msra.mxu0 %v576
      %690 = vmatprep.subr.bf16.mxu0 0
      %691 = vmatpush1.bf16.msra.mxu0 %v575
      %692 = vmatprep.subr.bf16.mxu0 0
      %693 = vmatpush2.bf16.msra.mxu0 0
      %694 = vmatprep.subr.bf16.mxu0 0
      %695 = vmatpush2.bf16.msra.mxu0 0
      %696 = vmatprep.subr.bf16.mxu0 0
      %697 = vmatpush2.bf16.msra.mxu0 0
      %698 = vmatprep.subr.bf16.mxu0 0
      %699 = vmatpush2.bf16.msra.mxu0 0
      %700 = vmatprep.subr.bf16.mxu0 0
      %701 = vmatpush2.bf16.msra.mxu0 0
      %702 = vmatprep.subr.bf16.mxu0 0
      %703 = vmatpush2.bf16.msra.mxu0 0
      %704 = vmatprep.subr.bf16.mxu0 0
      %705 = vmatpush2.bf16.msra.mxu0 0
      %706 = vmatprep.subr.bf16.mxu0 0
      %707 = vmatpush2.bf16.msra.mxu0 0
      %708 = vmatprep.mubr.bf16.mxu0 0
      %709 = vmatmul.mubr.bf16.gmra.mxu0 %v641
      %v710 = vpop.f32.mrf.mxu0
      %v711 = vadd.f32 0.0, %v710
      %v712 = vpop.f32.mrf.mxu0
      %v713 = vpop.f32.mrf.mxu0
      %v714 = vadd.f32 0.0, %v713
      %v715 = vpop.f32.mrf.mxu0
      %716 = vmatprep.mubr.bf16.mxu0 0
      %717 = vmatmul.mubr.bf16.gmra.mxu0 %v644
      %v718 = vpop.f32.mrf.mxu0
      %v719 = vadd.f32 0.0, %v718
      %v720 = vpop.f32.mrf.mxu0
      %v721 = vpop.f32.mrf.mxu0
      %v722 = vadd.f32 0.0, %v721
      %v723 = vpop.f32.mrf.mxu0
      %724 = vmatprep.mubr.bf16.mxu0 0
      %725 = vmatmul.mubr.bf16.gmra.mxu0 %v647
      %v726 = vpop.f32.mrf.mxu0
      %v727 = vadd.f32 0.0, %v726
      %v728 = vpop.f32.mrf.mxu0
      %v729 = vpop.f32.mrf.mxu0
      %v730 = vadd.f32 0.0, %v729
      %v731 = vpop.f32.mrf.mxu0
      %732 = vmatprep.mubr.bf16.mxu0 0
      %733 = vmatmul.mubr.bf16.gmra.mxu0 %v650
      %v734 = vpop.f32.mrf.mxu0
      %v735 = vadd.f32 0.0, %v734
      %v736 = vpop.f32.mrf.mxu0
      %v737 = vpop.f32.mrf.mxu0
      %v738 = vadd.f32 0.0, %v737
      %v739 = vpop.f32.mrf.mxu0
      %740 = vmatprep.mubr.bf16.mxu0 0
      %741 = vmatmul.mubr.bf16.gmra.mxu0 %v653
      %v742 = vpop.f32.mrf.mxu0
      %v743 = vadd.f32 0.0, %v742
      %v744 = vpop.f32.mrf.mxu0
      %v745 = vpop.f32.mrf.mxu0
      %v746 = vadd.f32 0.0, %v745
      %v747 = vpop.f32.mrf.mxu0
      %748 = vmatprep.mubr.bf16.mxu0 0
      %749 = vmatmul.mubr.bf16.gmra.mxu0 %v656
      %v750 = vpop.f32.mrf.mxu0
      %v751 = vadd.f32 0.0, %v750
      %v752 = vpop.f32.mrf.mxu0
      %v753 = vpop.f32.mrf.mxu0
      %v754 = vadd.f32 0.0, %v753
      %v755 = vpop.f32.mrf.mxu0
      %756 = vmatprep.mubr.bf16.mxu0 0
      %757 = vmatmul.mubr.bf16.gmra.mxu0 %v659
      %v758 = vpop.f32.mrf.mxu0
      %v759 = vadd.f32 0.0, %v758
      %v760 = vpop.f32.mrf.mxu0
      %v761 = vpop.f32.mrf.mxu0
      %v762 = vadd.f32 0.0, %v761
      %v763 = vpop.f32.mrf.mxu0
      %764 = vmatprep.mubr.bf16.mxu0 0
      %765 = vmatmul.mubr.bf16.gmra.mxu0 %v662
      %v766 = vpop.f32.mrf.mxu0
      %v767 = vadd.f32 0.0, %v766
      %v768 = vpop.f32.mrf.mxu0
      %v769 = vpop.f32.mrf.mxu0
      %v770 = vadd.f32 0.0, %v769
      %v771 = vpop.f32.mrf.mxu0
      %772 = vmatprep.mubr.bf16.mxu0 0
      %773 = vmatmul.mubr.bf16.gmra.mxu0 %v665
      %v774 = vpop.f32.mrf.mxu0
      %v775 = vadd.f32 0.0, %v774
      %v776 = vpop.f32.mrf.mxu0
      %v777 = vpop.f32.mrf.mxu0
      %v778 = vadd.f32 0.0, %v777
      %v779 = vpop.f32.mrf.mxu0
      %780 = vmatprep.mubr.bf16.mxu0 0
      %781 = vmatmul.mubr.bf16.gmra.mxu0 %v668
      %v782 = vpop.f32.mrf.mxu0
      %v783 = vadd.f32 0.0, %v782
      %v784 = vpop.f32.mrf.mxu0
      %v785 = vpop.f32.mrf.mxu0
      %v786 = vadd.f32 0.0, %v785
      %v787 = vpop.f32.mrf.mxu0
      %788 = vmatprep.mubr.bf16.mxu0 0
      %789 = vmatmul.mubr.bf16.gmra.mxu0 %v671
      %v790 = vpop.f32.mrf.mxu0
      %v791 = vadd.f32 0.0, %v790
      %v792 = vpop.f32.mrf.mxu0
      %v793 = vpop.f32.mrf.mxu0
      %v794 = vadd.f32 0.0, %v793
      %v795 = vpop.f32.mrf.mxu0
      %796 = vmatprep.mubr.bf16.mxu0 0
      %797 = vmatmul.mubr.bf16.gmra.mxu0 %v674
      %v798 = vpop.f32.mrf.mxu0
      %v799 = vadd.f32 0.0, %v798
      %v800 = vpop.f32.mrf.mxu0
      %v801 = vpop.f32.mrf.mxu0
      %v802 = vadd.f32 0.0, %v801
      %v803 = vpop.f32.mrf.mxu0
      %804 = vdwg.mxu0
      %v805 = vpack.c.bf16 %v711, %v711
      %v806 = vpack.c.bf16 %v714, %v714
      %v807 = vpack.c.bf16 %v719, %v719
      %v808 = vpack.c.bf16 %v722, %v722
      %v809 = vpack.c.bf16 %v727, %v727
      %v810 = vpack.c.bf16 %v730, %v730
      %v811 = vpack.c.bf16 %v735, %v735
      %v812 = vpack.c.bf16 %v738, %v738
      %v813 = vpack.c.bf16 %v743, %v743
      %v814 = vpack.c.bf16 %v746, %v746
      %v815 = vpack.c.bf16 %v751, %v751
      %v816 = vpack.c.bf16 %v754, %v754
      %v817 = vpack.c.bf16 %v759, %v759
      %v818 = vpack.c.bf16 %v762, %v762
      %v819 = vpack.c.bf16 %v767, %v767
      %v820 = vpack.c.bf16 %v770, %v770
      %v821 = vpack.c.bf16 %v775, %v775
      %v822 = vpack.c.bf16 %v778, %v778
      %v823 = vpack.c.bf16 %v783, %v783
      %v824 = vpack.c.bf16 %v786, %v786
      %v825 = vpack.c.bf16 %v791, %v791
      %v826 = vpack.c.bf16 %v794, %v794
      %v827 = vpack.c.bf16 %v799, %v799
      %v828 = vpack.c.bf16 %v802, %v802
      %829 = vxpose.xlu0.c.b16.start [1/8] %v805, 128
      %830 = vxpose.xlu0.c.b16.cont [2/8] 0, 128
      %831 = vxpose.xlu0.c.b16.cont [3/8] 0, 128
      %832 = vxpose.xlu0.c.b16.cont [4/8] 0, 128
      %833 = vxpose.xlu0.c.b16.cont [5/8] 0, 128
      %834 = vxpose.xlu0.c.b16.cont [6/8] 0, 128
      %835 = vxpose.xlu0.c.b16.cont [7/8] 0, 128
      %836 = vxpose.xlu0.c.b16.end [8/8] 0, 128
      %v837 = vpop.trf.xlu0
      %v838 = vpop.trf.xlu0
      %v839 = vpop.trf.xlu0
      %v840 = vpop.trf.xlu0
      %v841 = vpop.trf.xlu0
      %v842 = vpop.trf.xlu0
      %v843 = vpop.trf.xlu0
      %v844 = vpop.trf.xlu0
      %vm845 = vcmask 64512
      %v847 = vsel %vm845, %v837, 0
      %vm849 = vcmask 1043456
      %v851 = vsel %vm849, %v813, 0
      %853 = vmatprep.subr.bf16.mxu0 0
      %854 = vmatpush1.bf16.msra.mxu0 0
      %855 = vmatprep.subr.bf16.mxu0 0
      %856 = vmatpush1.bf16.msra.mxu0 0
      %857 = vmatprep.subr.bf16.mxu0 0
      %858 = vmatpush1.bf16.msra.mxu0 0
      %859 = vmatprep.subr.bf16.mxu0 0
      %860 = vmatpush1.bf16.msra.mxu0 0
      %861 = vmatprep.subr.bf16.mxu0 0
      %862 = vmatpush1.bf16.msra.mxu0 0
      %863 = vmatprep.subr.bf16.mxu0 0
      %864 = vmatpush1.bf16.msra.mxu0 0
      %865 = vmatprep.subr.bf16.mxu0 0
      %866 = vmatpush1.bf16.msra.mxu0 0
      %867 = vmatprep.subr.bf16.mxu0 0
      %868 = vmatpush1.bf16.msra.mxu0 %v851
      %869 = vmatprep.subr.bf16.mxu0 0
      %870 = vmatpush2.bf16.msra.mxu0 0
      %871 = vmatprep.subr.bf16.mxu0 0
      %872 = vmatpush2.bf16.msra.mxu0 0
      %873 = vmatprep.subr.bf16.mxu0 0
      %874 = vmatpush2.bf16.msra.mxu0 0
      %875 = vmatprep.subr.bf16.mxu0 0
      %876 = vmatpush2.bf16.msra.mxu0 0
      %877 = vmatprep.subr.bf16.mxu0 0
      %878 = vmatpush2.bf16.msra.mxu0 0
      %879 = vmatprep.subr.bf16.mxu0 0
      %880 = vmatpush2.bf16.msra.mxu0 0
      %881 = vmatprep.subr.bf16.mxu0 0
      %882 = vmatpush2.bf16.msra.mxu0 0
      %883 = vmatprep.subr.bf16.mxu0 0
      %884 = vmatpush2.bf16.msra.mxu0 0
      %885 = vmatprep.mubr.bf16.mxu0 0
      %886 = vmatmul.mubr.bf16.gmra.mxu0 %v847
      %v887 = vpop.f32.mrf.mxu0
      %v888 = vadd.f32 0.0, %v887
      %v889 = vpop.f32.mrf.mxu0
      %v890 = vpop.f32.mrf.mxu0
      %v891 = vadd.f32 0.0, %v890
      %v892 = vpop.f32.mrf.mxu0
      %893 = vdwg.mxu0
      %894 = vxpose.xlu0.c.b16.start [1/8] %v806, 128
      %895 = vxpose.xlu0.c.b16.cont [2/8] 0, 128
      %896 = vxpose.xlu0.c.b16.cont [3/8] 0, 128
      %897 = vxpose.xlu0.c.b16.cont [4/8] 0, 128
      %898 = vxpose.xlu0.c.b16.cont [5/8] 0, 128
      %899 = vxpose.xlu0.c.b16.cont [6/8] 0, 128
      %900 = vxpose.xlu0.c.b16.cont [7/8] 0, 128
      %901 = vxpose.xlu0.c.b16.end [8/8] 0, 128
      %v902 = vpop.trf.xlu0
      %v903 = vpop.trf.xlu0
      %v904 = vpop.trf.xlu0
      %v905 = vpop.trf.xlu0
      %v906 = vpop.trf.xlu0
      %v907 = vpop.trf.xlu0
      %v908 = vpop.trf.xlu0
      %v909 = vpop.trf.xlu0
      %v911 = vsel %vm845, %v902, 0
      %v914 = vsel %vm849, %v814, 0
      %916 = vmatprep.subr.bf16.mxu0 0
      %917 = vmatpush1.bf16.msra.mxu0 0
      %918 = vmatprep.subr.bf16.mxu0 0
      %919 = vmatpush1.bf16.msra.mxu0 0
      %920 = vmatprep.subr.bf16.mxu0 0
      %921 = vmatpush1.bf16.msra.mxu0 0
      %922 = vmatprep.subr.bf16.mxu0 0
      %923 = vmatpush1.bf16.msra.mxu0 0
      %924 = vmatprep.subr.bf16.mxu0 0
      %925 = vmatpush1.bf16.msra.mxu0 0
      %926 = vmatprep.subr.bf16.mxu0 0
      %927 = vmatpush1.bf16.msra.mxu0 0
      %928 = vmatprep.subr.bf16.mxu0 0
      %929 = vmatpush1.bf16.msra.mxu0 0
      %930 = vmatprep.subr.bf16.mxu0 0
      %931 = vmatpush1.bf16.msra.mxu0 %v914
      %932 = vmatprep.subr.bf16.mxu0 0
      %933 = vmatpush2.bf16.msra.mxu0 0
      %934 = vmatprep.subr.bf16.mxu0 0
      %935 = vmatpush2.bf16.msra.mxu0 0
      %936 = vmatprep.subr.bf16.mxu0 0
      %937 = vmatpush2.bf16.msra.mxu0 0
      %938 = vmatprep.subr.bf16.mxu0 0
      %939 = vmatpush2.bf16.msra.mxu0 0
      %940 = vmatprep.subr.bf16.mxu0 0
      %941 = vmatpush2.bf16.msra.mxu0 0
      %942 = vmatprep.subr.bf16.mxu0 0
      %943 = vmatpush2.bf16.msra.mxu0 0
      %944 = vmatprep.subr.bf16.mxu0 0
      %945 = vmatpush2.bf16.msra.mxu0 0
      %946 = vmatprep.subr.bf16.mxu0 0
      %947 = vmatpush2.bf16.msra.mxu0 0
      %948 = vmatprep.mubr.bf16.mxu0 0
      %949 = vmatmul.mubr.bf16.gmra.mxu0 %v911
      %v950 = vpop.f32.mrf.mxu0
      %v951 = vadd.f32 0.0, %v950
      %v952 = vpop.f32.mrf.mxu0
      %v953 = vpop.f32.mrf.mxu0
      %v954 = vadd.f32 0.0, %v953
      %v955 = vpop.f32.mrf.mxu0
      %956 = vdwg.mxu0
      %957 = vxpose.xlu0.c.b16.start [1/8] %v807, 128
      %958 = vxpose.xlu0.c.b16.cont [2/8] 0, 128
      %959 = vxpose.xlu0.c.b16.cont [3/8] 0, 128
      %960 = vxpose.xlu0.c.b16.cont [4/8] 0, 128
      %961 = vxpose.xlu0.c.b16.cont [5/8] 0, 128
      %962 = vxpose.xlu0.c.b16.cont [6/8] 0, 128
      %963 = vxpose.xlu0.c.b16.cont [7/8] 0, 128
      %964 = vxpose.xlu0.c.b16.end [8/8] 0, 128
      %v965 = vpop.trf.xlu0
      %v966 = vpop.trf.xlu0
      %v967 = vpop.trf.xlu0
      %v968 = vpop.trf.xlu0
      %v969 = vpop.trf.xlu0
      %v970 = vpop.trf.xlu0
      %v971 = vpop.trf.xlu0
      %v972 = vpop.trf.xlu0
      %v974 = vsel %vm845, %v965, 0
      %v977 = vsel %vm849, %v815, 0
      %979 = vmatprep.subr.bf16.mxu0 0
      %980 = vmatpush1.bf16.msra.mxu0 0
      %981 = vmatprep.subr.bf16.mxu0 0
      %982 = vmatpush1.bf16.msra.mxu0 0
      %983 = vmatprep.subr.bf16.mxu0 0
      %984 = vmatpush1.bf16.msra.mxu0 0
      %985 = vmatprep.subr.bf16.mxu0 0
      %986 = vmatpush1.bf16.msra.mxu0 0
      %987 = vmatprep.subr.bf16.mxu0 0
      %988 = vmatpush1.bf16.msra.mxu0 0
      %989 = vmatprep.subr.bf16.mxu0 0
      %990 = vmatpush1.bf16.msra.mxu0 0
      %991 = vmatprep.subr.bf16.mxu0 0
      %992 = vmatpush1.bf16.msra.mxu0 0
      %993 = vmatprep.subr.bf16.mxu0 0
      %994 = vmatpush1.bf16.msra.mxu0 %v977
      %995 = vmatprep.subr.bf16.mxu0 0
      %996 = vmatpush2.bf16.msra.mxu0 0
      %997 = vmatprep.subr.bf16.mxu0 0
      %998 = vmatpush2.bf16.msra.mxu0 0
      %999 = vmatprep.subr.bf16.mxu0 0
      %1000 = vmatpush2.bf16.msra.mxu0 0
      %1001 = vmatprep.subr.bf16.mxu0 0
      %1002 = vmatpush2.bf16.msra.mxu0 0
      %1003 = vmatprep.subr.bf16.mxu0 0
      %1004 = vmatpush2.bf16.msra.mxu0 0
      %1005 = vmatprep.subr.bf16.mxu0 0
      %1006 = vmatpush2.bf16.msra.mxu0 0
      %1007 = vmatprep.subr.bf16.mxu0 0
      %1008 = vmatpush2.bf16.msra.mxu0 0
      %1009 = vmatprep.subr.bf16.mxu0 0
      %1010 = vmatpush2.bf16.msra.mxu0 0
      %1011 = vmatprep.mubr.bf16.mxu0 0
      %1012 = vmatmul.mubr.bf16.gmra.mxu0 %v974
      %v1013 = vpop.f32.mrf.mxu0
      %v1014 = vadd.f32 0.0, %v1013
      %v1015 = vpop.f32.mrf.mxu0
      %v1016 = vpop.f32.mrf.mxu0
      %v1017 = vadd.f32 0.0, %v1016
      %v1018 = vpop.f32.mrf.mxu0
      %1019 = vdwg.mxu0
      %1020 = vxpose.xlu0.c.b16.start [1/8] %v808, 128
      %1021 = vxpose.xlu0.c.b16.cont [2/8] 0, 128
      %1022 = vxpose.xlu0.c.b16.cont [3/8] 0, 128
      %1023 = vxpose.xlu0.c.b16.cont [4/8] 0, 128
      %1024 = vxpose.xlu0.c.b16.cont [5/8] 0, 128
      %1025 = vxpose.xlu0.c.b16.cont [6/8] 0, 128
      %1026 = vxpose.xlu0.c.b16.cont [7/8] 0, 128
      %1027 = vxpose.xlu0.c.b16.end [8/8] 0, 128
      %v1028 = vpop.trf.xlu0
      %v1029 = vpop.trf.xlu0
      %v1030 = vpop.trf.xlu0
      %v1031 = vpop.trf.xlu0
      %v1032 = vpop.trf.xlu0
      %v1033 = vpop.trf.xlu0
      %v1034 = vpop.trf.xlu0
      %v1035 = vpop.trf.xlu0
      %v1037 = vsel %vm845, %v1028, 0
      %v1040 = vsel %vm849, %v816, 0
      %1042 = vmatprep.subr.bf16.mxu0 0
      %1043 = vmatpush1.bf16.msra.mxu0 0
      %1044 = vmatprep.subr.bf16.mxu0 0
      %1045 = vmatpush1.bf16.msra.mxu0 0
      %1046 = vmatprep.subr.bf16.mxu0 0
      %1047 = vmatpush1.bf16.msra.mxu0 0
      %1048 = vmatprep.subr.bf16.mxu0 0
      %1049 = vmatpush1.bf16.msra.mxu0 0
      %1050 = vmatprep.subr.bf16.mxu0 0
      %1051 = vmatpush1.bf16.msra.mxu0 0
      %1052 = vmatprep.subr.bf16.mxu0 0
      %1053 = vmatpush1.bf16.msra.mxu0 0
      %1054 = vmatprep.subr.bf16.mxu0 0
      %1055 = vmatpush1.bf16.msra.mxu0 0
      %1056 = vmatprep.subr.bf16.mxu0 0
      %1057 = vmatpush1.bf16.msra.mxu0 %v1040
      %1058 = vmatprep.subr.bf16.mxu0 0
      %1059 = vmatpush2.bf16.msra.mxu0 0
      %1060 = vmatprep.subr.bf16.mxu0 0
      %1061 = vmatpush2.bf16.msra.mxu0 0
      %1062 = vmatprep.subr.bf16.mxu0 0
      %1063 = vmatpush2.bf16.msra.mxu0 0
      %1064 = vmatprep.subr.bf16.mxu0 0
      %1065 = vmatpush2.bf16.msra.mxu0 0
      %1066 = vmatprep.subr.bf16.mxu0 0
      %1067 = vmatpush2.bf16.msra.mxu0 0
      %1068 = vmatprep.subr.bf16.mxu0 0
      %1069 = vmatpush2.bf16.msra.mxu0 0
      %1070 = vmatprep.subr.bf16.mxu0 0
      %1071 = vmatpush2.bf16.msra.mxu0 0
      %1072 = vmatprep.subr.bf16.mxu0 0
      %1073 = vmatpush2.bf16.msra.mxu0 0
      %1074 = vmatprep.mubr.bf16.mxu0 0
      %1075 = vmatmul.mubr.bf16.gmra.mxu0 %v1037
      %v1076 = vpop.f32.mrf.mxu0
      %v1077 = vadd.f32 0.0, %v1076
      %v1078 = vpop.f32.mrf.mxu0
      %v1079 = vpop.f32.mrf.mxu0
      %v1080 = vadd.f32 0.0, %v1079
      %v1081 = vpop.f32.mrf.mxu0
      %1082 = vdwg.mxu0
      %1083 = vxpose.xlu0.c.b16.start [1/8] %v809, 128
      %1084 = vxpose.xlu0.c.b16.cont [2/8] 0, 128
      %1085 = vxpose.xlu0.c.b16.cont [3/8] 0, 128
      %1086 = vxpose.xlu0.c.b16.cont [4/8] 0, 128
      %1087 = vxpose.xlu0.c.b16.cont [5/8] 0, 128
      %1088 = vxpose.xlu0.c.b16.cont [6/8] 0, 128
      %1089 = vxpose.xlu0.c.b16.cont [7/8] 0, 128
      %1090 = vxpose.xlu0.c.b16.end [8/8] 0, 128
      %v1091 = vpop.trf.xlu0
      %v1092 = vpop.trf.xlu0
      %v1093 = vpop.trf.xlu0
      %v1094 = vpop.trf.xlu0
      %v1095 = vpop.trf.xlu0
      %v1096 = vpop.trf.xlu0
      %v1097 = vpop.trf.xlu0
      %v1098 = vpop.trf.xlu0
      %v1100 = vsel %vm845, %v1091, 0
      %v1103 = vsel %vm849, %v817, 0
      %1105 = vmatprep.subr.bf16.mxu0 0
      %1106 = vmatpush1.bf16.msra.mxu0 0
      %1107 = vmatprep.subr.bf16.mxu0 0
      %1108 = vmatpush1.bf16.msra.mxu0 0
      %1109 = vmatprep.subr.bf16.mxu0 0
      %1110 = vmatpush1.bf16.msra.mxu0 0
      %1111 = vmatprep.subr.bf16.mxu0 0
      %1112 = vmatpush1.bf16.msra.mxu0 0
      %1113 = vmatprep.subr.bf16.mxu0 0
      %1114 = vmatpush1.bf16.msra.mxu0 0
      %1115 = vmatprep.subr.bf16.mxu0 0
      %1116 = vmatpush1.bf16.msra.mxu0 0
      %1117 = vmatprep.subr.bf16.mxu0 0
      %1118 = vmatpush1.bf16.msra.mxu0 0
      %1119 = vmatprep.subr.bf16.mxu0 0
      %1120 = vmatpush1.bf16.msra.mxu0 %v1103
      %1121 = vmatprep.subr.bf16.mxu0 0
      %1122 = vmatpush2.bf16.msra.mxu0 0
      %1123 = vmatprep.subr.bf16.mxu0 0
      %1124 = vmatpush2.bf16.msra.mxu0 0
      %1125 = vmatprep.subr.bf16.mxu0 0
      %1126 = vmatpush2.bf16.msra.mxu0 0
      %1127 = vmatprep.subr.bf16.mxu0 0
      %1128 = vmatpush2.bf16.msra.mxu0 0
      %1129 = vmatprep.subr.bf16.mxu0 0
      %1130 = vmatpush2.bf16.msra.mxu0 0
      %1131 = vmatprep.subr.bf16.mxu0 0
      %1132 = vmatpush2.bf16.msra.mxu0 0
      %1133 = vmatprep.subr.bf16.mxu0 0
      %1134 = vmatpush2.bf16.msra.mxu0 0
      %1135 = vmatprep.subr.bf16.mxu0 0
      %1136 = vmatpush2.bf16.msra.mxu0 0
      %1137 = vmatprep.mubr.bf16.mxu0 0
      %1138 = vmatmul.mubr.bf16.gmra.mxu0 %v1100
      %v1139 = vpop.f32.mrf.mxu0
      %v1140 = vadd.f32 0.0, %v1139
      %v1141 = vpop.f32.mrf.mxu0
      %v1142 = vpop.f32.mrf.mxu0
      %v1143 = vadd.f32 0.0, %v1142
      %v1144 = vpop.f32.mrf.mxu0
      %1145 = vdwg.mxu0
      %1146 = vxpose.xlu0.c.b16.start [1/8] %v810, 128
      %1147 = vxpose.xlu0.c.b16.cont [2/8] 0, 128
      %1148 = vxpose.xlu0.c.b16.cont [3/8] 0, 128
      %1149 = vxpose.xlu0.c.b16.cont [4/8] 0, 128
      %1150 = vxpose.xlu0.c.b16.cont [5/8] 0, 128
      %1151 = vxpose.xlu0.c.b16.cont [6/8] 0, 128
      %1152 = vxpose.xlu0.c.b16.cont [7/8] 0, 128
      %1153 = vxpose.xlu0.c.b16.end [8/8] 0, 128
      %v1154 = vpop.trf.xlu0
      %v1155 = vpop.trf.xlu0
      %v1156 = vpop.trf.xlu0
      %v1157 = vpop.trf.xlu0
      %v1158 = vpop.trf.xlu0
      %v1159 = vpop.trf.xlu0
      %v1160 = vpop.trf.xlu0
      %v1161 = vpop.trf.xlu0
      %v1163 = vsel %vm845, %v1154, 0
      %v1166 = vsel %vm849, %v818, 0
      %1168 = vmatprep.subr.bf16.mxu0 0
      %1169 = vmatpush1.bf16.msra.mxu0 0
      %1170 = vmatprep.subr.bf16.mxu0 0
      %1171 = vmatpush1.bf16.msra.mxu0 0
      %1172 = vmatprep.subr.bf16.mxu0 0
      %1173 = vmatpush1.bf16.msra.mxu0 0
      %1174 = vmatprep.subr.bf16.mxu0 0
      %1175 = vmatpush1.bf16.msra.mxu0 0
      %1176 = vmatprep.subr.bf16.mxu0 0
      %1177 = vmatpush1.bf16.msra.mxu0 0
      %1178 = vmatprep.subr.bf16.mxu0 0
      %1179 = vmatpush1.bf16.msra.mxu0 0
      %1180 = vmatprep.subr.bf16.mxu0 0
      %1181 = vmatpush1.bf16.msra.mxu0 0
      %1182 = vmatprep.subr.bf16.mxu0 0
      %1183 = vmatpush1.bf16.msra.mxu0 %v1166
      %1184 = vmatprep.subr.bf16.mxu0 0
      %1185 = vmatpush2.bf16.msra.mxu0 0
      %1186 = vmatprep.subr.bf16.mxu0 0
      %1187 = vmatpush2.bf16.msra.mxu0 0
      %1188 = vmatprep.subr.bf16.mxu0 0
      %1189 = vmatpush2.bf16.msra.mxu0 0
      %1190 = vmatprep.subr.bf16.mxu0 0
      %1191 = vmatpush2.bf16.msra.mxu0 0
      %1192 = vmatprep.subr.bf16.mxu0 0
      %1193 = vmatpush2.bf16.msra.mxu0 0
      %1194 = vmatprep.subr.bf16.mxu0 0
      %1195 = vmatpush2.bf16.msra.mxu0 0
      %1196 = vmatprep.subr.bf16.mxu0 0
      %1197 = vmatpush2.bf16.msra.mxu0 0
      %1198 = vmatprep.subr.bf16.mxu0 0
      %1199 = vmatpush2.bf16.msra.mxu0 0
      %1200 = vmatprep.mubr.bf16.mxu0 0
      %1201 = vmatmul.mubr.bf16.gmra.mxu0 %v1163
      %v1202 = vpop.f32.mrf.mxu0
      %v1203 = vadd.f32 0.0, %v1202
      %v1204 = vpop.f32.mrf.mxu0
      %v1205 = vpop.f32.mrf.mxu0
      %v1206 = vadd.f32 0.0, %v1205
      %v1207 = vpop.f32.mrf.mxu0
      %1208 = vdwg.mxu0
      %1209 = vxpose.xlu0.c.b16.start [1/8] %v811, 128
      %1210 = vxpose.xlu0.c.b16.cont [2/8] 0, 128
      %1211 = vxpose.xlu0.c.b16.cont [3/8] 0, 128
      %1212 = vxpose.xlu0.c.b16.cont [4/8] 0, 128
      %1213 = vxpose.xlu0.c.b16.cont [5/8] 0, 128
      %1214 = vxpose.xlu0.c.b16.cont [6/8] 0, 128
      %1215 = vxpose.xlu0.c.b16.cont [7/8] 0, 128
      %1216 = vxpose.xlu0.c.b16.end [8/8] 0, 128
      %v1217 = vpop.trf.xlu0
      %v1218 = vpop.trf.xlu0
      %v1219 = vpop.trf.xlu0
      %v1220 = vpop.trf.xlu0
      %v1221 = vpop.trf.xlu0
      %v1222 = vpop.trf.xlu0
      %v1223 = vpop.trf.xlu0
      %v1224 = vpop.trf.xlu0
      %v1226 = vsel %vm845, %v1217, 0
      %v1229 = vsel %vm849, %v819, 0
      %1231 = vmatprep.subr.bf16.mxu0 0
      %1232 = vmatpush1.bf16.msra.mxu0 0
      %1233 = vmatprep.subr.bf16.mxu0 0
      %1234 = vmatpush1.bf16.msra.mxu0 0
      %1235 = vmatprep.subr.bf16.mxu0 0
      %1236 = vmatpush1.bf16.msra.mxu0 0
      %1237 = vmatprep.subr.bf16.mxu0 0
      %1238 = vmatpush1.bf16.msra.mxu0 0
      %1239 = vmatprep.subr.bf16.mxu0 0
      %1240 = vmatpush1.bf16.msra.mxu0 0
      %1241 = vmatprep.subr.bf16.mxu0 0
      %1242 = vmatpush1.bf16.msra.mxu0 0
      %1243 = vmatprep.subr.bf16.mxu0 0
      %1244 = vmatpush1.bf16.msra.mxu0 0
      %1245 = vmatprep.subr.bf16.mxu0 0
      %1246 = vmatpush1.bf16.msra.mxu0 %v1229
      %1247 = vmatprep.subr.bf16.mxu0 0
      %1248 = vmatpush2.bf16.msra.mxu0 0
      %1249 = vmatprep.subr.bf16.mxu0 0
      %1250 = vmatpush2.bf16.msra.mxu0 0
      %1251 = vmatprep.subr.bf16.mxu0 0
      %1252 = vmatpush2.bf16.msra.mxu0 0
      %1253 = vmatprep.subr.bf16.mxu0 0
      %1254 = vmatpush2.bf16.msra.mxu0 0
      %1255 = vmatprep.subr.bf16.mxu0 0
      %1256 = vmatpush2.bf16.msra.mxu0 0
      %1257 = vmatprep.subr.bf16.mxu0 0
      %1258 = vmatpush2.bf16.msra.mxu0 0
      %1259 = vmatprep.subr.bf16.mxu0 0
      %1260 = vmatpush2.bf16.msra.mxu0 0
      %1261 = vmatprep.subr.bf16.mxu0 0
      %1262 = vmatpush2.bf16.msra.mxu0 0
      %1263 = vmatprep.mubr.bf16.mxu0 0
      %1264 = vmatmul.mubr.bf16.gmra.mxu0 %v1226
      %v1265 = vpop.f32.mrf.mxu0
      %v1266 = vadd.f32 0.0, %v1265
      %v1267 = vpop.f32.mrf.mxu0
      %v1268 = vpop.f32.mrf.mxu0
      %v1269 = vadd.f32 0.0, %v1268
      %v1270 = vpop.f32.mrf.mxu0
      %1271 = vdwg.mxu0
      %1272 = vxpose.xlu0.c.b16.start [1/8] %v812, 128
      %1273 = vxpose.xlu0.c.b16.cont [2/8] 0, 128
      %1274 = vxpose.xlu0.c.b16.cont [3/8] 0, 128
      %1275 = vxpose.xlu0.c.b16.cont [4/8] 0, 128
      %1276 = vxpose.xlu0.c.b16.cont [5/8] 0, 128
      %1277 = vxpose.xlu0.c.b16.cont [6/8] 0, 128
      %1278 = vxpose.xlu0.c.b16.cont [7/8] 0, 128
      %1279 = vxpose.xlu0.c.b16.end [8/8] 0, 128
      %v1280 = vpop.trf.xlu0
      %v1281 = vpop.trf.xlu0
      %v1282 = vpop.trf.xlu0
      %v1283 = vpop.trf.xlu0
      %v1284 = vpop.trf.xlu0
      %v1285 = vpop.trf.xlu0
      %v1286 = vpop.trf.xlu0
      %v1287 = vpop.trf.xlu0
      %v1289 = vsel %vm845, %v1280, 0
      %v1292 = vsel %vm849, %v820, 0
      %1294 = vmatprep.subr.bf16.mxu0 0
      %1295 = vmatpush1.bf16.msra.mxu0 0
      %1296 = vmatprep.subr.bf16.mxu0 0
      %1297 = vmatpush1.bf16.msra.mxu0 0
      %1298 = vmatprep.subr.bf16.mxu0 0
      %1299 = vmatpush1.bf16.msra.mxu0 0
      %1300 = vmatprep.subr.bf16.mxu0 0
      %1301 = vmatpush1.bf16.msra.mxu0 0
      %1302 = vmatprep.subr.bf16.mxu0 0
      %1303 = vmatpush1.bf16.msra.mxu0 0
      %1304 = vmatprep.subr.bf16.mxu0 0
      %1305 = vmatpush1.bf16.msra.mxu0 0
      %1306 = vmatprep.subr.bf16.mxu0 0
      %1307 = vmatpush1.bf16.msra.mxu0 0
      %1308 = vmatprep.subr.bf16.mxu0 0
      %1309 = vmatpush1.bf16.msra.mxu0 %v1292
      %1310 = vmatprep.subr.bf16.mxu0 0
      %1311 = vmatpush2.bf16.msra.mxu0 0
      %1312 = vmatprep.subr.bf16.mxu0 0
      %1313 = vmatpush2.bf16.msra.mxu0 0
      %1314 = vmatprep.subr.bf16.mxu0 0
      %1315 = vmatpush2.bf16.msra.mxu0 0
      %1316 = vmatprep.subr.bf16.mxu0 0
      %1317 = vmatpush2.bf16.msra.mxu0 0
      %1318 = vmatprep.subr.bf16.mxu0 0
      %1319 = vmatpush2.bf16.msra.mxu0 0
      %1320 = vmatprep.subr.bf16.mxu0 0
      %1321 = vmatpush2.bf16.msra.mxu0 0
      %1322 = vmatprep.subr.bf16.mxu0 0
      %1323 = vmatpush2.bf16.msra.mxu0 0
      %1324 = vmatprep.subr.bf16.mxu0 0
      %1325 = vmatpush2.bf16.msra.mxu0 0
      %1326 = vmatprep.mubr.bf16.mxu0 0
      %1327 = vmatmul.mubr.bf16.gmra.mxu0 %v1289
      %v1328 = vpop.f32.mrf.mxu0
      %v1329 = vadd.f32 0.0, %v1328
      %v1330 = vpop.f32.mrf.mxu0
      %v1331 = vpop.f32.mrf.mxu0
      %v1332 = vadd.f32 0.0, %v1331
      %v1333 = vpop.f32.mrf.mxu0
      %1334 = vdwg.mxu0
      %vm1335 = vcmask 130048
      %v1336 = vsel %vm1335, %v888, -inf
      %1337 = vmax.xlane.f32.xlu0 %v1336
      %v1338 = vpop.xlane.xlu0 %1337
      %v1339 = vsel %vm1335, %v891, -inf
      %1340 = vmax.xlane.f32.xlu0 %v1339
      %v1341 = vpop.xlane.xlu0 %1340
      %v1342 = vsel %vm1335, %v951, -inf
      %1343 = vmax.xlane.f32.xlu0 %v1342
      %v1344 = vpop.xlane.xlu0 %1343
      %v1345 = vsel %vm1335, %v954, -inf
      %1346 = vmax.xlane.f32.xlu0 %v1345
      %v1347 = vpop.xlane.xlu0 %1346
      %v1348 = vsel %vm1335, %v1014, -inf
      %1349 = vmax.xlane.f32.xlu0 %v1348
      %v1350 = vpop.xlane.xlu0 %1349
      %v1351 = vsel %vm1335, %v1017, -inf
      %1352 = vmax.xlane.f32.xlu0 %v1351
      %v1353 = vpop.xlane.xlu0 %1352
      %v1354 = vsel %vm1335, %v1077, -inf
      %1355 = vmax.xlane.f32.xlu0 %v1354
      %v1356 = vpop.xlane.xlu0 %1355
      %v1357 = vsel %vm1335, %v1080, -inf
      %1358 = vmax.xlane.f32.xlu0 %v1357
      %v1359 = vpop.xlane.xlu0 %1358
      %v1360 = vsel %vm1335, %v1140, -inf
      %1361 = vmax.xlane.f32.xlu0 %v1360
      %v1362 = vpop.xlane.xlu0 %1361
      %v1363 = vsel %vm1335, %v1143, -inf
      %1364 = vmax.xlane.f32.xlu0 %v1363
      %v1365 = vpop.xlane.xlu0 %1364
      %v1366 = vsel %vm1335, %v1203, -inf
      %1367 = vmax.xlane.f32.xlu0 %v1366
      %v1368 = vpop.xlane.xlu0 %1367
      %v1369 = vsel %vm1335, %v1206, -inf
      %1370 = vmax.xlane.f32.xlu0 %v1369
      %v1371 = vpop.xlane.xlu0 %1370
      %v1372 = vsel %vm1335, %v1266, -inf
      %1373 = vmax.xlane.f32.xlu0 %v1372
      %v1374 = vpop.xlane.xlu0 %1373
      %v1375 = vsel %vm1335, %v1269, -inf
      %1376 = vmax.xlane.f32.xlu0 %v1375
      %v1377 = vpop.xlane.xlu0 %1376
      %v1378 = vsel %vm1335, %v1329, -inf
      %1379 = vmax.xlane.f32.xlu0 %v1378
      %v1380 = vpop.xlane.xlu0 %1379
      %v1381 = vsel %vm1335, %v1332, -inf
      %1382 = vmax.xlane.f32.xlu0 %v1381
      %v1383 = vpop.xlane.xlu0 %1382
      %v1384 = vsub.f32 %v888, %v1338
      %v1385 = vsub.f32 %v891, %v1341
      %v1386 = vsub.f32 %v951, %v1344
      %v1387 = vsub.f32 %v954, %v1347
      %v1388 = vsub.f32 %v1014, %v1350
      %v1389 = vsub.f32 %v1017, %v1353
      %v1390 = vsub.f32 %v1077, %v1356
      %v1391 = vsub.f32 %v1080, %v1359
      %v1392 = vsub.f32 %v1140, %v1362
      %v1393 = vsub.f32 %v1143, %v1365
      %v1394 = vsub.f32 %v1203, %v1368
      %v1395 = vsub.f32 %v1206, %v1371
      %v1396 = vsub.f32 %v1266, %v1374
      %v1397 = vsub.f32 %v1269, %v1377
      %v1398 = vsub.f32 %v1329, %v1380
      %v1399 = vsub.f32 %v1332, %v1383
      %v1400 = vmul.f32 %v1384, 1.442695
      %v1401 = vpow.pop %v1400
      %v1402 = vmul.f32 %v1385, 1.442695
      %v1403 = vpow.pop %v1402
      %v1404 = vmul.f32 %v1386, 1.442695
      %v1405 = vpow.pop %v1404
      %v1406 = vmul.f32 %v1387, 1.442695
      %v1407 = vpow.pop %v1406
      %v1408 = vmul.f32 %v1388, 1.442695
      %v1409 = vpow.pop %v1408
      %v1410 = vmul.f32 %v1389, 1.442695
      %v1411 = vpow.pop %v1410
      %v1412 = vmul.f32 %v1390, 1.442695
      %v1413 = vpow.pop %v1412
      %v1414 = vmul.f32 %v1391, 1.442695
      %v1415 = vpow.pop %v1414
      %v1416 = vmul.f32 %v1392, 1.442695
      %v1417 = vpow.pop %v1416
      %v1418 = vmul.f32 %v1393, 1.442695
      %v1419 = vpow.pop %v1418
      %v1420 = vmul.f32 %v1394, 1.442695
      %v1421 = vpow.pop %v1420
      %v1422 = vmul.f32 %v1395, 1.442695
      %v1423 = vpow.pop %v1422
      %v1424 = vmul.f32 %v1396, 1.442695
      %v1425 = vpow.pop %v1424
      %v1426 = vmul.f32 %v1397, 1.442695
      %v1427 = vpow.pop %v1426
      %v1428 = vmul.f32 %v1398, 1.442695
      %v1429 = vpow.pop %v1428
      %v1430 = vmul.f32 %v1399, 1.442695
      %v1431 = vpow.pop %v1430
      %v1432 = vsel %vm1335, %v1401, 0.0
      %1433 = vadd.xlane.f32.xlu0 %v1432
      %v1434 = vpop.xlane.xlu0 %1433
      %v1435 = vsel %vm1335, %v1403, 0.0
      %1436 = vadd.xlane.f32.xlu0 %v1435
      %v1437 = vpop.xlane.xlu0 %1436
      %v1438 = vsel %vm1335, %v1405, 0.0
      %1439 = vadd.xlane.f32.xlu0 %v1438
      %v1440 = vpop.xlane.xlu0 %1439
      %v1441 = vsel %vm1335, %v1407, 0.0
      %1442 = vadd.xlane.f32.xlu0 %v1441
      %v1443 = vpop.xlane.xlu0 %1442
      %v1444 = vsel %vm1335, %v1409, 0.0
      %1445 = vadd.xlane.f32.xlu0 %v1444
      %v1446 = vpop.xlane.xlu0 %1445
      %v1447 = vsel %vm1335, %v1411, 0.0
      %1448 = vadd.xlane.f32.xlu0 %v1447
      %v1449 = vpop.xlane.xlu0 %1448
      %v1450 = vsel %vm1335, %v1413, 0.0
      %1451 = vadd.xlane.f32.xlu0 %v1450
      %v1452 = vpop.xlane.xlu0 %1451
      %v1453 = vsel %vm1335, %v1415, 0.0
      %1454 = vadd.xlane.f32.xlu0 %v1453
      %v1455 = vpop.xlane.xlu0 %1454
      %v1456 = vsel %vm1335, %v1417, 0.0
      %1457 = vadd.xlane.f32.xlu0 %v1456
      %v1458 = vpop.xlane.xlu0 %1457
      %v1459 = vsel %vm1335, %v1419, 0.0
      %1460 = vadd.xlane.f32.xlu0 %v1459
      %v1461 = vpop.xlane.xlu0 %1460
      %v1462 = vsel %vm1335, %v1421, 0.0
      %1463 = vadd.xlane.f32.xlu0 %v1462
      %v1464 = vpop.xlane.xlu0 %1463
      %v1465 = vsel %vm1335, %v1423, 0.0
      %1466 = vadd.xlane.f32.xlu0 %v1465
      %v1467 = vpop.xlane.xlu0 %1466
      %v1468 = vsel %vm1335, %v1425, 0.0
      %1469 = vadd.xlane.f32.xlu0 %v1468
      %v1470 = vpop.xlane.xlu0 %1469
      %v1471 = vsel %vm1335, %v1427, 0.0
      %1472 = vadd.xlane.f32.xlu0 %v1471
      %v1473 = vpop.xlane.xlu0 %1472
      %v1474 = vsel %vm1335, %v1429, 0.0
      %1475 = vadd.xlane.f32.xlu0 %v1474
      %v1476 = vpop.xlane.xlu0 %1475
      %v1477 = vsel %vm1335, %v1431, 0.0
      %1478 = vadd.xlane.f32.xlu0 %v1477
      %v1479 = vpop.xlane.xlu0 %1478
      %v1480 = vrcp.pop %v1434
      %v1481 = vrcp.pop %v1437
      %v1482 = vrcp.pop %v1440
      %v1483 = vrcp.pop %v1443
      %v1484 = vrcp.pop %v1446
      %v1485 = vrcp.pop %v1449
      %v1486 = vrcp.pop %v1452
      %v1487 = vrcp.pop %v1455
      %v1488 = vrcp.pop %v1458
      %v1489 = vrcp.pop %v1461
      %v1490 = vrcp.pop %v1464
      %v1491 = vrcp.pop %v1467
      %v1492 = vrcp.pop %v1470
      %v1493 = vrcp.pop %v1473
      %v1494 = vrcp.pop %v1476
      %v1495 = vrcp.pop %v1479
      %v1496 = vmul.f32 %v1401, %v1480
      %v1497 = vmul.f32 %v1403, %v1481
      %v1498 = vmul.f32 %v1405, %v1482
      %v1499 = vmul.f32 %v1407, %v1483
      %v1500 = vmul.f32 %v1409, %v1484
      %v1501 = vmul.f32 %v1411, %v1485
      %v1502 = vmul.f32 %v1413, %v1486
      %v1503 = vmul.f32 %v1415, %v1487
      %v1504 = vmul.f32 %v1417, %v1488
      %v1505 = vmul.f32 %v1419, %v1489
      %v1506 = vmul.f32 %v1421, %v1490
      %v1507 = vmul.f32 %v1423, %v1491
      %v1508 = vmul.f32 %v1425, %v1492
      %v1509 = vmul.f32 %v1427, %v1493
      %v1510 = vmul.f32 %v1429, %v1494
      %v1511 = vmul.f32 %v1431, %v1495
      %v1512 = vpack.c.bf16 %v1497, %v1496
      %v1513 = vpack.c.bf16 %v1499, %v1498
      %v1514 = vpack.c.bf16 %v1501, %v1500
      %v1515 = vpack.c.bf16 %v1503, %v1502
      %v1516 = vpack.c.bf16 %v1505, %v1504
      %v1517 = vpack.c.bf16 %v1507, %v1506
      %v1518 = vpack.c.bf16 %v1509, %v1508
      %v1519 = vpack.c.bf16 %v1511, %v1510
      %v1521 = vsel %vm1335, %v821, 0
      %v1524 = vsel %vm1335, %v1512, 0
      %1526 = vmatprep.subr.bf16.mxu0 0
      %1527 = vmatpush1.bf16.xpose.msra.mxu0 0
      %1528 = vmatprep.subr.bf16.mxu0 0
      %1529 = vmatpush1.bf16.xpose.msra.mxu0 0
      %1530 = vmatprep.subr.bf16.mxu0 0
      %1531 = vmatpush1.bf16.xpose.msra.mxu0 0
      %1532 = vmatprep.subr.bf16.mxu0 0
      %1533 = vmatpush1.bf16.xpose.msra.mxu0 0
      %1534 = vmatprep.subr.bf16.mxu0 0
      %1535 = vmatpush1.bf16.xpose.msra.mxu0 0
      %1536 = vmatprep.subr.bf16.mxu0 0
      %1537 = vmatpush1.bf16.xpose.msra.mxu0 0
      %1538 = vmatprep.subr.bf16.mxu0 0
      %1539 = vmatpush1.bf16.xpose.msra.mxu0 0
      %1540 = vmatprep.subr.bf16.mxu0 0
      %1541 = vmatpush1.bf16.xpose.msra.mxu0 %v1524
      %1542 = vmatprep.subr.bf16.mxu0 0
      %1543 = vmatpush2.bf16.xpose.msra.mxu0 0
      %1544 = vmatprep.subr.bf16.mxu0 0
      %1545 = vmatpush2.bf16.xpose.msra.mxu0 0
      %1546 = vmatprep.subr.bf16.mxu0 0
      %1547 = vmatpush2.bf16.xpose.msra.mxu0 0
      %1548 = vmatprep.subr.bf16.mxu0 0
      %1549 = vmatpush2.bf16.xpose.msra.mxu0 0
      %1550 = vmatprep.subr.bf16.mxu0 0
      %1551 = vmatpush2.bf16.xpose.msra.mxu0 0
      %1552 = vmatprep.subr.bf16.mxu0 0
      %1553 = vmatpush2.bf16.xpose.msra.mxu0 0
      %1554 = vmatprep.subr.bf16.mxu0 0
      %1555 = vmatpush2.bf16.xpose.msra.mxu0 0
      %1556 = vmatprep.subr.bf16.mxu0 0
      %1557 = vmatpush2.bf16.xpose.msra.mxu0 0
      %1558 = vmatprep.mubr.bf16.mxu0 0
      %1559 = vmatmul.mubr.bf16.gmra.mxu0 %v1521
      %v1560 = vpop.f32.mrf.mxu0
      %v1561 = vadd.f32 0.0, %v1560
      %v1562 = vpop.f32.mrf.mxu0
      %v1563 = vpop.f32.mrf.mxu0
      %v1564 = vpop.f32.mrf.mxu0
      %1565 = vdwg.mxu0
      %v1567 = vsel %vm1335, %v822, 0
      %v1570 = vsel %vm1335, %v1513, 0
      %1572 = vmatprep.subr.bf16.mxu0 0
      %1573 = vmatpush1.bf16.xpose.msra.mxu0 0
      %1574 = vmatprep.subr.bf16.mxu0 0
      %1575 = vmatpush1.bf16.xpose.msra.mxu0 0
      %1576 = vmatprep.subr.bf16.mxu0 0
      %1577 = vmatpush1.bf16.xpose.msra.mxu0 0
      %1578 = vmatprep.subr.bf16.mxu0 0
      %1579 = vmatpush1.bf16.xpose.msra.mxu0 0
      %1580 = vmatprep.subr.bf16.mxu0 0
      %1581 = vmatpush1.bf16.xpose.msra.mxu0 0
      %1582 = vmatprep.subr.bf16.mxu0 0
      %1583 = vmatpush1.bf16.xpose.msra.mxu0 0
      %1584 = vmatprep.subr.bf16.mxu0 0
      %1585 = vmatpush1.bf16.xpose.msra.mxu0 0
      %1586 = vmatprep.subr.bf16.mxu0 0
      %1587 = vmatpush1.bf16.xpose.msra.mxu0 %v1570
      %1588 = vmatprep.subr.bf16.mxu0 0
      %1589 = vmatpush2.bf16.xpose.msra.mxu0 0
      %1590 = vmatprep.subr.bf16.mxu0 0
      %1591 = vmatpush2.bf16.xpose.msra.mxu0 0
      %1592 = vmatprep.subr.bf16.mxu0 0
      %1593 = vmatpush2.bf16.xpose.msra.mxu0 0
      %1594 = vmatprep.subr.bf16.mxu0 0
      %1595 = vmatpush2.bf16.xpose.msra.mxu0 0
      %1596 = vmatprep.subr.bf16.mxu0 0
      %1597 = vmatpush2.bf16.xpose.msra.mxu0 0
      %1598 = vmatprep.subr.bf16.mxu0 0
      %1599 = vmatpush2.bf16.xpose.msra.mxu0 0
      %1600 = vmatprep.subr.bf16.mxu0 0
      %1601 = vmatpush2.bf16.xpose.msra.mxu0 0
      %1602 = vmatprep.subr.bf16.mxu0 0
      %1603 = vmatpush2.bf16.xpose.msra.mxu0 0
      %1604 = vmatprep.mubr.bf16.mxu0 0
      %1605 = vmatmul.mubr.bf16.gmra.mxu0 %v1567
      %v1606 = vpop.f32.mrf.mxu0
      %v1607 = vadd.f32 0.0, %v1606
      %v1608 = vpop.f32.mrf.mxu0
      %v1609 = vpop.f32.mrf.mxu0
      %v1610 = vpop.f32.mrf.mxu0
      %1611 = vdwg.mxu0
      %v1613 = vsel %vm1335, %v823, 0
      %v1616 = vsel %vm1335, %v1514, 0
      %1618 = vmatprep.subr.bf16.mxu0 0
      %1619 = vmatpush1.bf16.xpose.msra.mxu0 0
      %1620 = vmatprep.subr.bf16.mxu0 0
      %1621 = vmatpush1.bf16.xpose.msra.mxu0 0
      %1622 = vmatprep.subr.bf16.mxu0 0
      %1623 = vmatpush1.bf16.xpose.msra.mxu0 0
      %1624 = vmatprep.subr.bf16.mxu0 0
      %1625 = vmatpush1.bf16.xpose.msra.mxu0 0
      %1626 = vmatprep.subr.bf16.mxu0 0
      %1627 = vmatpush1.bf16.xpose.msra.mxu0 0
      %1628 = vmatprep.subr.bf16.mxu0 0
      %1629 = vmatpush1.bf16.xpose.msra.mxu0 0
      %1630 = vmatprep.subr.bf16.mxu0 0
      %1631 = vmatpush1.bf16.xpose.msra.mxu0 0
      %1632 = vmatprep.subr.bf16.mxu0 0
      %1633 = vmatpush1.bf16.xpose.msra.mxu0 %v1616
      %1634 = vmatprep.subr.bf16.mxu0 0
      %1635 = vmatpush2.bf16.xpose.msra.mxu0 0
      %1636 = vmatprep.subr.bf16.mxu0 0
      %1637 = vmatpush2.bf16.xpose.msra.mxu0 0
      %1638 = vmatprep.subr.bf16.mxu0 0
      %1639 = vmatpush2.bf16.xpose.msra.mxu0 0
      %1640 = vmatprep.subr.bf16.mxu0 0
      %1641 = vmatpush2.bf16.xpose.msra.mxu0 0
      %1642 = vmatprep.subr.bf16.mxu0 0
      %1643 = vmatpush2.bf16.xpose.msra.mxu0 0
      %1644 = vmatprep.subr.bf16.mxu0 0
      %1645 = vmatpush2.bf16.xpose.msra.mxu0 0
      %1646 = vmatprep.subr.bf16.mxu0 0
      %1647 = vmatpush2.bf16.xpose.msra.mxu0 0
      %1648 = vmatprep.subr.bf16.mxu0 0
      %1649 = vmatpush2.bf16.xpose.msra.mxu0 0
      %1650 = vmatprep.mubr.bf16.mxu0 0
      %1651 = vmatmul.mubr.bf16.gmra.mxu0 %v1613
      %v1652 = vpop.f32.mrf.mxu0
      %v1653 = vadd.f32 0.0, %v1652
      %v1654 = vpop.f32.mrf.mxu0
      %v1655 = vpop.f32.mrf.mxu0
      %v1656 = vpop.f32.mrf.mxu0
      %1657 = vdwg.mxu0
      %v1659 = vsel %vm1335, %v824, 0
      %v1662 = vsel %vm1335, %v1515, 0
      %1664 = vmatprep.subr.bf16.mxu0 0
      %1665 = vmatpush1.bf16.xpose.msra.mxu0 0
      %1666 = vmatprep.subr.bf16.mxu0 0
      %1667 = vmatpush1.bf16.xpose.msra.mxu0 0
      %1668 = vmatprep.subr.bf16.mxu0 0
      %1669 = vmatpush1.bf16.xpose.msra.mxu0 0
      %1670 = vmatprep.subr.bf16.mxu0 0
      %1671 = vmatpush1.bf16.xpose.msra.mxu0 0
      %1672 = vmatprep.subr.bf16.mxu0 0
      %1673 = vmatpush1.bf16.xpose.msra.mxu0 0
      %1674 = vmatprep.subr.bf16.mxu0 0
      %1675 = vmatpush1.bf16.xpose.msra.mxu0 0
      %1676 = vmatprep.subr.bf16.mxu0 0
      %1677 = vmatpush1.bf16.xpose.msra.mxu0 0
      %1678 = vmatprep.subr.bf16.mxu0 0
      %1679 = vmatpush1.bf16.xpose.msra.mxu0 %v1662
      %1680 = vmatprep.subr.bf16.mxu0 0
      %1681 = vmatpush2.bf16.xpose.msra.mxu0 0
      %1682 = vmatprep.subr.bf16.mxu0 0
      %1683 = vmatpush2.bf16.xpose.msra.mxu0 0
      %1684 = vmatprep.subr.bf16.mxu0 0
      %1685 = vmatpush2.bf16.xpose.msra.mxu0 0
      %1686 = vmatprep.subr.bf16.mxu0 0
      %1687 = vmatpush2.bf16.xpose.msra.mxu0 0
      %1688 = vmatprep.subr.bf16.mxu0 0
      %1689 = vmatpush2.bf16.xpose.msra.mxu0 0
      %1690 = vmatprep.subr.bf16.mxu0 0
      %1691 = vmatpush2.bf16.xpose.msra.mxu0 0
      %1692 = vmatprep.subr.bf16.mxu0 0
      %1693 = vmatpush2.bf16.xpose.msra.mxu0 0
      %1694 = vmatprep.subr.bf16.mxu0 0
      %1695 = vmatpush2.bf16.xpose.msra.mxu0 0
      %1696 = vmatprep.mubr.bf16.mxu0 0
      %1697 = vmatmul.mubr.bf16.gmra.mxu0 %v1659
      %v1698 = vpop.f32.mrf.mxu0
      %v1699 = vadd.f32 0.0, %v1698
      %v1700 = vpop.f32.mrf.mxu0
      %v1701 = vpop.f32.mrf.mxu0
      %v1702 = vpop.f32.mrf.mxu0
      %1703 = vdwg.mxu0
      %v1705 = vsel %vm1335, %v825, 0
      %v1708 = vsel %vm1335, %v1516, 0
      %1710 = vmatprep.subr.bf16.mxu0 0
      %1711 = vmatpush1.bf16.xpose.msra.mxu0 0
      %1712 = vmatprep.subr.bf16.mxu0 0
      %1713 = vmatpush1.bf16.xpose.msra.mxu0 0
      %1714 = vmatprep.subr.bf16.mxu0 0
      %1715 = vmatpush1.bf16.xpose.msra.mxu0 0
      %1716 = vmatprep.subr.bf16.mxu0 0
      %1717 = vmatpush1.bf16.xpose.msra.mxu0 0
      %1718 = vmatprep.subr.bf16.mxu0 0
      %1719 = vmatpush1.bf16.xpose.msra.mxu0 0
      %1720 = vmatprep.subr.bf16.mxu0 0
      %1721 = vmatpush1.bf16.xpose.msra.mxu0 0
      %1722 = vmatprep.subr.bf16.mxu0 0
      %1723 = vmatpush1.bf16.xpose.msra.mxu0 0
      %1724 = vmatprep.subr.bf16.mxu0 0
      %1725 = vmatpush1.bf16.xpose.msra.mxu0 %v1708
      %1726 = vmatprep.subr.bf16.mxu0 0
      %1727 = vmatpush2.bf16.xpose.msra.mxu0 0
      %1728 = vmatprep.subr.bf16.mxu0 0
      %1729 = vmatpush2.bf16.xpose.msra.mxu0 0
      %1730 = vmatprep.subr.bf16.mxu0 0
      %1731 = vmatpush2.bf16.xpose.msra.mxu0 0
      %1732 = vmatprep.subr.bf16.mxu0 0
      %1733 = vmatpush2.bf16.xpose.msra.mxu0 0
      %1734 = vmatprep.subr.bf16.mxu0 0
      %1735 = vmatpush2.bf16.xpose.msra.mxu0 0
      %1736 = vmatprep.subr.bf16.mxu0 0
      %1737 = vmatpush2.bf16.xpose.msra.mxu0 0
      %1738 = vmatprep.subr.bf16.mxu0 0
      %1739 = vmatpush2.bf16.xpose.msra.mxu0 0
      %1740 = vmatprep.subr.bf16.mxu0 0
      %1741 = vmatpush2.bf16.xpose.msra.mxu0 0
      %1742 = vmatprep.mubr.bf16.mxu0 0
      %1743 = vmatmul.mubr.bf16.gmra.mxu0 %v1705
      %v1744 = vpop.f32.mrf.mxu0
      %v1745 = vadd.f32 0.0, %v1744
      %v1746 = vpop.f32.mrf.mxu0
      %v1747 = vpop.f32.mrf.mxu0
      %v1748 = vpop.f32.mrf.mxu0
      %1749 = vdwg.mxu0
      %v1751 = vsel %vm1335, %v826, 0
      %v1754 = vsel %vm1335, %v1517, 0
      %1756 = vmatprep.subr.bf16.mxu0 0
      %1757 = vmatpush1.bf16.xpose.msra.mxu0 0
      %1758 = vmatprep.subr.bf16.mxu0 0
      %1759 = vmatpush1.bf16.xpose.msra.mxu0 0
      %1760 = vmatprep.subr.bf16.mxu0 0
      %1761 = vmatpush1.bf16.xpose.msra.mxu0 0
      %1762 = vmatprep.subr.bf16.mxu0 0
      %1763 = vmatpush1.bf16.xpose.msra.mxu0 0
      %1764 = vmatprep.subr.bf16.mxu0 0
      %1765 = vmatpush1.bf16.xpose.msra.mxu0 0
      %1766 = vmatprep.subr.bf16.mxu0 0
      %1767 = vmatpush1.bf16.xpose.msra.mxu0 0
      %1768 = vmatprep.subr.bf16.mxu0 0
      %1769 = vmatpush1.bf16.xpose.msra.mxu0 0
      %1770 = vmatprep.subr.bf16.mxu0 0
      %1771 = vmatpush1.bf16.xpose.msra.mxu0 %v1754
      %1772 = vmatprep.subr.bf16.mxu0 0
      %1773 = vmatpush2.bf16.xpose.msra.mxu0 0
      %1774 = vmatprep.subr.bf16.mxu0 0
      %1775 = vmatpush2.bf16.xpose.msra.mxu0 0
      %1776 = vmatprep.subr.bf16.mxu0 0
      %1777 = vmatpush2.bf16.xpose.msra.mxu0 0
      %1778 = vmatprep.subr.bf16.mxu0 0
      %1779 = vmatpush2.bf16.xpose.msra.mxu0 0
      %1780 = vmatprep.subr.bf16.mxu0 0
      %1781 = vmatpush2.bf16.xpose.msra.mxu0 0
      %1782 = vmatprep.subr.bf16.mxu0 0
      %1783 = vmatpush2.bf16.xpose.msra.mxu0 0
      %1784 = vmatprep.subr.bf16.mxu0 0
      %1785 = vmatpush2.bf16.xpose.msra.mxu0 0
      %1786 = vmatprep.subr.bf16.mxu0 0
      %1787 = vmatpush2.bf16.xpose.msra.mxu0 0
      %1788 = vmatprep.mubr.bf16.mxu0 0
      %1789 = vmatmul.mubr.bf16.gmra.mxu0 %v1751
      %v1790 = vpop.f32.mrf.mxu0
      %v1791 = vadd.f32 0.0, %v1790
      %v1792 = vpop.f32.mrf.mxu0
      %v1793 = vpop.f32.mrf.mxu0
      %v1794 = vpop.f32.mrf.mxu0
      %1795 = vdwg.mxu0
      %v1797 = vsel %vm1335, %v827, 0
      %v1800 = vsel %vm1335, %v1518, 0
      %1802 = vmatprep.subr.bf16.mxu0 0
      %1803 = vmatpush1.bf16.xpose.msra.mxu0 0
      %1804 = vmatprep.subr.bf16.mxu0 0
      %1805 = vmatpush1.bf16.xpose.msra.mxu0 0
      %1806 = vmatprep.subr.bf16.mxu0 0
      %1807 = vmatpush1.bf16.xpose.msra.mxu0 0
      %1808 = vmatprep.subr.bf16.mxu0 0
      %1809 = vmatpush1.bf16.xpose.msra.mxu0 0
      %1810 = vmatprep.subr.bf16.mxu0 0
      %1811 = vmatpush1.bf16.xpose.msra.mxu0 0
      %1812 = vmatprep.subr.bf16.mxu0 0
      %1813 = vmatpush1.bf16.xpose.msra.mxu0 0
      %1814 = vmatprep.subr.bf16.mxu0 0
      %1815 = vmatpush1.bf16.xpose.msra.mxu0 0
      %1816 = vmatprep.subr.bf16.mxu0 0
      %1817 = vmatpush1.bf16.xpose.msra.mxu0 %v1800
      %1818 = vmatprep.subr.bf16.mxu0 0
      %1819 = vmatpush2.bf16.xpose.msra.mxu0 0
      %1820 = vmatprep.subr.bf16.mxu0 0
      %1821 = vmatpush2.bf16.xpose.msra.mxu0 0
      %1822 = vmatprep.subr.bf16.mxu0 0
      %1823 = vmatpush2.bf16.xpose.msra.mxu0 0
      %1824 = vmatprep.subr.bf16.mxu0 0
      %1825 = vmatpush2.bf16.xpose.msra.mxu0 0
      %1826 = vmatprep.subr.bf16.mxu0 0
      %1827 = vmatpush2.bf16.xpose.msra.mxu0 0
      %1828 = vmatprep.subr.bf16.mxu0 0
      %1829 = vmatpush2.bf16.xpose.msra.mxu0 0
      %1830 = vmatprep.subr.bf16.mxu0 0
      %1831 = vmatpush2.bf16.xpose.msra.mxu0 0
      %1832 = vmatprep.subr.bf16.mxu0 0
      %1833 = vmatpush2.bf16.xpose.msra.mxu0 0
      %1834 = vmatprep.mubr.bf16.mxu0 0
      %1835 = vmatmul.mubr.bf16.gmra.mxu0 %v1797
      %v1836 = vpop.f32.mrf.mxu0
      %v1837 = vadd.f32 0.0, %v1836
      %v1838 = vpop.f32.mrf.mxu0
      %v1839 = vpop.f32.mrf.mxu0
      %v1840 = vpop.f32.mrf.mxu0
      %1841 = vdwg.mxu0
      %v1843 = vsel %vm1335, %v828, 0
      %v1846 = vsel %vm1335, %v1519, 0
      %1848 = vmatprep.subr.bf16.mxu0 0
      %1849 = vmatpush1.bf16.xpose.msra.mxu0 0
      %1850 = vmatprep.subr.bf16.mxu0 0
      %1851 = vmatpush1.bf16.xpose.msra.mxu0 0
      %1852 = vmatprep.subr.bf16.mxu0 0
      %1853 = vmatpush1.bf16.xpose.msra.mxu0 0
      %1854 = vmatprep.subr.bf16.mxu0 0
      %1855 = vmatpush1.bf16.xpose.msra.mxu0 0
      %1856 = vmatprep.subr.bf16.mxu0 0
      %1857 = vmatpush1.bf16.xpose.msra.mxu0 0
      %1858 = vmatprep.subr.bf16.mxu0 0
      %1859 = vmatpush1.bf16.xpose.msra.mxu0 0
      %1860 = vmatprep.subr.bf16.mxu0 0
      %1861 = vmatpush1.bf16.xpose.msra.mxu0 0
      %1862 = vmatprep.subr.bf16.mxu0 0
      %1863 = vmatpush1.bf16.xpose.msra.mxu0 %v1846
      %1864 = vmatprep.subr.bf16.mxu0 0
      %1865 = vmatpush2.bf16.xpose.msra.mxu0 0
      %1866 = vmatprep.subr.bf16.mxu0 0
      %1867 = vmatpush2.bf16.xpose.msra.mxu0 0
      %1868 = vmatprep.subr.bf16.mxu0 0
      %1869 = vmatpush2.bf16.xpose.msra.mxu0 0
      %1870 = vmatprep.subr.bf16.mxu0 0
      %1871 = vmatpush2.bf16.xpose.msra.mxu0 0
      %1872 = vmatprep.subr.bf16.mxu0 0
      %1873 = vmatpush2.bf16.xpose.msra.mxu0 0
      %1874 = vmatprep.subr.bf16.mxu0 0
      %1875 = vmatpush2.bf16.xpose.msra.mxu0 0
      %1876 = vmatprep.subr.bf16.mxu0 0
      %1877 = vmatpush2.bf16.xpose.msra.mxu0 0
      %1878 = vmatprep.subr.bf16.mxu0 0
      %1879 = vmatpush2.bf16.xpose.msra.mxu0 0
      %1880 = vmatprep.mubr.bf16.mxu0 0
      %1881 = vmatmul.mubr.bf16.gmra.mxu0 %v1843
      %v1882 = vpop.f32.mrf.mxu0
      %v1883 = vadd.f32 0.0, %v1882
      %v1884 = vpop.f32.mrf.mxu0
      %v1885 = vpop.f32.mrf.mxu0
      %v1886 = vpop.f32.mrf.mxu0
      %1887 = vdwg.mxu0
      %v1888 = vpack.c.bf16 %v1607, %v1561
      %v1889 = vpack.c.bf16 %v1699, %v1653
      %v1890 = vpack.c.bf16 %v1791, %v1745
      %v1891 = vpack.c.bf16 %v1883, %v1837
      %1893 = vset.pattern.permute.xlu0 0
      %1894 = vperm.xlu0 %1893, %v487
      %v1895 = vpop.permute.xlu0 %1894
      %1898 = vset.pattern.permute.xlu0 0
      %1899 = vperm.xlu0 %1898, %v488
      %v1900 = vpop.permute.xlu0 %1899
      %1903 = vset.pattern.permute.xlu0 0
      %1904 = vperm.xlu0 %1903, %v489
      %v1905 = vpop.permute.xlu0 %1904
      %1908 = vset.pattern.permute.xlu0 0
      %1909 = vperm.xlu0 %1908, %v490
      %v1910 = vpop.permute.xlu0 %1909
      %1913 = vset.pattern.permute.xlu0 0
      %1914 = vperm.xlu0 %1913, %v491
      %v1915 = vpop.permute.xlu0 %1914
      %1918 = vset.pattern.permute.xlu0 0
      %1919 = vperm.xlu0 %1918, %v492
      %v1920 = vpop.permute.xlu0 %1919
      %1923 = vset.pattern.permute.xlu0 0
      %1924 = vperm.xlu0 %1923, %v493
      %v1925 = vpop.permute.xlu0 %1924
      %1928 = vset.pattern.permute.xlu0 0
      %1929 = vperm.xlu0 %1928, %v494
      %v1930 = vpop.permute.xlu0 %1929
      %v1940 = vunpack.c.l.b16 %v439
      %v1941 = vunpack.c.l.b16 %v440
      %v1942 = vunpack.c.l.b16 %v441
      %v1943 = vunpack.c.l.b16 %v442
      %v1944 = vunpack.c.l.b16 %v443
      %v1945 = vunpack.c.l.b16 %v444
      %v1946 = vunpack.c.l.b16 %v445
      %v1947 = vunpack.c.l.b16 %v446
      %v1948 = vpack.c.b16 %v1941, %v1940
      %v1949 = vpack.c.b16 %v1943, %v1942
      %v1950 = vpack.c.b16 %v1945, %v1944
      %v1951 = vpack.c.b16 %v1947, %v1946
      %v1953 = vsel %vm639, %v1948, 0
      %v1956 = vsel %vm639, %v1949, 0
      %v1959 = vsel %vm639, %v1950, 0
      %v1962 = vsel %vm639, %v1951, 0
      %1964 = vmatprep.subr.bf16.mxu0 0
      %1965 = vmatpush1.bf16.msra.mxu0 0
      %1966 = vmatprep.subr.bf16.mxu0 0
      %1967 = vmatpush1.bf16.msra.mxu0 0
      %1968 = vmatprep.subr.bf16.mxu0 0
      %1969 = vmatpush1.bf16.msra.mxu0 0
      %1970 = vmatprep.subr.bf16.mxu0 0
      %1971 = vmatpush1.bf16.msra.mxu0 0
      %1972 = vmatprep.subr.bf16.mxu0 0
      %1973 = vmatpush1.bf16.msra.mxu0 %v1891
      %1974 = vmatprep.subr.bf16.mxu0 0
      %1975 = vmatpush1.bf16.msra.mxu0 %v1890
      %1976 = vmatprep.subr.bf16.mxu0 0
      %1977 = vmatpush1.bf16.msra.mxu0 %v1889
      %1978 = vmatprep.subr.bf16.mxu0 0
      %1979 = vmatpush1.bf16.msra.mxu0 %v1888
      %1980 = vmatprep.subr.bf16.mxu0 0
      %1981 = vmatpush2.bf16.msra.mxu0 0
      %1982 = vmatprep.subr.bf16.mxu0 0
      %1983 = vmatpush2.bf16.msra.mxu0 0
      %1984 = vmatprep.subr.bf16.mxu0 0
      %1985 = vmatpush2.bf16.msra.mxu0 0
      %1986 = vmatprep.subr.bf16.mxu0 0
      %1987 = vmatpush2.bf16.msra.mxu0 0
      %1988 = vmatprep.subr.bf16.mxu0 0
      %1989 = vmatpush2.bf16.msra.mxu0 0
      %1990 = vmatprep.subr.bf16.mxu0 0
      %1991 = vmatpush2.bf16.msra.mxu0 0
      %1992 = vmatprep.subr.bf16.mxu0 0
      %1993 = vmatpush2.bf16.msra.mxu0 0
      %1994 = vmatprep.subr.bf16.mxu0 0
      %1995 = vmatpush2.bf16.msra.mxu0 0
      %1996 = vmatprep.mubr.bf16.mxu0 0
      %1997 = vmatmul.mubr.bf16.gmra.mxu0 %v1953
      %v1998 = vpop.f32.mrf.mxu0
      %v1999 = vadd.f32 %v1895, %v1998
      %v2000 = vpop.f32.mrf.mxu0
      %v2001 = vpop.f32.mrf.mxu0
      %v2002 = vadd.f32 %v1900, %v2001
      %v2003 = vpop.f32.mrf.mxu0
      %2004 = vmatprep.mubr.bf16.mxu0 0
      %2005 = vmatmul.mubr.bf16.gmra.mxu0 %v1956
      %v2006 = vpop.f32.mrf.mxu0
      %v2007 = vadd.f32 %v1905, %v2006
      %v2008 = vpop.f32.mrf.mxu0
      %v2009 = vpop.f32.mrf.mxu0
      %v2010 = vadd.f32 %v1910, %v2009
      %v2011 = vpop.f32.mrf.mxu0
      %2012 = vmatprep.mubr.bf16.mxu0 0
      %2013 = vmatmul.mubr.bf16.gmra.mxu0 %v1959
      %v2014 = vpop.f32.mrf.mxu0
      %v2015 = vadd.f32 %v1915, %v2014
      %v2016 = vpop.f32.mrf.mxu0
      %v2017 = vpop.f32.mrf.mxu0
      %v2018 = vadd.f32 %v1920, %v2017
      %v2019 = vpop.f32.mrf.mxu0
      %2020 = vmatprep.mubr.bf16.mxu0 0
      %2021 = vmatmul.mubr.bf16.gmra.mxu0 %v1962
      %v2022 = vpop.f32.mrf.mxu0
      %v2023 = vadd.f32 %v1925, %v2022
      %v2024 = vpop.f32.mrf.mxu0
      %v2025 = vpop.f32.mrf.mxu0
      %v2026 = vadd.f32 %v1930, %v2025
      %v2027 = vpop.f32.mrf.mxu0
      %2028 = vdwg.mxu0
      %v2029 = vadd.f32 %v567, %v1999
      %v2030 = vadd.f32 %v568, %v2002
      %v2031 = vadd.f32 %v569, %v2007
      %v2032 = vadd.f32 %v570, %v2010
      %v2033 = vadd.f32 %v571, %v2015
      %v2034 = vadd.f32 %v572, %v2018
      %v2035 = vadd.f32 %v573, %v2023
      %v2036 = vadd.f32 %v574, %v2026
      %v2037 = vsel %vm1335, %v2029, 0.0
      %v2038 = vsel %vm1335, %v2030, 0.0
      %v2039 = vadd.f32 %v2037, %v2038
      %v2040 = vsel %vm1335, %v2031, 0.0
      %v2041 = vadd.f32 %v2039, %v2040
      %v2042 = vsel %vm1335, %v2032, 0.0
      %v2043 = vadd.f32 %v2041, %v2042
      %v2044 = vsel %vm1335, %v2033, 0.0
      %v2045 = vadd.f32 %v2043, %v2044
      %v2046 = vsel %vm1335, %v2034, 0.0
      %v2047 = vadd.f32 %v2045, %v2046
      %v2048 = vsel %vm1335, %v2035, 0.0
      %v2049 = vadd.f32 %v2047, %v2048
      %v2050 = vsel %vm1335, %v2036, 0.0
      %v2051 = vadd.f32 %v2049, %v2050
      %v2052 = vrot.slane %v2051, 4
      %v2053 = vadd.f32 %v2051, %v2052
      %v2054 = vrot.slane %v2053, 2
      %v2055 = vadd.f32 %v2053, %v2054
      %v2056 = vrot.slane %v2055, 1
      %v2057 = vadd.f32 %v2055, %v2056
      %v2058 = vrcp.pop 64.0
      %v2059 = vmul.f32 %v2057, %v2058
      %v2060 = vsub.f32 %v2029, %v2059
      %v2061 = vsub.f32 %v2030, %v2059
      %v2062 = vsub.f32 %v2031, %v2059
      %v2063 = vsub.f32 %v2032, %v2059
      %v2064 = vsub.f32 %v2033, %v2059
      %v2065 = vsub.f32 %v2034, %v2059
      %v2066 = vsub.f32 %v2035, %v2059
      %v2067 = vsub.f32 %v2036, %v2059
      %v2068 = vmul.f32 %v2060, %v2060
      %v2069 = vmul.f32 %v2061, %v2061
      %v2070 = vmul.f32 %v2062, %v2062
      %v2071 = vmul.f32 %v2063, %v2063
      %v2072 = vmul.f32 %v2064, %v2064
      %v2073 = vmul.f32 %v2065, %v2065
      %v2074 = vmul.f32 %v2066, %v2066
      %v2075 = vmul.f32 %v2067, %v2067
      %v2076 = vsel %vm1335, %v2068, 0.0
      %v2077 = vsel %vm1335, %v2069, 0.0
      %v2078 = vadd.f32 %v2076, %v2077
      %v2079 = vsel %vm1335, %v2070, 0.0
      %v2080 = vadd.f32 %v2078, %v2079
      %v2081 = vsel %vm1335, %v2071, 0.0
      %v2082 = vadd.f32 %v2080, %v2081
      %v2083 = vsel %vm1335, %v2072, 0.0
      %v2084 = vadd.f32 %v2082, %v2083
      %v2085 = vsel %vm1335, %v2073, 0.0
      %v2086 = vadd.f32 %v2084, %v2085
      %v2087 = vsel %vm1335, %v2074, 0.0
      %v2088 = vadd.f32 %v2086, %v2087
      %v2089 = vsel %vm1335, %v2075, 0.0
      %v2090 = vadd.f32 %v2088, %v2089
      %v2091 = vrot.slane %v2090, 4
      %v2092 = vadd.f32 %v2090, %v2091
      %v2093 = vrot.slane %v2092, 2
      %v2094 = vadd.f32 %v2092, %v2093
      %v2095 = vrot.slane %v2094, 1
      %v2096 = vadd.f32 %v2094, %v2095
      %v2097 = vmul.f32 %v2096, %v2058
      %v2098 = vadd.f32 %v2097, 1e-05
      %v2099 = vrsqrt.pop %v2098
      %v2100 = vmul.f32 %v2060, %v2099
      %v2101 = vmul.f32 %v2061, %v2099
      %v2102 = vmul.f32 %v2062, %v2099
      %v2103 = vmul.f32 %v2063, %v2099
      %v2104 = vmul.f32 %v2064, %v2099
      %v2105 = vmul.f32 %v2065, %v2099
      %v2106 = vmul.f32 %v2066, %v2099
      %v2107 = vmul.f32 %v2067, %v2099
      %2109 = vset.pattern.permute.xlu0 0
      %2110 = vperm.xlu0 %2109, %v535
      %v2111 = vpop.permute.xlu0 %2110
      %2114 = vset.pattern.permute.xlu0 0
      %2115 = vperm.xlu0 %2114, %v536
      %v2116 = vpop.permute.xlu0 %2115
      %2119 = vset.pattern.permute.xlu0 0
      %2120 = vperm.xlu0 %2119, %v537
      %v2121 = vpop.permute.xlu0 %2120
      %2124 = vset.pattern.permute.xlu0 0
      %2125 = vperm.xlu0 %2124, %v538
      %v2126 = vpop.permute.xlu0 %2125
      %2129 = vset.pattern.permute.xlu0 0
      %2130 = vperm.xlu0 %2129, %v539
      %v2131 = vpop.permute.xlu0 %2130
      %2134 = vset.pattern.permute.xlu0 0
      %2135 = vperm.xlu0 %2134, %v540
      %v2136 = vpop.permute.xlu0 %2135
      %2139 = vset.pattern.permute.xlu0 0
      %2140 = vperm.xlu0 %2139, %v541
      %v2141 = vpop.permute.xlu0 %2140
      %2144 = vset.pattern.permute.xlu0 0
      %2145 = vperm.xlu0 %2144, %v542
      %v2146 = vpop.permute.xlu0 %2145
      %v2148 = vmul.f32 %v2100, %v2111
      %v2149 = vmul.f32 %v2101, %v2116
      %v2150 = vmul.f32 %v2102, %v2121
      %v2151 = vmul.f32 %v2103, %v2126
      %v2152 = vmul.f32 %v2104, %v2131
      %v2153 = vmul.f32 %v2105, %v2136
      %v2154 = vmul.f32 %v2106, %v2141
      %v2155 = vmul.f32 %v2107, %v2146
      %2157 = vset.pattern.permute.xlu0 0
      %2158 = vperm.xlu0 %2157, %v543
      %v2159 = vpop.permute.xlu0 %2158
      %2162 = vset.pattern.permute.xlu0 0
      %2163 = vperm.xlu0 %2162, %v544
      %v2164 = vpop.permute.xlu0 %2163
      %2167 = vset.pattern.permute.xlu0 0
      %2168 = vperm.xlu0 %2167, %v545
      %v2169 = vpop.permute.xlu0 %2168
      %2172 = vset.pattern.permute.xlu0 0
      %2173 = vperm.xlu0 %2172, %v546
      %v2174 = vpop.permute.xlu0 %2173
      %2177 = vset.pattern.permute.xlu0 0
      %2178 = vperm.xlu0 %2177, %v547
      %v2179 = vpop.permute.xlu0 %2178
      %2182 = vset.pattern.permute.xlu0 0
      %2183 = vperm.xlu0 %2182, %v548
      %v2184 = vpop.permute.xlu0 %2183
      %2187 = vset.pattern.permute.xlu0 0
      %2188 = vperm.xlu0 %2187, %v549
      %v2189 = vpop.permute.xlu0 %2188
      %2192 = vset.pattern.permute.xlu0 0
      %2193 = vperm.xlu0 %2192, %v550
      %v2194 = vpop.permute.xlu0 %2193
      %v2196 = vadd.f32 %v2148, %v2159
      %v2197 = vadd.f32 %v2149, %v2164
      %v2198 = vadd.f32 %v2150, %v2169
      %v2199 = vadd.f32 %v2151, %v2174
      %v2200 = vadd.f32 %v2152, %v2179
      %v2201 = vadd.f32 %v2153, %v2184
      %v2202 = vadd.f32 %v2154, %v2189
      %v2203 = vadd.f32 %v2155, %v2194
      %v2204 = vpack.c.bf16 %v2197, %v2196
      %v2205 = vpack.c.bf16 %v2199, %v2198
      %v2206 = vpack.c.bf16 %v2201, %v2200
      %v2207 = vpack.c.bf16 %v2203, %v2202
      %2209 = vset.pattern.permute.xlu0 0
      %2210 = vperm.xlu0 %2209, %v495
      %v2211 = vpop.permute.xlu0 %2210
      %2214 = vset.pattern.permute.xlu0 0
      %2215 = vperm.xlu0 %2214, %v496
      %v2216 = vpop.permute.xlu0 %2215
      %2219 = vset.pattern.permute.xlu0 0
      %2220 = vperm.xlu0 %2219, %v497
      %v2221 = vpop.permute.xlu0 %2220
      %2224 = vset.pattern.permute.xlu0 0
      %2225 = vperm.xlu0 %2224, %v498
      %v2226 = vpop.permute.xlu0 %2225
      %2229 = vset.pattern.permute.xlu0 0
      %2230 = vperm.xlu0 %2229, %v499
      %v2231 = vpop.permute.xlu0 %2230
      %2234 = vset.pattern.permute.xlu0 0
      %2235 = vperm.xlu0 %2234, %v500
      %v2236 = vpop.permute.xlu0 %2235
      %2239 = vset.pattern.permute.xlu0 0
      %2240 = vperm.xlu0 %2239, %v501
      %v2241 = vpop.permute.xlu0 %2240
      %2244 = vset.pattern.permute.xlu0 0
      %2245 = vperm.xlu0 %2244, %v502
      %v2246 = vpop.permute.xlu0 %2245
      %2249 = vset.pattern.permute.xlu0 0
      %2250 = vperm.xlu0 %2249, %v503
      %v2251 = vpop.permute.xlu0 %2250
      %2254 = vset.pattern.permute.xlu0 0
      %2255 = vperm.xlu0 %2254, %v504
      %v2256 = vpop.permute.xlu0 %2255
      %2259 = vset.pattern.permute.xlu0 0
      %2260 = vperm.xlu0 %2259, %v505
      %v2261 = vpop.permute.xlu0 %2260
      %2264 = vset.pattern.permute.xlu0 0
      %2265 = vperm.xlu0 %2264, %v506
      %v2266 = vpop.permute.xlu0 %2265
      %2269 = vset.pattern.permute.xlu0 0
      %2270 = vperm.xlu0 %2269, %v507
      %v2271 = vpop.permute.xlu0 %2270
      %2274 = vset.pattern.permute.xlu0 0
      %2275 = vperm.xlu0 %2274, %v508
      %v2276 = vpop.permute.xlu0 %2275
      %2279 = vset.pattern.permute.xlu0 0
      %2280 = vperm.xlu0 %2279, %v509
      %v2281 = vpop.permute.xlu0 %2280
      %2284 = vset.pattern.permute.xlu0 0
      %2285 = vperm.xlu0 %2284, %v510
      %v2286 = vpop.permute.xlu0 %2285
      %2289 = vset.pattern.permute.xlu0 0
      %2290 = vperm.xlu0 %2289, %v511
      %v2291 = vpop.permute.xlu0 %2290
      %2294 = vset.pattern.permute.xlu0 0
      %2295 = vperm.xlu0 %2294, %v512
      %v2296 = vpop.permute.xlu0 %2295
      %2299 = vset.pattern.permute.xlu0 0
      %2300 = vperm.xlu0 %2299, %v513
      %v2301 = vpop.permute.xlu0 %2300
      %2304 = vset.pattern.permute.xlu0 0
      %2305 = vperm.xlu0 %2304, %v514
      %v2306 = vpop.permute.xlu0 %2305
      %2309 = vset.pattern.permute.xlu0 0
      %2310 = vperm.xlu0 %2309, %v515
      %v2311 = vpop.permute.xlu0 %2310
      %2314 = vset.pattern.permute.xlu0 0
      %2315 = vperm.xlu0 %2314, %v516
      %v2316 = vpop.permute.xlu0 %2315
      %2319 = vset.pattern.permute.xlu0 0
      %2320 = vperm.xlu0 %2319, %v517
      %v2321 = vpop.permute.xlu0 %2320
      %2324 = vset.pattern.permute.xlu0 0
      %2325 = vperm.xlu0 %2324, %v518
      %v2326 = vpop.permute.xlu0 %2325
      %2329 = vset.pattern.permute.xlu0 0
      %2330 = vperm.xlu0 %2329, %v519
      %v2331 = vpop.permute.xlu0 %2330
      %2334 = vset.pattern.permute.xlu0 0
      %2335 = vperm.xlu0 %2334, %v520
      %v2336 = vpop.permute.xlu0 %2335
      %2339 = vset.pattern.permute.xlu0 0
      %2340 = vperm.xlu0 %2339, %v521
      %v2341 = vpop.permute.xlu0 %2340
      %2344 = vset.pattern.permute.xlu0 0
      %2345 = vperm.xlu0 %2344, %v522
      %v2346 = vpop.permute.xlu0 %2345
      %2349 = vset.pattern.permute.xlu0 0
      %2350 = vperm.xlu0 %2349, %v523
      %v2351 = vpop.permute.xlu0 %2350
      %2354 = vset.pattern.permute.xlu0 0
      %2355 = vperm.xlu0 %2354, %v524
      %v2356 = vpop.permute.xlu0 %2355
      %2359 = vset.pattern.permute.xlu0 0
      %2360 = vperm.xlu0 %2359, %v525
      %v2361 = vpop.permute.xlu0 %2360
      %2364 = vset.pattern.permute.xlu0 0
      %2365 = vperm.xlu0 %2364, %v526
      %v2366 = vpop.permute.xlu0 %2365
      %v2400 = vunpack.c.l.b16 %v447
      %v2401 = vunpack.c.l.b16 %v448
      %v2402 = vunpack.c.l.b16 %v449
      %v2403 = vunpack.c.l.b16 %v450
      %v2404 = vunpack.c.l.b16 %v451
      %v2405 = vunpack.c.l.b16 %v452
      %v2406 = vunpack.c.l.b16 %v453
      %v2407 = vunpack.c.l.b16 %v454
      %v2408 = vunpack.c.l.b16 %v455
      %v2409 = vunpack.c.l.b16 %v456
      %v2410 = vunpack.c.l.b16 %v457
      %v2411 = vunpack.c.l.b16 %v458
      %v2412 = vunpack.c.l.b16 %v459
      %v2413 = vunpack.c.l.b16 %v460
      %v2414 = vunpack.c.l.b16 %v461
      %v2415 = vunpack.c.l.b16 %v462
      %v2416 = vunpack.c.l.b16 %v463
      %v2417 = vunpack.c.l.b16 %v464
      %v2418 = vunpack.c.l.b16 %v465
      %v2419 = vunpack.c.l.b16 %v466
      %v2420 = vunpack.c.l.b16 %v467
      %v2421 = vunpack.c.l.b16 %v468
      %v2422 = vunpack.c.l.b16 %v469
      %v2423 = vunpack.c.l.b16 %v470
      %v2424 = vunpack.c.l.b16 %v471
      %v2425 = vunpack.c.l.b16 %v472
      %v2426 = vunpack.c.l.b16 %v473
      %v2427 = vunpack.c.l.b16 %v474
      %v2428 = vunpack.c.l.b16 %v475
      %v2429 = vunpack.c.l.b16 %v476
      %v2430 = vunpack.c.l.b16 %v477
      %v2431 = vunpack.c.l.b16 %v478
      %v2432 = vpack.c.b16 %v2401, %v2400
      %v2433 = vpack.c.b16 %v2403, %v2402
      %v2434 = vpack.c.b16 %v2405, %v2404
      %v2435 = vpack.c.b16 %v2407, %v2406
      %v2436 = vpack.c.b16 %v2409, %v2408
      %v2437 = vpack.c.b16 %v2411, %v2410
      %v2438 = vpack.c.b16 %v2413, %v2412
      %v2439 = vpack.c.b16 %v2415, %v2414
      %v2440 = vpack.c.b16 %v2417, %v2416
      %v2441 = vpack.c.b16 %v2419, %v2418
      %v2442 = vpack.c.b16 %v2421, %v2420
      %v2443 = vpack.c.b16 %v2423, %v2422
      %v2444 = vpack.c.b16 %v2425, %v2424
      %v2445 = vpack.c.b16 %v2427, %v2426
      %v2446 = vpack.c.b16 %v2429, %v2428
      %v2447 = vpack.c.b16 %v2431, %v2430
      %v2449 = vsel %vm639, %v2432, 0
      %v2452 = vsel %vm639, %v2433, 0
      %v2455 = vsel %vm639, %v2434, 0
      %v2458 = vsel %vm639, %v2435, 0
      %v2461 = vsel %vm639, %v2436, 0
      %v2464 = vsel %vm639, %v2437, 0
      %v2467 = vsel %vm639, %v2438, 0
      %v2470 = vsel %vm639, %v2439, 0
      %v2473 = vsel %vm639, %v2440, 0
      %v2476 = vsel %vm639, %v2441, 0
      %v2479 = vsel %vm639, %v2442, 0
      %v2482 = vsel %vm639, %v2443, 0
      %v2485 = vsel %vm639, %v2444, 0
      %v2488 = vsel %vm639, %v2445, 0
      %v2491 = vsel %vm639, %v2446, 0
      %v2494 = vsel %vm639, %v2447, 0
      %2496 = vmatprep.subr.bf16.mxu0 0
      %2497 = vmatpush1.bf16.msra.mxu0 0
      %2498 = vmatprep.subr.bf16.mxu0 0
      %2499 = vmatpush1.bf16.msra.mxu0 0
      %2500 = vmatprep.subr.bf16.mxu0 0
      %2501 = vmatpush1.bf16.msra.mxu0 0
      %2502 = vmatprep.subr.bf16.mxu0 0
      %2503 = vmatpush1.bf16.msra.mxu0 0
      %2504 = vmatprep.subr.bf16.mxu0 0
      %2505 = vmatpush1.bf16.msra.mxu0 %v2207
      %2506 = vmatprep.subr.bf16.mxu0 0
      %2507 = vmatpush1.bf16.msra.mxu0 %v2206
      %2508 = vmatprep.subr.bf16.mxu0 0
      %2509 = vmatpush1.bf16.msra.mxu0 %v2205
      %2510 = vmatprep.subr.bf16.mxu0 0
      %2511 = vmatpush1.bf16.msra.mxu0 %v2204
      %2512 = vmatprep.subr.bf16.mxu0 0
      %2513 = vmatpush2.bf16.msra.mxu0 0
      %2514 = vmatprep.subr.bf16.mxu0 0
      %2515 = vmatpush2.bf16.msra.mxu0 0
      %2516 = vmatprep.subr.bf16.mxu0 0
      %2517 = vmatpush2.bf16.msra.mxu0 0
      %2518 = vmatprep.subr.bf16.mxu0 0
      %2519 = vmatpush2.bf16.msra.mxu0 0
      %2520 = vmatprep.subr.bf16.mxu0 0
      %2521 = vmatpush2.bf16.msra.mxu0 0
      %2522 = vmatprep.subr.bf16.mxu0 0
      %2523 = vmatpush2.bf16.msra.mxu0 0
      %2524 = vmatprep.subr.bf16.mxu0 0
      %2525 = vmatpush2.bf16.msra.mxu0 0
      %2526 = vmatprep.subr.bf16.mxu0 0
      %2527 = vmatpush2.bf16.msra.mxu0 0
      %2528 = vmatprep.mubr.bf16.mxu0 0
      %2529 = vmatmul.mubr.bf16.gmra.mxu0 %v2449
      %v2530 = vpop.f32.mrf.mxu0
      %v2531 = vadd.f32 %v2211, %v2530
      %v2532 = vpop.f32.mrf.mxu0
      %v2533 = vpop.f32.mrf.mxu0
      %v2534 = vadd.f32 %v2216, %v2533
      %v2535 = vpop.f32.mrf.mxu0
      %2536 = vmatprep.mubr.bf16.mxu0 0
      %2537 = vmatmul.mubr.bf16.gmra.mxu0 %v2452
      %v2538 = vpop.f32.mrf.mxu0
      %v2539 = vadd.f32 %v2221, %v2538
      %v2540 = vpop.f32.mrf.mxu0
      %v2541 = vpop.f32.mrf.mxu0
      %v2542 = vadd.f32 %v2226, %v2541
      %v2543 = vpop.f32.mrf.mxu0
      %2544 = vmatprep.mubr.bf16.mxu0 0
      %2545 = vmatmul.mubr.bf16.gmra.mxu0 %v2455
      %v2546 = vpop.f32.mrf.mxu0
      %v2547 = vadd.f32 %v2231, %v2546
      %v2548 = vpop.f32.mrf.mxu0
      %v2549 = vpop.f32.mrf.mxu0
      %v2550 = vadd.f32 %v2236, %v2549
      %v2551 = vpop.f32.mrf.mxu0
      %2552 = vmatprep.mubr.bf16.mxu0 0
      %2553 = vmatmul.mubr.bf16.gmra.mxu0 %v2458
      %v2554 = vpop.f32.mrf.mxu0
      %v2555 = vadd.f32 %v2241, %v2554
      %v2556 = vpop.f32.mrf.mxu0
      %v2557 = vpop.f32.mrf.mxu0
      %v2558 = vadd.f32 %v2246, %v2557
      %v2559 = vpop.f32.mrf.mxu0
      %2560 = vmatprep.mubr.bf16.mxu0 0
      %2561 = vmatmul.mubr.bf16.gmra.mxu0 %v2461
      %v2562 = vpop.f32.mrf.mxu0
      %v2563 = vadd.f32 %v2251, %v2562
      %v2564 = vpop.f32.mrf.mxu0
      %v2565 = vpop.f32.mrf.mxu0
      %v2566 = vadd.f32 %v2256, %v2565
      %v2567 = vpop.f32.mrf.mxu0
      %2568 = vmatprep.mubr.bf16.mxu0 0
      %2569 = vmatmul.mubr.bf16.gmra.mxu0 %v2464
      %v2570 = vpop.f32.mrf.mxu0
      %v2571 = vadd.f32 %v2261, %v2570
      %v2572 = vpop.f32.mrf.mxu0
      %v2573 = vpop.f32.mrf.mxu0
      %v2574 = vadd.f32 %v2266, %v2573
      %v2575 = vpop.f32.mrf.mxu0
      %2576 = vmatprep.mubr.bf16.mxu0 0
      %2577 = vmatmul.mubr.bf16.gmra.mxu0 %v2467
      %v2578 = vpop.f32.mrf.mxu0
      %v2579 = vadd.f32 %v2271, %v2578
      %v2580 = vpop.f32.mrf.mxu0
      %v2581 = vpop.f32.mrf.mxu0
      %v2582 = vadd.f32 %v2276, %v2581
      %v2583 = vpop.f32.mrf.mxu0
      %2584 = vmatprep.mubr.bf16.mxu0 0
      %2585 = vmatmul.mubr.bf16.gmra.mxu0 %v2470
      %v2586 = vpop.f32.mrf.mxu0
      %v2587 = vadd.f32 %v2281, %v2586
      %v2588 = vpop.f32.mrf.mxu0
      %v2589 = vpop.f32.mrf.mxu0
      %v2590 = vadd.f32 %v2286, %v2589
      %v2591 = vpop.f32.mrf.mxu0
      %2592 = vmatprep.mubr.bf16.mxu0 0
      %2593 = vmatmul.mubr.bf16.gmra.mxu0 %v2473
      %v2594 = vpop.f32.mrf.mxu0
      %v2595 = vadd.f32 %v2291, %v2594
      %v2596 = vpop.f32.mrf.mxu0
      %v2597 = vpop.f32.mrf.mxu0
      %v2598 = vadd.f32 %v2296, %v2597
      %v2599 = vpop.f32.mrf.mxu0
      %2600 = vmatprep.mubr.bf16.mxu0 0
      %2601 = vmatmul.mubr.bf16.gmra.mxu0 %v2476
      %v2602 = vpop.f32.mrf.mxu0
      %v2603 = vadd.f32 %v2301, %v2602
      %v2604 = vpop.f32.mrf.mxu0
      %v2605 = vpop.f32.mrf.mxu0
      %v2606 = vadd.f32 %v2306, %v2605
      %v2607 = vpop.f32.mrf.mxu0
      %2608 = vmatprep.mubr.bf16.mxu0 0
      %2609 = vmatmul.mubr.bf16.gmra.mxu0 %v2479
      %v2610 = vpop.f32.mrf.mxu0
      %v2611 = vadd.f32 %v2311, %v2610
      %v2612 = vpop.f32.mrf.mxu0
      %v2613 = vpop.f32.mrf.mxu0
      %v2614 = vadd.f32 %v2316, %v2613
      %v2615 = vpop.f32.mrf.mxu0
      %2616 = vmatprep.mubr.bf16.mxu0 0
      %2617 = vmatmul.mubr.bf16.gmra.mxu0 %v2482
      %v2618 = vpop.f32.mrf.mxu0
      %v2619 = vadd.f32 %v2321, %v2618
      %v2620 = vpop.f32.mrf.mxu0
      %v2621 = vpop.f32.mrf.mxu0
      %v2622 = vadd.f32 %v2326, %v2621
      %v2623 = vpop.f32.mrf.mxu0
      %2624 = vmatprep.mubr.bf16.mxu0 0
      %2625 = vmatmul.mubr.bf16.gmra.mxu0 %v2485
      %v2626 = vpop.f32.mrf.mxu0
      %v2627 = vadd.f32 %v2331, %v2626
      %v2628 = vpop.f32.mrf.mxu0
      %v2629 = vpop.f32.mrf.mxu0
      %v2630 = vadd.f32 %v2336, %v2629
      %v2631 = vpop.f32.mrf.mxu0
      %2632 = vmatprep.mubr.bf16.mxu0 0
      %2633 = vmatmul.mubr.bf16.gmra.mxu0 %v2488
      %v2634 = vpop.f32.mrf.mxu0
      %v2635 = vadd.f32 %v2341, %v2634
      %v2636 = vpop.f32.mrf.mxu0
      %v2637 = vpop.f32.mrf.mxu0
      %v2638 = vadd.f32 %v2346, %v2637
      %v2639 = vpop.f32.mrf.mxu0
      %2640 = vmatprep.mubr.bf16.mxu0 0
      %2641 = vmatmul.mubr.bf16.gmra.mxu0 %v2491
      %v2642 = vpop.f32.mrf.mxu0
      %v2643 = vadd.f32 %v2351, %v2642
      %v2644 = vpop.f32.mrf.mxu0
      %v2645 = vpop.f32.mrf.mxu0
      %v2646 = vadd.f32 %v2356, %v2645
      %v2647 = vpop.f32.mrf.mxu0
      %2648 = vmatprep.mubr.bf16.mxu0 0
      %2649 = vmatmul.mubr.bf16.gmra.mxu0 %v2494
      %v2650 = vpop.f32.mrf.mxu0
      %v2651 = vadd.f32 %v2361, %v2650
      %v2652 = vpop.f32.mrf.mxu0
      %v2653 = vpop.f32.mrf.mxu0
      %v2654 = vadd.f32 %v2366, %v2653
      %v2655 = vpop.f32.mrf.mxu0
      %2656 = vdwg.mxu0
      %v2657 = vmul.f32 %v2531, 0.5
      %v2658 = vmul.f32 %v2534, 0.5
      %v2659 = vmul.f32 %v2539, 0.5
      %v2660 = vmul.f32 %v2542, 0.5
      %v2661 = vmul.f32 %v2547, 0.5
      %v2662 = vmul.f32 %v2550, 0.5
      %v2663 = vmul.f32 %v2555, 0.5
      %v2664 = vmul.f32 %v2558, 0.5
      %v2665 = vmul.f32 %v2563, 0.5
      %v2666 = vmul.f32 %v2566, 0.5
      %v2667 = vmul.f32 %v2571, 0.5
      %v2668 = vmul.f32 %v2574, 0.5
      %v2669 = vmul.f32 %v2579, 0.5
      %v2670 = vmul.f32 %v2582, 0.5
      %v2671 = vmul.f32 %v2587, 0.5
      %v2672 = vmul.f32 %v2590, 0.5
      %v2673 = vmul.f32 %v2595, 0.5
      %v2674 = vmul.f32 %v2598, 0.5
      %v2675 = vmul.f32 %v2603, 0.5
      %v2676 = vmul.f32 %v2606, 0.5
      %v2677 = vmul.f32 %v2611, 0.5
      %v2678 = vmul.f32 %v2614, 0.5
      %v2679 = vmul.f32 %v2619, 0.5
      %v2680 = vmul.f32 %v2622, 0.5
      %v2681 = vmul.f32 %v2627, 0.5
      %v2682 = vmul.f32 %v2630, 0.5
      %v2683 = vmul.f32 %v2635, 0.5
      %v2684 = vmul.f32 %v2638, 0.5
      %v2685 = vmul.f32 %v2643, 0.5
      %v2686 = vmul.f32 %v2646, 0.5
      %v2687 = vmul.f32 %v2651, 0.5
      %v2688 = vmul.f32 %v2654, 0.5
      %v2689 = vmul.f32 %v2531, 0.70710677
      %v2690 = vmul.f32 %v2534, 0.70710677
      %v2691 = vmul.f32 %v2539, 0.70710677
      %v2692 = vmul.f32 %v2542, 0.70710677
      %v2693 = vmul.f32 %v2547, 0.70710677
      %v2694 = vmul.f32 %v2550, 0.70710677
      %v2695 = vmul.f32 %v2555, 0.70710677
      %v2696 = vmul.f32 %v2558, 0.70710677
      %v2697 = vmul.f32 %v2563, 0.70710677
      %v2698 = vmul.f32 %v2566, 0.70710677
      %v2699 = vmul.f32 %v2571, 0.70710677
      %v2700 = vmul.f32 %v2574, 0.70710677
      %v2701 = vmul.f32 %v2579, 0.70710677
      %v2702 = vmul.f32 %v2582, 0.70710677
      %v2703 = vmul.f32 %v2587, 0.70710677
      %v2704 = vmul.f32 %v2590, 0.70710677
      %v2705 = vmul.f32 %v2595, 0.70710677
      %v2706 = vmul.f32 %v2598, 0.70710677
      %v2707 = vmul.f32 %v2603, 0.70710677
      %v2708 = vmul.f32 %v2606, 0.70710677
      %v2709 = vmul.f32 %v2611, 0.70710677
      %v2710 = vmul.f32 %v2614, 0.70710677
      %v2711 = vmul.f32 %v2619, 0.70710677
      %v2712 = vmul.f32 %v2622, 0.70710677
      %v2713 = vmul.f32 %v2627, 0.70710677
      %v2714 = vmul.f32 %v2630, 0.70710677
      %v2715 = vmul.f32 %v2635, 0.70710677
      %v2716 = vmul.f32 %v2638, 0.70710677
      %v2717 = vmul.f32 %v2643, 0.70710677
      %v2718 = vmul.f32 %v2646, 0.70710677
      %v2719 = vmul.f32 %v2651, 0.70710677
      %v2720 = vmul.f32 %v2654, 0.70710677
      %v2721 = verf.f32.pop %v2689
      %v2722 = verf.f32.pop %v2690
      %v2723 = verf.f32.pop %v2691
      %v2724 = verf.f32.pop %v2692
      %v2725 = verf.f32.pop %v2693
      %v2726 = verf.f32.pop %v2694
      %v2727 = verf.f32.pop %v2695
      %v2728 = verf.f32.pop %v2696
      %v2729 = verf.f32.pop %v2697
      %v2730 = verf.f32.pop %v2698
      %v2731 = verf.f32.pop %v2699
      %v2732 = verf.f32.pop %v2700
      %v2733 = verf.f32.pop %v2701
      %v2734 = verf.f32.pop %v2702
      %v2735 = verf.f32.pop %v2703
      %v2736 = verf.f32.pop %v2704
      %v2737 = verf.f32.pop %v2705
      %v2738 = verf.f32.pop %v2706
      %v2739 = verf.f32.pop %v2707
      %v2740 = verf.f32.pop %v2708
      %v2741 = verf.f32.pop %v2709
      %v2742 = verf.f32.pop %v2710
      %v2743 = verf.f32.pop %v2711
      %v2744 = verf.f32.pop %v2712
      %v2745 = verf.f32.pop %v2713
      %v2746 = verf.f32.pop %v2714
      %v2747 = verf.f32.pop %v2715
      %v2748 = verf.f32.pop %v2716
      %v2749 = verf.f32.pop %v2717
      %v2750 = verf.f32.pop %v2718
      %v2751 = verf.f32.pop %v2719
      %v2752 = verf.f32.pop %v2720
      %v2753 = vadd.f32 %v2721, 1.0
      %v2754 = vadd.f32 %v2722, 1.0
      %v2755 = vadd.f32 %v2723, 1.0
      %v2756 = vadd.f32 %v2724, 1.0
      %v2757 = vadd.f32 %v2725, 1.0
      %v2758 = vadd.f32 %v2726, 1.0
      %v2759 = vadd.f32 %v2727, 1.0
      %v2760 = vadd.f32 %v2728, 1.0
      %v2761 = vadd.f32 %v2729, 1.0
      %v2762 = vadd.f32 %v2730, 1.0
      %v2763 = vadd.f32 %v2731, 1.0
      %v2764 = vadd.f32 %v2732, 1.0
      %v2765 = vadd.f32 %v2733, 1.0
      %v2766 = vadd.f32 %v2734, 1.0
      %v2767 = vadd.f32 %v2735, 1.0
      %v2768 = vadd.f32 %v2736, 1.0
      %v2769 = vadd.f32 %v2737, 1.0
      %v2770 = vadd.f32 %v2738, 1.0
      %v2771 = vadd.f32 %v2739, 1.0
      %v2772 = vadd.f32 %v2740, 1.0
      %v2773 = vadd.f32 %v2741, 1.0
      %v2774 = vadd.f32 %v2742, 1.0
      %v2775 = vadd.f32 %v2743, 1.0
      %v2776 = vadd.f32 %v2744, 1.0
      %v2777 = vadd.f32 %v2745, 1.0
      %v2778 = vadd.f32 %v2746, 1.0
      %v2779 = vadd.f32 %v2747, 1.0
      %v2780 = vadd.f32 %v2748, 1.0
      %v2781 = vadd.f32 %v2749, 1.0
      %v2782 = vadd.f32 %v2750, 1.0
      %v2783 = vadd.f32 %v2751, 1.0
      %v2784 = vadd.f32 %v2752, 1.0
      %v2785 = vmul.f32 %v2657, %v2753
      %v2786 = vmul.f32 %v2658, %v2754
      %v2787 = vmul.f32 %v2659, %v2755
      %v2788 = vmul.f32 %v2660, %v2756
      %v2789 = vmul.f32 %v2661, %v2757
      %v2790 = vmul.f32 %v2662, %v2758
      %v2791 = vmul.f32 %v2663, %v2759
      %v2792 = vmul.f32 %v2664, %v2760
      %v2793 = vmul.f32 %v2665, %v2761
      %v2794 = vmul.f32 %v2666, %v2762
      %v2795 = vmul.f32 %v2667, %v2763
      %v2796 = vmul.f32 %v2668, %v2764
      %v2797 = vmul.f32 %v2669, %v2765
      %v2798 = vmul.f32 %v2670, %v2766
      %v2799 = vmul.f32 %v2671, %v2767
      %v2800 = vmul.f32 %v2672, %v2768
      %v2801 = vmul.f32 %v2673, %v2769
      %v2802 = vmul.f32 %v2674, %v2770
      %v2803 = vmul.f32 %v2675, %v2771
      %v2804 = vmul.f32 %v2676, %v2772
      %v2805 = vmul.f32 %v2677, %v2773
      %v2806 = vmul.f32 %v2678, %v2774
      %v2807 = vmul.f32 %v2679, %v2775
      %v2808 = vmul.f32 %v2680, %v2776
      %v2809 = vmul.f32 %v2681, %v2777
      %v2810 = vmul.f32 %v2682, %v2778
      %v2811 = vmul.f32 %v2683, %v2779
      %v2812 = vmul.f32 %v2684, %v2780
      %v2813 = vmul.f32 %v2685, %v2781
      %v2814 = vmul.f32 %v2686, %v2782
      %v2815 = vmul.f32 %v2687, %v2783
      %v2816 = vmul.f32 %v2688, %v2784
      %v2817 = vpack.c.bf16 %v2786, %v2785
      %v2818 = vpack.c.bf16 %v2788, %v2787
      %v2819 = vpack.c.bf16 %v2790, %v2789
      %v2820 = vpack.c.bf16 %v2792, %v2791
      %v2821 = vpack.c.bf16 %v2794, %v2793
      %v2822 = vpack.c.bf16 %v2796, %v2795
      %v2823 = vpack.c.bf16 %v2798, %v2797
      %v2824 = vpack.c.bf16 %v2800, %v2799
      %v2825 = vpack.c.bf16 %v2802, %v2801
      %v2826 = vpack.c.bf16 %v2804, %v2803
      %v2827 = vpack.c.bf16 %v2806, %v2805
      %v2828 = vpack.c.bf16 %v2808, %v2807
      %v2829 = vpack.c.bf16 %v2810, %v2809
      %v2830 = vpack.c.bf16 %v2812, %v2811
      %v2831 = vpack.c.bf16 %v2814, %v2813
      %v2832 = vpack.c.bf16 %v2816, %v2815
      %2834 = vset.pattern.permute.xlu0 0
      %2835 = vperm.xlu0 %2834, %v527
      %v2836 = vpop.permute.xlu0 %2835
      %2839 = vset.pattern.permute.xlu0 0
      %2840 = vperm.xlu0 %2839, %v528
      %v2841 = vpop.permute.xlu0 %2840
      %2844 = vset.pattern.permute.xlu0 0
      %2845 = vperm.xlu0 %2844, %v529
      %v2846 = vpop.permute.xlu0 %2845
      %2849 = vset.pattern.permute.xlu0 0
      %2850 = vperm.xlu0 %2849, %v530
      %v2851 = vpop.permute.xlu0 %2850
      %2854 = vset.pattern.permute.xlu0 0
      %2855 = vperm.xlu0 %2854, %v531
      %v2856 = vpop.permute.xlu0 %2855
      %2859 = vset.pattern.permute.xlu0 0
      %2860 = vperm.xlu0 %2859, %v532
      %v2861 = vpop.permute.xlu0 %2860
      %2864 = vset.pattern.permute.xlu0 0
      %2865 = vperm.xlu0 %2864, %v533
      %v2866 = vpop.permute.xlu0 %2865
      %2869 = vset.pattern.permute.xlu0 0
      %2870 = vperm.xlu0 %2869, %v534
      %v2871 = vpop.permute.xlu0 %2870
      %v2881 = vunpack.c.l.b16 %v479
      %v2882 = vunpack.c.h.b16 %v479
      %v2883 = vunpack.c.l.b16 %v480
      %v2884 = vunpack.c.h.b16 %v480
      %v2885 = vunpack.c.l.b16 %v481
      %v2886 = vunpack.c.h.b16 %v481
      %v2887 = vunpack.c.l.b16 %v482
      %v2888 = vunpack.c.h.b16 %v482
      %v2889 = vunpack.c.l.b16 %v483
      %v2890 = vunpack.c.h.b16 %v483
      %v2891 = vunpack.c.l.b16 %v484
      %v2892 = vunpack.c.h.b16 %v484
      %v2893 = vunpack.c.l.b16 %v485
      %v2894 = vunpack.c.h.b16 %v485
      %v2895 = vunpack.c.l.b16 %v486
      %v2896 = vunpack.c.h.b16 %v486
      %v2897 = vpack.c.b16 %v2883, %v2881
      %v2898 = vpack.c.b16 %v2884, %v2882
      %v2899 = vpack.c.b16 %v2887, %v2885
      %v2900 = vpack.c.b16 %v2888, %v2886
      %v2901 = vpack.c.b16 %v2891, %v2889
      %v2902 = vpack.c.b16 %v2892, %v2890
      %v2903 = vpack.c.b16 %v2895, %v2893
      %v2904 = vpack.c.b16 %v2896, %v2894
      %2913 = vmatprep.subr.bf16.mxu0 0
      %2914 = vmatpush1.bf16.msra.mxu0 %v2824
      %2915 = vmatprep.subr.bf16.mxu0 0
      %2916 = vmatpush1.bf16.msra.mxu0 %v2823
      %2917 = vmatprep.subr.bf16.mxu0 0
      %2918 = vmatpush1.bf16.msra.mxu0 %v2822
      %2919 = vmatprep.subr.bf16.mxu0 0
      %2920 = vmatpush1.bf16.msra.mxu0 %v2821
      %2921 = vmatprep.subr.bf16.mxu0 0
      %2922 = vmatpush1.bf16.msra.mxu0 %v2820
      %2923 = vmatprep.subr.bf16.mxu0 0
      %2924 = vmatpush1.bf16.msra.mxu0 %v2819
      %2925 = vmatprep.subr.bf16.mxu0 0
      %2926 = vmatpush1.bf16.msra.mxu0 %v2818
      %2927 = vmatprep.subr.bf16.mxu0 0
      %2928 = vmatpush1.bf16.msra.mxu0 %v2817
      %2929 = vmatprep.subr.bf16.mxu0 0
      %2930 = vmatpush2.bf16.msra.mxu0 %v2832
      %2931 = vmatprep.subr.bf16.mxu0 0
      %2932 = vmatpush2.bf16.msra.mxu0 %v2831
      %2933 = vmatprep.subr.bf16.mxu0 0
      %2934 = vmatpush2.bf16.msra.mxu0 %v2830
      %2935 = vmatprep.subr.bf16.mxu0 0
      %2936 = vmatpush2.bf16.msra.mxu0 %v2829
      %2937 = vmatprep.subr.bf16.mxu0 0
      %2938 = vmatpush2.bf16.msra.mxu0 %v2828
      %2939 = vmatprep.subr.bf16.mxu0 0
      %2940 = vmatpush2.bf16.msra.mxu0 %v2827
      %2941 = vmatprep.subr.bf16.mxu0 0
      %2942 = vmatpush2.bf16.msra.mxu0 %v2826
      %2943 = vmatprep.subr.bf16.mxu0 0
      %2944 = vmatpush2.bf16.msra.mxu0 %v2825
      %2945 = vmatprep.mubr.bf16.mxu0 %v2898
      %2946 = vmatmul.mubr.bf16.gmra.mxu0 %v2897
      %v2947 = vpop.f32.mrf.mxu0
      %v2948 = vadd.f32 %v2836, %v2947
      %v2949 = vpop.f32.mrf.mxu0
      %v2950 = vpop.f32.mrf.mxu0
      %v2951 = vadd.f32 %v2841, %v2950
      %v2952 = vpop.f32.mrf.mxu0
      %2953 = vmatprep.mubr.bf16.mxu0 %v2900
      %2954 = vmatmul.mubr.bf16.gmra.mxu0 %v2899
      %v2955 = vpop.f32.mrf.mxu0
      %v2956 = vadd.f32 %v2846, %v2955
      %v2957 = vpop.f32.mrf.mxu0
      %v2958 = vpop.f32.mrf.mxu0
      %v2959 = vadd.f32 %v2851, %v2958
      %v2960 = vpop.f32.mrf.mxu0
      %2961 = vmatprep.mubr.bf16.mxu0 %v2902
      %2962 = vmatmul.mubr.bf16.gmra.mxu0 %v2901
      %v2963 = vpop.f32.mrf.mxu0
      %v2964 = vadd.f32 %v2856, %v2963
      %v2965 = vpop.f32.mrf.mxu0
      %v2966 = vpop.f32.mrf.mxu0
      %v2967 = vadd.f32 %v2861, %v2966
      %v2968 = vpop.f32.mrf.mxu0
      %2969 = vmatprep.mubr.bf16.mxu0 %v2904
      %2970 = vmatmul.mubr.bf16.gmra.mxu0 %v2903
      %v2971 = vpop.f32.mrf.mxu0
      %v2972 = vadd.f32 %v2866, %v2971
      %v2973 = vpop.f32.mrf.mxu0
      %v2974 = vpop.f32.mrf.mxu0
      %v2975 = vadd.f32 %v2871, %v2974
      %v2976 = vpop.f32.mrf.mxu0
      %2977 = vdwg.mxu0
      %v2978 = vadd.f32 %v2196, %v2948
      %v2979 = vadd.f32 %v2197, %v2951
      %v2980 = vadd.f32 %v2198, %v2956
      %v2981 = vadd.f32 %v2199, %v2959
      %v2982 = vadd.f32 %v2200, %v2964
      %v2983 = vadd.f32 %v2201, %v2967
      %v2984 = vadd.f32 %v2202, %v2972
      %v2985 = vadd.f32 %v2203, %v2975
      %v2986 = vsel %vm1335, %v2978, 0.0
      %v2987 = vsel %vm1335, %v2979, 0.0
      %v2988 = vadd.f32 %v2986, %v2987
      %v2989 = vsel %vm1335, %v2980, 0.0
      %v2990 = vadd.f32 %v2988, %v2989
      %v2991 = vsel %vm1335, %v2981, 0.0
      %v2992 = vadd.f32 %v2990, %v2991
      %v2993 = vsel %vm1335, %v2982, 0.0
      %v2994 = vadd.f32 %v2992, %v2993
      %v2995 = vsel %vm1335, %v2983, 0.0
      %v2996 = vadd.f32 %v2994, %v2995
      %v2997 = vsel %vm1335, %v2984, 0.0
      %v2998 = vadd.f32 %v2996, %v2997
      %v2999 = vsel %vm1335, %v2985, 0.0
      %v3000 = vadd.f32 %v2998, %v2999
      %v3001 = vrot.slane %v3000, 4
      %v3002 = vadd.f32 %v3000, %v3001
      %v3003 = vrot.slane %v3002, 2
      %v3004 = vadd.f32 %v3002, %v3003
      %v3005 = vrot.slane %v3004, 1
      %v3006 = vadd.f32 %v3004, %v3005
      %v3007 = vmul.f32 %v3006, %v2058
      %v3008 = vsub.f32 %v2978, %v3007
      %v3009 = vsub.f32 %v2979, %v3007
      %v3010 = vsub.f32 %v2980, %v3007
      %v3011 = vsub.f32 %v2981, %v3007
      %v3012 = vsub.f32 %v2982, %v3007
      %v3013 = vsub.f32 %v2983, %v3007
      %v3014 = vsub.f32 %v2984, %v3007
      %v3015 = vsub.f32 %v2985, %v3007
      %v3016 = vmul.f32 %v3008, %v3008
      %v3017 = vmul.f32 %v3009, %v3009
      %v3018 = vmul.f32 %v3010, %v3010
      %v3019 = vmul.f32 %v3011, %v3011
      %v3020 = vmul.f32 %v3012, %v3012
      %v3021 = vmul.f32 %v3013, %v3013
      %v3022 = vmul.f32 %v3014, %v3014
      %v3023 = vmul.f32 %v3015, %v3015
      %v3024 = vsel %vm1335, %v3016, 0.0
      %v3025 = vsel %vm1335, %v3017, 0.0
      %v3026 = vadd.f32 %v3024, %v3025
      %v3027 = vsel %vm1335, %v3018, 0.0
      %v3028 = vadd.f32 %v3026, %v3027
      %v3029 = vsel %vm1335, %v3019, 0.0
      %v3030 = vadd.f32 %v3028, %v3029
      %v3031 = vsel %vm1335, %v3020, 0.0
      %v3032 = vadd.f32 %v3030, %v3031
      %v3033 = vsel %vm1335, %v3021, 0.0
      %v3034 = vadd.f32 %v3032, %v3033
      %v3035 = vsel %vm1335, %v3022, 0.0
      %v3036 = vadd.f32 %v3034, %v3035
      %v3037 = vsel %vm1335, %v3023, 0.0
      %v3038 = vadd.f32 %v3036, %v3037
      %v3039 = vrot.slane %v3038, 4
      %v3040 = vadd.f32 %v3038, %v3039
      %v3041 = vrot.slane %v3040, 2
      %v3042 = vadd.f32 %v3040, %v3041
      %v3043 = vrot.slane %v3042, 1
      %v3044 = vadd.f32 %v3042, %v3043
      %v3045 = vmul.f32 %v3044, %v2058
      %v3046 = vadd.f32 %v3045, 1e-05
      %v3047 = vrsqrt.pop %v3046
      %v3048 = vmul.f32 %v3008, %v3047
      %v3049 = vmul.f32 %v3009, %v3047
      %v3050 = vmul.f32 %v3010, %v3047
      %v3051 = vmul.f32 %v3011, %v3047
      %v3052 = vmul.f32 %v3012, %v3047
      %v3053 = vmul.f32 %v3013, %v3047
      %v3054 = vmul.f32 %v3014, %v3047
      %v3055 = vmul.f32 %v3015, %v3047
      %3057 = vset.pattern.permute.xlu0 0
      %3058 = vperm.xlu0 %3057, %v551
      %v3059 = vpop.permute.xlu0 %3058
      %3062 = vset.pattern.permute.xlu0 0
      %3063 = vperm.xlu0 %3062, %v552
      %v3064 = vpop.permute.xlu0 %3063
      %3067 = vset.pattern.permute.xlu0 0
      %3068 = vperm.xlu0 %3067, %v553
      %v3069 = vpop.permute.xlu0 %3068
      %3072 = vset.pattern.permute.xlu0 0
      %3073 = vperm.xlu0 %3072, %v554
      %v3074 = vpop.permute.xlu0 %3073
      %3077 = vset.pattern.permute.xlu0 0
      %3078 = vperm.xlu0 %3077, %v555
      %v3079 = vpop.permute.xlu0 %3078
      %3082 = vset.pattern.permute.xlu0 0
      %3083 = vperm.xlu0 %3082, %v556
      %v3084 = vpop.permute.xlu0 %3083
      %3087 = vset.pattern.permute.xlu0 0
      %3088 = vperm.xlu0 %3087, %v557
      %v3089 = vpop.permute.xlu0 %3088
      %3092 = vset.pattern.permute.xlu0 0
      %3093 = vperm.xlu0 %3092, %v558
      %v3094 = vpop.permute.xlu0 %3093
      %v3096 = vmul.f32 %v3048, %v3059
      %v3097 = vmul.f32 %v3049, %v3064
      %v3098 = vmul.f32 %v3050, %v3069
      %v3099 = vmul.f32 %v3051, %v3074
      %v3100 = vmul.f32 %v3052, %v3079
      %v3101 = vmul.f32 %v3053, %v3084
      %v3102 = vmul.f32 %v3054, %v3089
      %v3103 = vmul.f32 %v3055, %v3094
      %3105 = vset.pattern.permute.xlu0 0
      %3106 = vperm.xlu0 %3105, %v559
      %v3107 = vpop.permute.xlu0 %3106
      %3110 = vset.pattern.permute.xlu0 0
      %3111 = vperm.xlu0 %3110, %v560
      %v3112 = vpop.permute.xlu0 %3111
      %3115 = vset.pattern.permute.xlu0 0
      %3116 = vperm.xlu0 %3115, %v561
      %v3117 = vpop.permute.xlu0 %3116
      %3120 = vset.pattern.permute.xlu0 0
      %3121 = vperm.xlu0 %3120, %v562
      %v3122 = vpop.permute.xlu0 %3121
      %3125 = vset.pattern.permute.xlu0 0
      %3126 = vperm.xlu0 %3125, %v563
      %v3127 = vpop.permute.xlu0 %3126
      %3130 = vset.pattern.permute.xlu0 0
      %3131 = vperm.xlu0 %3130, %v564
      %v3132 = vpop.permute.xlu0 %3131
      %3135 = vset.pattern.permute.xlu0 0
      %3136 = vperm.xlu0 %3135, %v565
      %v3137 = vpop.permute.xlu0 %3136
      %3140 = vset.pattern.permute.xlu0 0
      %3141 = vperm.xlu0 %3140, %v566
      %v3142 = vpop.permute.xlu0 %3141
      %v3144 = vadd.f32 %v3096, %v3107
      %v3145 = vadd.f32 %v3097, %v3112
      %v3146 = vadd.f32 %v3098, %v3117
      %v3147 = vadd.f32 %v3099, %v3122
      %v3148 = vadd.f32 %v3100, %v3127
      %v3149 = vadd.f32 %v3101, %v3132
      %v3150 = vadd.f32 %v3102, %v3137
      %v3151 = vadd.f32 %v3103, %v3142
      %3152 = vst.msk [vmem:[%s413] sm:$0xff] %vm1335, %v3144
      %3153 = vst.msk [vmem:[%s413 + $0x8] sm:$0xff] %vm1335, %v3145
      %3154 = vst.msk [vmem:[%s413 + $0x10] sm:$0xff] %vm1335, %v3146
      %3155 = vst.msk [vmem:[%s413 + $0x18] sm:$0xff] %vm1335, %v3147
      %3156 = vst.msk [vmem:[%s413 + $0x20] sm:$0xff] %vm1335, %v3148
      %3157 = vst.msk [vmem:[%s413 + $0x28] sm:$0xff] %vm1335, %v3149
      %3158 = vst.msk [vmem:[%s413 + $0x30] sm:$0xff] %vm1335, %v3150
      %3159 = vst.msk [vmem:[%s413 + $0x38] sm:$0xff] %vm1335, %v3151
      %p3160 = scmp.lt.s32.totalorder %s23, 1
      %s3161 = scalar_select %p3160, %s23, 1
      %s3162 = smul.addr %s3161, 8
      %s3163 = smul.addr %s3162, 8
      %s3164 = scalar_lea.vmem %s12, %s3163
      // Predicated region
      $region69: #{tpu_custom_call.1} parent=67 // pred_check
        %p3165 = pneg %p298
      $region70: #{tpu_custom_call.1} parent=67 // pred_check_branch
        %3167 = sbr.rel (%p3165) target = $region72
      $region71: #{tpu_custom_call.1} parent=67 // pred_region
        _
      $region72: #{tpu_custom_call.1} parent=67 // pred_fallthru
        _
    $region68: #{tpu_custom_call.1} parent=5 // pred_fallthru
      _
    %p3168 = scmp.le.s32.totalorder 2, %s18
    // Predicated region
    $region73: #{tpu_custom_call.1} parent=5 // pred_check
      %p3169 = pneg %p3168
    $region74: #{tpu_custom_call.1} parent=5 // pred_check_branch
      %3171 = sbr.rel (%p3169) target = $region76
    $region75: #{tpu_custom_call.1} parent=5 // pred_region
      %s3172 = ssub.s32 %s18, 2
      // Predicated region
      $region77: #{tpu_custom_call.1} parent=75 // pred_check
        %p3173 = pneg %p304
      $region78: #{tpu_custom_call.1} parent=75 // pred_check_branch
        %3175 = sbr.rel (%p3173) target = $region80
      $region79: #{tpu_custom_call.1} parent=75 // pred_region
        %p3176 = scmp.lt.s32.totalorder %s24, 1
        %s3177 = scalar_select %p3176, %s24, 1
        %s3178 = smul.addr %s3177, 8
        %s3179 = smul.addr %s3178, 8
        %s3180 = scalar_lea.vmem %s12, %s3179
      $region80: #{tpu_custom_call.1} parent=75 // pred_fallthru
        _
    $region76: #{tpu_custom_call.1} parent=5 // pred_fallthru
      _
  $region6: #{tpu_custom_call.1} parent=0 // loop_footer
    %s22 = sadd.s32 1, %s18
  $region7: #{tpu_custom_call.1} parent=0 // loop_footer_branch
    %17 = sbr.rel target = $region3
  $region8: #{tpu_custom_call.1} parent=0 // loop_exit
    _

</llo_original>
